<compile_context>
chip_gen: v6e
topology: v6e:2x2x1
jax: 0.10.0
libtpu: 0.0.40
codegen_flags: <defaults>
</compile_context>

<pallas_src>
import math

import jax
import jax.numpy as jnp
from jax import lax
from jax.experimental import pallas as pl
from jax.experimental.pallas import tpu as pltpu


# ----------------------------------------------------------------------------
# Fused BiLSTM (2 layers, both directions) + head kernel
# ----------------------------------------------------------------------------
def bilstm_head_kernel(x_ref,                          # (L, Bp, E)   bf16
                       w1_ih, w1_hh, b1,               # (E,8H) bf16, (2H,8H) bf16, (1,8H) f32
                       w2_ih, w2_hh, b2,               # (2H,8H) bf16, (2H,8H) bf16, (1,8H) f32
                       wcls_ref,                       # (H, C) f32
                       hid_ref, logit_ref,             # (Bp,H) f32, (Bp,C) f32
                       g_sc, yf_sc, yb_sc):            # scratch: gates f32, y bf16
    L, Bp, E = x_ref.shape
    H = yf_sc.shape[-1]
    G = 8 * H
    f32, bf16 = jnp.float32, jnp.bfloat16

    # Hoisted per-lane affine implementing sigmoid(x) = 0.5*(1 + tanh(x/2)).
    # The i/f/o gate columns were pre-halved in the packed weights; the g-gate
    # lanes ((lane mod 4H) in [2H,3H)) keep plain tanh.
    lane4 = lax.broadcasted_iota(jnp.int32, (Bp, G), 1) % (4 * H)
    is_g = (lane4 >= 2 * H) & (lane4 < 3 * H)
    a_scale = jnp.where(is_g, 1.0, 0.5).astype(f32)
    a_off = jnp.where(is_g, 0.0, 0.5).astype(f32)

    def fused_cell(pre, c_cat):
        # pre:   (Bp, 8H) fused gate pre-activations  [if ff gf of | ib fb gb ob]
        # c_cat: (Bp, 2H) fused cell state             [cf | cb]
        act = jnp.tanh(pre) * a_scale + a_off            # single EUP push per step
        i_cat = jnp.concatenate([act[:, 0 * H:1 * H], act[:, 4 * H:5 * H]], axis=1)
        f_cat = jnp.concatenate([act[:, 1 * H:2 * H], act[:, 5 * H:6 * H]], axis=1)
        g_cat = jnp.concatenate([act[:, 2 * H:3 * H], act[:, 6 * H:7 * H]], axis=1)
        o_cat = jnp.concatenate([act[:, 3 * H:4 * H], act[:, 7 * H:8 * H]], axis=1)
        c_new = f_cat * c_cat + i_cat * g_cat
        h_new = o_cat * jnp.tanh(c_new)                  # one (Bp,2H) EUP push
        return h_new, c_new

    zeros2 = jnp.zeros((Bp, 2 * H), f32)

    # ---------------- Layer 1: one hoisted (L*Bp,E)@(E,8H) input projection ----
    x2d = x_ref[...].reshape(L * Bp, E)
    g_sc[...] = (jnp.dot(x2d, w1_ih[...], preferred_element_type=f32)
                 + b1[...]).reshape(L, Bp, G)

    def step1(t, carry):
        h_bf, c_cat = carry                     # h_bf: (Bp,2H) bf16 [hf|hb]
        tb = L - 1 - t
        gt = g_sc[t]                            # (Bp, 8H) f32
        gtb = g_sc[tb]
        pre_in = jnp.concatenate([gt[:, :4 * H], gtb[:, 4 * H:]], axis=1)
        pre = pre_in + jnp.dot(h_bf, w1_hh[...], preferred_element_type=f32)
        h_new, c_new = fused_cell(pre, c_cat)
        h_bf_new = h_new.astype(bf16)           # cast once; reused next step + store
        yf_sc[t] = h_bf_new[:, :H]              # fwd output at time t
        yb_sc[tb] = h_bf_new[:, H:]             # bwd output, original time order
        return h_bf_new, c_new

    lax.fori_loop(0, L, step1, (zeros2.astype(bf16), zeros2), unroll=True)

    # ---------------- Layer 2: one hoisted (L*Bp,2H)@(2H,8H) input projection --
    y2d = jnp.concatenate([yf_sc[...].reshape(L * Bp, H),
                           yb_sc[...].reshape(L * Bp, H)], axis=1)   # bf16, concat-free in HBM
    g_sc[...] = (jnp.dot(y2d, w2_ih[...], preferred_element_type=f32)
                 + b2[...]).reshape(L, Bp, G)

    # ---------------- Layer 2 recurrence + fused dir-sum / time-sum ------------
    def step2(t, carry):
        h_bf, c_cat, acc = carry
        tb = L - 1 - t
        gt = g_sc[t]
        gtb = g_sc[tb]
        pre_in = jnp.concatenate([gt[:, :4 * H], gtb[:, 4 * H:]], axis=1)
        pre = pre_in + jnp.dot(h_bf, w2_hh[...], preferred_element_type=f32)
        h_new, c_new = fused_cell(pre, c_cat)
        acc = acc + h_new[:, :H] + h_new[:, H:]          # order-independent time-sum
        return h_new.astype(bf16), c_new, acc

    _, _, acc = lax.fori_loop(
        0, L, step2, (zeros2.astype(bf16), zeros2, jnp.zeros((Bp, H), f32)),
        unroll=True)

    # ---------------- Head: mean over time + bias-free classifier --------------
    mean = acc * (1.0 / L)
    hid_ref[...] = mean
    logit_ref[...] = jnp.dot(mean, wcls_ref[...], preferred_element_type=f32)


def fused_bilstm_head(x_tm_bf16, weight_args, H, C):
    L, Bp, E = x_tm_bf16.shape
    n_in = 1 + len(weight_args)

    # Explicit VMEM budget (review item): scratch + resident inputs/outputs.
    vmem_bytes = (int(x_tm_bf16.size) * 2
                  + sum(int(w.size) * w.dtype.itemsize for w in weight_args)
                  + Bp * (H + C) * 4
                  + L * Bp * 8 * H * 4          # fused gate scratch (f32)
                  + 2 * L * Bp * H * 2)         # layer-1 outputs (bf16)
    vmem_limit = int(min(48 * 1024 * 1024, max(16 * 1024 * 1024, 4 * vmem_bytes)))

    return pl.pallas_call(
        bilstm_head_kernel,
        out_shape=(jax.ShapeDtypeStruct((Bp, H), jnp.float32),
                   jax.ShapeDtypeStruct((Bp, C), jnp.float32)),
        in_specs=[pl.BlockSpec(memory_space=pltpu.MemorySpace.VMEM)] * n_in,
        out_specs=(pl.BlockSpec(memory_space=pltpu.MemorySpace.VMEM),
                   pl.BlockSpec(memory_space=pltpu.MemorySpace.VMEM)),
        scratch_shapes=[pltpu.VMEM((L, Bp, 8 * H), jnp.float32),   # packed gates (reused L1/L2)
                        pltpu.VMEM((L, Bp, H), jnp.bfloat16),      # layer-1 fwd outputs
                        pltpu.VMEM((L, Bp, H), jnp.bfloat16)],     # layer-1 bwd outputs
        compiler_params=pltpu.CompilerParams(vmem_limit_bytes=vmem_limit),
    )(x_tm_bf16, *weight_args)


# ----------------------------------------------------------------------------
# Parameter init (deterministic, mirrors the nn.Module shapes)
# ----------------------------------------------------------------------------
def init_params(key, vocab_size, E, H, num_class):
    ks = jax.random.split(key, 20)
    bound = 1.0 / math.sqrt(H)

    def u(k, shape):
        return jax.random.uniform(k, shape, jnp.float32, -bound, bound)

    emb = jax.random.normal(ks[0], (vocab_size, E), jnp.float32)
    emb = emb.at[0].set(0.0)                      # padding_idx=0

    params = {"embedding": emb, "lstm": []}
    in_sizes = [E, 2 * H]
    ki = 1
    for layer in range(2):
        layer_p = {}
        for dirn in ("fwd", "bwd"):
            layer_p[dirn] = {
                # NOTE: stored transposed vs torch: w_ih (in, 4H), w_hh (H, 4H),
                # gate order i|f|g|o (same as nn.LSTM).  Loading a real torch
                # checkpoint requires a .T and gate-order check.
                "w_ih": u(ks[ki + 0], (in_sizes[layer], 4 * H)),
                "w_hh": u(ks[ki + 1], (H, 4 * H)),
                "b": u(ks[ki + 2], (1, 4 * H)) + u(ks[ki + 3], (1, 4 * H)),  # b_ih + b_hh
            }
            ki += 4
        params["lstm"].append(layer_p)
    params["w_cls"] = u(ks[ki], (num_class, H))   # nn.Linear(H, C, bias=False)
    return params


def _prep_weights(params):
    """Pack fwd/bwd into fused (.., 8H) weights, pre-halve i/f/o columns for the
    single-tanh trick, build block-diagonal recurrent weights, cast MXU operands
    to bf16."""
    bf = jnp.bfloat16
    l1, l2 = params["lstm"]
    H = l1["fwd"]["w_hh"].shape[0]

    # sigmoid(x) = 0.5*(1 + tanh(x/2)) -> pre-halve i/f/o gate columns (order i|f|g|o).
    col_scale = jnp.concatenate([jnp.full((H,), 0.5), jnp.full((H,), 0.5),
                                 jnp.ones((H,)), jnp.full((H,), 0.5)]).astype(jnp.float32)

    def pack_ih(layer):   # (in, 8H) = [fwd i|f|g|o | bwd i|f|g|o], columns pre-scaled
        return jnp.concatenate([layer["fwd"]["w_ih"] * col_scale,
                                layer["bwd"]["w_ih"] * col_scale], axis=1)

    def pack_b(layer):    # (1, 8H)
        return jnp.concatenate([layer["fwd"]["b"] * col_scale,
                                layer["bwd"]["b"] * col_scale], axis=1)

    def pack_hh(layer):   # block-diagonal (2H, 8H): [hf|hb] @ W -> fused gate tile
        wf = layer["fwd"]["w_hh"] * col_scale
        wb = layer["bwd"]["w_hh"] * col_scale
        z = jnp.zeros_like(wf)
        return jnp.concatenate([jnp.concatenate([wf, z], axis=1),
                                jnp.concatenate([z, wb], axis=1)], axis=0)

    return [
        pack_ih(l1).astype(bf), pack_hh(l1).astype(bf), pack_b(l1),
        pack_ih(l2).astype(bf), pack_hh(l2).astype(bf), pack_b(l2),
        params["w_cls"].T,                        # (H, C) f32
    ]


# ----------------------------------------------------------------------------
# Model forward (flag != 0 path)
# ----------------------------------------------------------------------------
@jax.jit
def _forward_core(params, x):
    B, L = x.shape
    H = params["lstm"][0]["fwd"]["w_hh"].shape[0]
    C = params["w_cls"].shape[0]

    # Fold batch pad + time-major transpose into the (tiny) index array, gather
    # directly into the (L, Bp, E) slab, single cast to bf16.
    Bp = ((B + 7) // 8) * 8                                  # sublane quantum
    x_pad = jnp.pad(x, ((0, Bp - B), (0, 0)))                # pad idx 0 -> zero row
    x_tm = jnp.take(params["embedding"], x_pad.T, axis=0).astype(jnp.bfloat16)

    hid_p, logit_p = fused_bilstm_head(x_tm, _prep_weights(params), H, C)
    return logit_p[:B], hid_p[:B]


def model_forward(params, x, target, index, original_target, flag, purity=None):
    # flag == 0 would route through GBNR.apply on CPU (see TODO at top); the
    # flag != 0 path below matches the reference module exactly (eval mode).
    logits, hidden = _forward_core(params, x)
    return logits, target, index, hidden, None, None


# ----------------------------------------------------------------------------
# Pure-JAX f32 reference (standard sigmoid/tanh LSTM) for a sanity check
# ----------------------------------------------------------------------------
@jax.jit
def reference_forward(params, x):
    emb = jnp.take(params["embedding"], x, axis=0)           # (B, L, E)
    H = params["lstm"][0]["fwd"]["w_hh"].shape[0]

    def lstm_dir(xs, w_ih, w_hh, b, reverse):
        def step(carry, x_t):
            h, c = carry
            gates = x_t @ w_ih + h @ w_hh + b[0]
            i, f, g, o = jnp.split(gates, 4, axis=-1)
            i, f, o = jax.nn.sigmoid(i), jax.nn.sigmoid(f), jax.nn.sigmoid(o)
            g = jnp.tanh(g)
            c = f * c + i * g
            h = o * jnp.tanh(c)
            return (h, c), h

        xs_t = jnp.swapaxes(xs, 0, 1)
        if reverse:
            xs_t = xs_t[::-1]
        h0 = jnp.zeros((xs.shape[0], H), jnp.float32)
        _, ys = lax.scan(step, (h0, h0), xs_t)
        if reverse:
            ys = ys[::-1]
        return jnp.swapaxes(ys, 0, 1)

    out = emb
    for layer in params["lstm"]:
        yf = lstm_dir(out, layer["fwd"]["w_ih"], layer["fwd"]["w_hh"], layer["fwd"]["b"], False)
        yb = lstm_dir(out, layer["bwd"]["w_ih"], layer["bwd"]["w_hh"], layer["bwd"]["b"], True)
        out = jnp.concatenate([yf, yb], axis=-1)
    hid = (out[:, :, :H] + out[:, :, H:]).mean(axis=1)
    logits = hid @ params["w_cls"].T
    return logits, hid


# ----------------------------------------------------------------------------
if __name__ == "__main__":
    vocab_size, E, H = 50, 32, 32
    B, L, C = 2, 8, 4

    key = jax.random.PRNGKey(0)
    kp, kx, kt = jax.random.split(key, 3)

    params = init_params(kp, vocab_size, E, H, C)
    x = jax.random.randint(kx, (B, L), 0, vocab_size, dtype=jnp.int32)
    target = jax.random.randint(kt, (B,), 0, C, dtype=jnp.int32)
    index = jnp.arange(B, dtype=jnp.int32)
    original_target = target

    logits, tgt, idx, hidden, gb_id, center_v = model_forward(
        params, x, target, index, original_target, flag=1)
    jax.block_until_ready((logits, hidden))
    assert logits.shape == (B, C) and hidden.shape == (B, H)

    # Loose-tolerance check vs f32 reference (bf16 MXU operands => small deviation).
    ref_logits, ref_hidden = reference_forward(params, x)
    jax.block_until_ready((ref_logits, ref_hidden))
    err_h = float(jnp.max(jnp.abs(hidden - ref_hidden)))
    err_l = float(jnp.max(jnp.abs(logits - ref_logits)))
    assert err_h < 0.1 and err_l < 0.1, (err_h, err_l)

    print("KERNEL_OK")
</pallas_src>

<mosaic_0001>
module attributes {stable_mosaic.version = 11 : i64} {
  func.func @bilstm_head_kernel(%arg0: memref<8x8x32xbf16, #tpu.memory_space<vmem>>, %arg1: memref<32x256xbf16, #tpu.memory_space<vmem>>, %arg2: memref<64x256xbf16, #tpu.memory_space<vmem>>, %arg3: memref<1x256xf32, #tpu.memory_space<vmem>>, %arg4: memref<64x256xbf16, #tpu.memory_space<vmem>>, %arg5: memref<64x256xbf16, #tpu.memory_space<vmem>>, %arg6: memref<1x256xf32, #tpu.memory_space<vmem>>, %arg7: memref<32x4xf32, #tpu.memory_space<vmem>>, %arg8: memref<8x32xf32, #tpu.memory_space<vmem>>, %arg9: memref<8x4xf32, #tpu.memory_space<vmem>>, %arg10: memref<8x8x256xf32, #tpu.memory_space<vmem>>, %arg11: memref<8x8x32xbf16, #tpu.memory_space<vmem>>, %arg12: memref<8x8x32xbf16, #tpu.memory_space<vmem>>) attributes {dimension_semantics = [], scalar_prefetch = 0 : i64, scratch_operands = 3 : i64, tpu.core_type = #tpu.core_type<tc>} {
    %0 = tpu.iota {dimensions = array<i32: 1>} : vector<8x256xi32>
    %c128_i32 = arith.constant 128 : i32
    %c0_i32 = arith.constant 0 : i32
    %1 = arith.cmpi eq, %c128_i32, %c0_i32 : i32
    %c1_i32 = arith.constant 1 : i32
    %2 = arith.select %1, %c1_i32, %c128_i32 : i32
    %3 = vector.broadcast %2 : i32 to vector<8x256xi32>
    %4 = arith.remsi %0, %3 : vector<8x256xi32>
    %c0_i32_0 = arith.constant 0 : i32
    %5 = vector.broadcast %c0_i32_0 : i32 to vector<8x256xi32>
    %6 = arith.cmpi ne, %4, %5 : vector<8x256xi32>
    %c0_i32_1 = arith.constant 0 : i32
    %7 = vector.broadcast %c0_i32_1 : i32 to vector<8x256xi32>
    %8 = arith.cmpi slt, %4, %7 : vector<8x256xi32>
    %c0_i32_2 = arith.constant 0 : i32
    %9 = arith.cmpi slt, %2, %c0_i32_2 : i32
    %10 = vector.broadcast %9 : i1 to vector<8x256xi1>
    %11 = vector.broadcast %10 : vector<8x256xi1> to vector<8x256xi1>
    %12 = arith.xori %8, %11 : vector<8x256xi1>
    %13 = arith.andi %12, %6 : vector<8x256xi1>
    %14 = vector.broadcast %2 : i32 to vector<8x256xi32>
    %15 = arith.addi %4, %14 : vector<8x256xi32>
    %16 = arith.select %13, %15, %4 : vector<8x256xi1>, vector<8x256xi32>
    %c64_i32 = arith.constant 64 : i32
    %17 = vector.broadcast %c64_i32 : i32 to vector<8x256xi32>
    %18 = arith.cmpi sge, %16, %17 : vector<8x256xi32>
    %c96_i32 = arith.constant 96 : i32
    %19 = vector.broadcast %c96_i32 : i32 to vector<8x256xi32>
    %20 = arith.cmpi slt, %16, %19 : vector<8x256xi32>
    %21 = arith.andi %18, %20 : vector<8x256xi1>
    %cst = arith.constant 1.000000e+00 : f32
    %cst_3 = arith.constant 5.000000e-01 : f32
    %22 = vector.broadcast %cst : f32 to vector<8x256xf32>
    %23 = vector.broadcast %cst_3 : f32 to vector<8x256xf32>
    %24 = arith.select %21, %22, %23 : vector<8x256xi1>, vector<8x256xf32>
    %cst_4 = arith.constant 0.000000e+00 : f32
    %cst_5 = arith.constant 5.000000e-01 : f32
    %25 = vector.broadcast %cst_4 : f32 to vector<8x256xf32>
    %26 = vector.broadcast %cst_5 : f32 to vector<8x256xf32>
    %27 = arith.select %21, %25, %26 : vector<8x256xi1>, vector<8x256xf32>
    %cst_6 = arith.constant 0.000000e+00 : f32
    %28 = vector.broadcast %cst_6 : f32 to vector<8x64xf32>
    %c0 = arith.constant 0 : index
    %c0_7 = arith.constant 0 : index
    %c0_8 = arith.constant 0 : index
    %29 = vector.load %arg0[%c0, %c0_7, %c0_8] : memref<8x8x32xbf16, #tpu.memory_space<vmem>>, vector<8x8x32xbf16>
    %30 = vector.shape_cast %29 : vector<8x8x32xbf16> to vector<64x32xbf16>
    %c0_9 = arith.constant 0 : index
    %c0_10 = arith.constant 0 : index
    %31 = vector.load %arg1[%c0_9, %c0_10] : memref<32x256xbf16, #tpu.memory_space<vmem>>, vector<32x256xbf16>
    %cst_11 = arith.constant dense<0.000000e+00> : vector<64x256xf32>
    %32 = tpu.matmul %30, %31, %cst_11 {dimension_numbers = #tpu.dot_dimension_numbers<[1], [0], [0], [1], [0, 0, 1, 1], [], []>} : vector<64x32xbf16>, vector<32x256xbf16>, vector<64x256xf32> -> vector<64x256xf32>
    %c0_12 = arith.constant 0 : index
    %c0_13 = arith.constant 0 : index
    %33 = vector.load %arg3[%c0_12, %c0_13] : memref<1x256xf32, #tpu.memory_space<vmem>>, vector<1x256xf32>
    %34 = vector.broadcast %33 : vector<1x256xf32> to vector<64x256xf32>
    %35 = arith.addf %32, %34 : vector<64x256xf32>
    %36 = vector.shape_cast %35 : vector<64x256xf32> to vector<8x8x256xf32>
    %c0_14 = arith.constant 0 : index
    %c0_15 = arith.constant 0 : index
    %c0_16 = arith.constant 0 : index
    %37 = vector.load %arg10[%c0_14, %c0_15, %c0_16] : memref<8x8x256xf32, #tpu.memory_space<vmem>>, vector<8x8x256xf32>
    tpu.vector_store %arg10[%c0_14, %c0_15, %c0_16], %36 {strides = array<i32>} : memref<8x8x256xf32, #tpu.memory_space<vmem>>, vector<8x8x256xf32>,
    %38 = arith.truncf %28 : vector<8x64xf32> to vector<8x64xbf16>
    %c0_i32_17 = arith.constant 0 : i32
    %c7_i32 = arith.constant 7 : i32
    %39 = arith.subi %c7_i32, %c0_i32_17 : i32
    %40 = arith.index_cast %c0_i32_17 : i32 to index
    %c0_18 = arith.constant 0 : index
    %c0_19 = arith.constant 0 : index
    %41 = vector.load %arg10[%40, %c0_18, %c0_19] : memref<8x8x256xf32, #tpu.memory_space<vmem>>, vector<1x8x256xf32>
    %42 = vector.shape_cast %41 : vector<1x8x256xf32> to vector<8x256xf32>
    %43 = arith.index_cast %39 : i32 to index
    %c0_20 = arith.constant 0 : index
    %c0_21 = arith.constant 0 : index
    %44 = vector.load %arg10[%43, %c0_20, %c0_21] : memref<8x8x256xf32, #tpu.memory_space<vmem>>, vector<1x8x256xf32>
    %45 = vector.shape_cast %44 : vector<1x8x256xf32> to vector<8x256xf32>
    %46 = vector.extract_strided_slice %42 {offsets = [0, 0], sizes = [8, 128], strides = [1, 1]} : vector<8x256xf32> to vector<8x128xf32>
    %47 = vector.extract_strided_slice %45 {offsets = [0, 128], sizes = [8, 128], strides = [1, 1]} : vector<8x256xf32> to vector<8x128xf32>
    %48 = tpu.concatenate %46, %47 in 1 : vector<8x128xf32>, vector<8x128xf32> -> vector<8x256xf32>
    %c0_22 = arith.constant 0 : index
    %c0_23 = arith.constant 0 : index
    %49 = vector.load %arg2[%c0_22, %c0_23] : memref<64x256xbf16, #tpu.memory_space<vmem>>, vector<64x256xbf16>
    %cst_24 = arith.constant dense<0.000000e+00> : vector<8x256xf32>
    %50 = tpu.matmul %38, %49, %cst_24 {dimension_numbers = #tpu.dot_dimension_numbers<[1], [0], [0], [1], [0, 0, 1, 1], [], []>} : vector<8x64xbf16>, vector<64x256xbf16>, vector<8x256xf32> -> vector<8x256xf32>
    %51 = arith.addf %48, %50 : vector<8x256xf32>
    %52 = math.tanh %51 : vector<8x256xf32>
    %53 = arith.mulf %52, %24 : vector<8x256xf32>
    %54 = arith.addf %53, %27 : vector<8x256xf32>
    %55 = vector.extract_strided_slice %54 {offsets = [0, 0], sizes = [8, 32], strides = [1, 1]} : vector<8x256xf32> to vector<8x32xf32>
    %56 = vector.extract_strided_slice %54 {offsets = [0, 128], sizes = [8, 32], strides = [1, 1]} : vector<8x256xf32> to vector<8x32xf32>
    %57 = tpu.concatenate %55, %56 in 1 : vector<8x32xf32>, vector<8x32xf32> -> vector<8x64xf32>
    %58 = vector.extract_strided_slice %54 {offsets = [0, 32], sizes = [8, 32], strides = [1, 1]} : vector<8x256xf32> to vector<8x32xf32>
    %59 = vector.extract_strided_slice %54 {offsets = [0, 160], sizes = [8, 32], strides = [1, 1]} : vector<8x256xf32> to vector<8x32xf32>
    %60 = tpu.concatenate %58, %59 in 1 : vector<8x32xf32>, vector<8x32xf32> -> vector<8x64xf32>
    %61 = vector.extract_strided_slice %54 {offsets = [0, 64], sizes = [8, 32], strides = [1, 1]} : vector<8x256xf32> to vector<8x32xf32>
    %62 = vector.extract_strided_slice %54 {offsets = [0, 192], sizes = [8, 32], strides = [1, 1]} : vector<8x256xf32> to vector<8x32xf32>
    %63 = tpu.concatenate %61, %62 in 1 : vector<8x32xf32>, vector<8x32xf32> -> vector<8x64xf32>
    %64 = vector.extract_strided_slice %54 {offsets = [0, 96], sizes = [8, 32], strides = [1, 1]} : vector<8x256xf32> to vector<8x32xf32>
    %65 = vector.extract_strided_slice %54 {offsets = [0, 224], sizes = [8, 32], strides = [1, 1]} : vector<8x256xf32> to vector<8x32xf32>
    %66 = tpu.concatenate %64, %65 in 1 : vector<8x32xf32>, vector<8x32xf32> -> vector<8x64xf32>
    %67 = arith.mulf %60, %28 : vector<8x64xf32>
    %68 = arith.mulf %57, %63 : vector<8x64xf32>
    %69 = arith.addf %67, %68 : vector<8x64xf32>
    %70 = math.tanh %69 : vector<8x64xf32>
    %71 = arith.mulf %66, %70 : vector<8x64xf32>
    %72 = arith.truncf %71 : vector<8x64xf32> to vector<8x64xbf16>
    %73 = vector.extract_strided_slice %72 {offsets = [0, 0], sizes = [8, 32], strides = [1, 1]} : vector<8x64xbf16> to vector<8x32xbf16>
    %74 = arith.index_cast %c0_i32_17 : i32 to index
    %c0_25 = arith.constant 0 : index
    %c0_26 = arith.constant 0 : index
    %75 = vector.load %arg11[%74, %c0_25, %c0_26] : memref<8x8x32xbf16, #tpu.memory_space<vmem>>, vector<1x8x32xbf16>
    %76 = vector.shape_cast %75 : vector<1x8x32xbf16> to vector<8x32xbf16>
    %77 = vector.shape_cast %73 : vector<8x32xbf16> to vector<1x8x32xbf16>
    tpu.vector_store %arg11[%74, %c0_25, %c0_26], %77 {strides = array<i32>} : memref<8x8x32xbf16, #tpu.memory_space<vmem>>, vector<1x8x32xbf16>,
    %78 = vector.extract_strided_slice %72 {offsets = [0, 32], sizes = [8, 32], strides = [1, 1]} : vector<8x64xbf16> to vector<8x32xbf16>
    %79 = arith.index_cast %39 : i32 to index
    %c0_27 = arith.constant 0 : index
    %c0_28 = arith.constant 0 : index
    %80 = vector.load %arg12[%79, %c0_27, %c0_28] : memref<8x8x32xbf16, #tpu.memory_space<vmem>>, vector<1x8x32xbf16>
    %81 = vector.shape_cast %80 : vector<1x8x32xbf16> to vector<8x32xbf16>
    %82 = vector.shape_cast %78 : vector<8x32xbf16> to vector<1x8x32xbf16>
    tpu.vector_store %arg12[%79, %c0_27, %c0_28], %82 {strides = array<i32>} : memref<8x8x32xbf16, #tpu.memory_space<vmem>>, vector<1x8x32xbf16>,
    %c1_i32_29 = arith.constant 1 : i32
    %c7_i32_30 = arith.constant 7 : i32
    %83 = arith.subi %c7_i32_30, %c1_i32_29 : i32
    %84 = arith.index_cast %c1_i32_29 : i32 to index
    %c0_31 = arith.constant 0 : index
    %c0_32 = arith.constant 0 : index
    %85 = vector.load %arg10[%84, %c0_31, %c0_32] : memref<8x8x256xf32, #tpu.memory_space<vmem>>, vector<1x8x256xf32>
    %86 = vector.shape_cast %85 : vector<1x8x256xf32> to vector<8x256xf32>
    %87 = arith.index_cast %83 : i32 to index
    %c0_33 = arith.constant 0 : index
    %c0_34 = arith.constant 0 : index
    %88 = vector.load %arg10[%87, %c0_33, %c0_34] : memref<8x8x256xf32, #tpu.memory_space<vmem>>, vector<1x8x256xf32>
    %89 = vector.shape_cast %88 : vector<1x8x256xf32> to vector<8x256xf32>
    %90 = vector.extract_strided_slice %86 {offsets = [0, 0], sizes = [8, 128], strides = [1, 1]} : vector<8x256xf32> to vector<8x128xf32>
    %91 = vector.extract_strided_slice %89 {offsets = [0, 128], sizes = [8, 128], strides = [1, 1]} : vector<8x256xf32> to vector<8x128xf32>
    %92 = tpu.concatenate %90, %91 in 1 : vector<8x128xf32>, vector<8x128xf32> -> vector<8x256xf32>
    %c0_35 = arith.constant 0 : index
    %c0_36 = arith.constant 0 : index
    %93 = vector.load %arg2[%c0_35, %c0_36] : memref<64x256xbf16, #tpu.memory_space<vmem>>, vector<64x256xbf16>
    %cst_37 = arith.constant dense<0.000000e+00> : vector<8x256xf32>
    %94 = tpu.matmul %72, %93, %cst_37 {dimension_numbers = #tpu.dot_dimension_numbers<[1], [0], [0], [1], [0, 0, 1, 1], [], []>} : vector<8x64xbf16>, vector<64x256xbf16>, vector<8x256xf32> -> vector<8x256xf32>
    %95 = arith.addf %92, %94 : vector<8x256xf32>
    %96 = math.tanh %95 : vector<8x256xf32>
    %97 = arith.mulf %96, %24 : vector<8x256xf32>
    %98 = arith.addf %97, %27 : vector<8x256xf32>
    %99 = vector.extract_strided_slice %98 {offsets = [0, 0], sizes = [8, 32], strides = [1, 1]} : vector<8x256xf32> to vector<8x32xf32>
    %100 = vector.extract_strided_slice %98 {offsets = [0, 128], sizes = [8, 32], strides = [1, 1]} : vector<8x256xf32> to vector<8x32xf32>
    %101 = tpu.concatenate %99, %100 in 1 : vector<8x32xf32>, vector<8x32xf32> -> vector<8x64xf32>
    %102 = vector.extract_strided_slice %98 {offsets = [0, 32], sizes = [8, 32], strides = [1, 1]} : vector<8x256xf32> to vector<8x32xf32>
    %103 = vector.extract_strided_slice %98 {offsets = [0, 160], sizes = [8, 32], strides = [1, 1]} : vector<8x256xf32> to vector<8x32xf32>
    %104 = tpu.concatenate %102, %103 in 1 : vector<8x32xf32>, vector<8x32xf32> -> vector<8x64xf32>
    %105 = vector.extract_strided_slice %98 {offsets = [0, 64], sizes = [8, 32], strides = [1, 1]} : vector<8x256xf32> to vector<8x32xf32>
    %106 = vector.extract_strided_slice %98 {offsets = [0, 192], sizes = [8, 32], strides = [1, 1]} : vector<8x256xf32> to vector<8x32xf32>
    %107 = tpu.concatenate %105, %106 in 1 : vector<8x32xf32>, vector<8x32xf32> -> vector<8x64xf32>
    %108 = vector.extract_strided_slice %98 {offsets = [0, 96], sizes = [8, 32], strides = [1, 1]} : vector<8x256xf32> to vector<8x32xf32>
    %109 = vector.extract_strided_slice %98 {offsets = [0, 224], sizes = [8, 32], strides = [1, 1]} : vector<8x256xf32> to vector<8x32xf32>
    %110 = tpu.concatenate %108, %109 in 1 : vector<8x32xf32>, vector<8x32xf32> -> vector<8x64xf32>
    %111 = arith.mulf %104, %69 : vector<8x64xf32>
    %112 = arith.mulf %101, %107 : vector<8x64xf32>
    %113 = arith.addf %111, %112 : vector<8x64xf32>
    %114 = math.tanh %113 : vector<8x64xf32>
    %115 = arith.mulf %110, %114 : vector<8x64xf32>
    %116 = arith.truncf %115 : vector<8x64xf32> to vector<8x64xbf16>
    %117 = vector.extract_strided_slice %116 {offsets = [0, 0], sizes = [8, 32], strides = [1, 1]} : vector<8x64xbf16> to vector<8x32xbf16>
    %118 = arith.index_cast %c1_i32_29 : i32 to index
    %c0_38 = arith.constant 0 : index
    %c0_39 = arith.constant 0 : index
    %119 = vector.load %arg11[%118, %c0_38, %c0_39] : memref<8x8x32xbf16, #tpu.memory_space<vmem>>, vector<1x8x32xbf16>
    %120 = vector.shape_cast %119 : vector<1x8x32xbf16> to vector<8x32xbf16>
    %121 = vector.shape_cast %117 : vector<8x32xbf16> to vector<1x8x32xbf16>
    tpu.vector_store %arg11[%118, %c0_38, %c0_39], %121 {strides = array<i32>} : memref<8x8x32xbf16, #tpu.memory_space<vmem>>, vector<1x8x32xbf16>,
    %122 = vector.extract_strided_slice %116 {offsets = [0, 32], sizes = [8, 32], strides = [1, 1]} : vector<8x64xbf16> to vector<8x32xbf16>
    %123 = arith.index_cast %83 : i32 to index
    %c0_40 = arith.constant 0 : index
    %c0_41 = arith.constant 0 : index
    %124 = vector.load %arg12[%123, %c0_40, %c0_41] : memref<8x8x32xbf16, #tpu.memory_space<vmem>>, vector<1x8x32xbf16>
    %125 = vector.shape_cast %124 : vector<1x8x32xbf16> to vector<8x32xbf16>
    %126 = vector.shape_cast %122 : vector<8x32xbf16> to vector<1x8x32xbf16>
    tpu.vector_store %arg12[%123, %c0_40, %c0_41], %126 {strides = array<i32>} : memref<8x8x32xbf16, #tpu.memory_space<vmem>>, vector<1x8x32xbf16>,
    %c2_i32 = arith.constant 2 : i32
    %c7_i32_42 = arith.constant 7 : i32
    %127 = arith.subi %c7_i32_42, %c2_i32 : i32
    %128 = arith.index_cast %c2_i32 : i32 to index
    %c0_43 = arith.constant 0 : index
    %c0_44 = arith.constant 0 : index
    %129 = vector.load %arg10[%128, %c0_43, %c0_44] : memref<8x8x256xf32, #tpu.memory_space<vmem>>, vector<1x8x256xf32>
    %130 = vector.shape_cast %129 : vector<1x8x256xf32> to vector<8x256xf32>
    %131 = arith.index_cast %127 : i32 to index
    %c0_45 = arith.constant 0 : index
    %c0_46 = arith.constant 0 : index
    %132 = vector.load %arg10[%131, %c0_45, %c0_46] : memref<8x8x256xf32, #tpu.memory_space<vmem>>, vector<1x8x256xf32>
    %133 = vector.shape_cast %132 : vector<1x8x256xf32> to vector<8x256xf32>
    %134 = vector.extract_strided_slice %130 {offsets = [0, 0], sizes = [8, 128], strides = [1, 1]} : vector<8x256xf32> to vector<8x128xf32>
    %135 = vector.extract_strided_slice %133 {offsets = [0, 128], sizes = [8, 128], strides = [1, 1]} : vector<8x256xf32> to vector<8x128xf32>
    %136 = tpu.concatenate %134, %135 in 1 : vector<8x128xf32>, vector<8x128xf32> -> vector<8x256xf32>
    %c0_47 = arith.constant 0 : index
    %c0_48 = arith.constant 0 : index
    %137 = vector.load %arg2[%c0_47, %c0_48] : memref<64x256xbf16, #tpu.memory_space<vmem>>, vector<64x256xbf16>
    %cst_49 = arith.constant dense<0.000000e+00> : vector<8x256xf32>
    %138 = tpu.matmul %116, %137, %cst_49 {dimension_numbers = #tpu.dot_dimension_numbers<[1], [0], [0], [1], [0, 0, 1, 1], [], []>} : vector<8x64xbf16>, vector<64x256xbf16>, vector<8x256xf32> -> vector<8x256xf32>
    %139 = arith.addf %136, %138 : vector<8x256xf32>
    %140 = math.tanh %139 : vector<8x256xf32>
    %141 = arith.mulf %140, %24 : vector<8x256xf32>
    %142 = arith.addf %141, %27 : vector<8x256xf32>
    %143 = vector.extract_strided_slice %142 {offsets = [0, 0], sizes = [8, 32], strides = [1, 1]} : vector<8x256xf32> to vector<8x32xf32>
    %144 = vector.extract_strided_slice %142 {offsets = [0, 128], sizes = [8, 32], strides = [1, 1]} : vector<8x256xf32> to vector<8x32xf32>
    %145 = tpu.concatenate %143, %144 in 1 : vector<8x32xf32>, vector<8x32xf32> -> vector<8x64xf32>
    %146 = vector.extract_strided_slice %142 {offsets = [0, 32], sizes = [8, 32], strides = [1, 1]} : vector<8x256xf32> to vector<8x32xf32>
    %147 = vector.extract_strided_slice %142 {offsets = [0, 160], sizes = [8, 32], strides = [1, 1]} : vector<8x256xf32> to vector<8x32xf32>
    %148 = tpu.concatenate %146, %147 in 1 : vector<8x32xf32>, vector<8x32xf32> -> vector<8x64xf32>
    %149 = vector.extract_strided_slice %142 {offsets = [0, 64], sizes = [8, 32], strides = [1, 1]} : vector<8x256xf32> to vector<8x32xf32>
    %150 = vector.extract_strided_slice %142 {offsets = [0, 192], sizes = [8, 32], strides = [1, 1]} : vector<8x256xf32> to vector<8x32xf32>
    %151 = tpu.concatenate %149, %150 in 1 : vector<8x32xf32>, vector<8x32xf32> -> vector<8x64xf32>
    %152 = vector.extract_strided_slice %142 {offsets = [0, 96], sizes = [8, 32], strides = [1, 1]} : vector<8x256xf32> to vector<8x32xf32>
    %153 = vector.extract_strided_slice %142 {offsets = [0, 224], sizes = [8, 32], strides = [1, 1]} : vector<8x256xf32> to vector<8x32xf32>
    %154 = tpu.concatenate %152, %153 in 1 : vector<8x32xf32>, vector<8x32xf32> -> vector<8x64xf32>
    %155 = arith.mulf %148, %113 : vector<8x64xf32>
    %156 = arith.mulf %145, %151 : vector<8x64xf32>
    %157 = arith.addf %155, %156 : vector<8x64xf32>
    %158 = math.tanh %157 : vector<8x64xf32>
    %159 = arith.mulf %154, %158 : vector<8x64xf32>
    %160 = arith.truncf %159 : vector<8x64xf32> to vector<8x64xbf16>
    %161 = vector.extract_strided_slice %160 {offsets = [0, 0], sizes = [8, 32], strides = [1, 1]} : vector<8x64xbf16> to vector<8x32xbf16>
    %162 = arith.index_cast %c2_i32 : i32 to index
    %c0_50 = arith.constant 0 : index
    %c0_51 = arith.constant 0 : index
    %163 = vector.load %arg11[%162, %c0_50, %c0_51] : memref<8x8x32xbf16, #tpu.memory_space<vmem>>, vector<1x8x32xbf16>
    %164 = vector.shape_cast %163 : vector<1x8x32xbf16> to vector<8x32xbf16>
    %165 = vector.shape_cast %161 : vector<8x32xbf16> to vector<1x8x32xbf16>
    tpu.vector_store %arg11[%162, %c0_50, %c0_51], %165 {strides = array<i32>} : memref<8x8x32xbf16, #tpu.memory_space<vmem>>, vector<1x8x32xbf16>,
    %166 = vector.extract_strided_slice %160 {offsets = [0, 32], sizes = [8, 32], strides = [1, 1]} : vector<8x64xbf16> to vector<8x32xbf16>
    %167 = arith.index_cast %127 : i32 to index
    %c0_52 = arith.constant 0 : index
    %c0_53 = arith.constant 0 : index
    %168 = vector.load %arg12[%167, %c0_52, %c0_53] : memref<8x8x32xbf16, #tpu.memory_space<vmem>>, vector<1x8x32xbf16>
    %169 = vector.shape_cast %168 : vector<1x8x32xbf16> to vector<8x32xbf16>
    %170 = vector.shape_cast %166 : vector<8x32xbf16> to vector<1x8x32xbf16>
    tpu.vector_store %arg12[%167, %c0_52, %c0_53], %170 {strides = array<i32>} : memref<8x8x32xbf16, #tpu.memory_space<vmem>>, vector<1x8x32xbf16>,
    %c3_i32 = arith.constant 3 : i32
    %c7_i32_54 = arith.constant 7 : i32
    %171 = arith.subi %c7_i32_54, %c3_i32 : i32
    %172 = arith.index_cast %c3_i32 : i32 to index
    %c0_55 = arith.constant 0 : index
    %c0_56 = arith.constant 0 : index
    %173 = vector.load %arg10[%172, %c0_55, %c0_56] : memref<8x8x256xf32, #tpu.memory_space<vmem>>, vector<1x8x256xf32>
    %174 = vector.shape_cast %173 : vector<1x8x256xf32> to vector<8x256xf32>
    %175 = arith.index_cast %171 : i32 to index
    %c0_57 = arith.constant 0 : index
    %c0_58 = arith.constant 0 : index
    %176 = vector.load %arg10[%175, %c0_57, %c0_58] : memref<8x8x256xf32, #tpu.memory_space<vmem>>, vector<1x8x256xf32>
    %177 = vector.shape_cast %176 : vector<1x8x256xf32> to vector<8x256xf32>
    %178 = vector.extract_strided_slice %174 {offsets = [0, 0], sizes = [8, 128], strides = [1, 1]} : vector<8x256xf32> to vector<8x128xf32>
    %179 = vector.extract_strided_slice %177 {offsets = [0, 128], sizes = [8, 128], strides = [1, 1]} : vector<8x256xf32> to vector<8x128xf32>
    %180 = tpu.concatenate %178, %179 in 1 : vector<8x128xf32>, vector<8x128xf32> -> vector<8x256xf32>
    %c0_59 = arith.constant 0 : index
    %c0_60 = arith.constant 0 : index
    %181 = vector.load %arg2[%c0_59, %c0_60] : memref<64x256xbf16, #tpu.memory_space<vmem>>, vector<64x256xbf16>
    %cst_61 = arith.constant dense<0.000000e+00> : vector<8x256xf32>
    %182 = tpu.matmul %160, %181, %cst_61 {dimension_numbers = #tpu.dot_dimension_numbers<[1], [0], [0], [1], [0, 0, 1, 1], [], []>} : vector<8x64xbf16>, vector<64x256xbf16>, vector<8x256xf32> -> vector<8x256xf32>
    %183 = arith.addf %180, %182 : vector<8x256xf32>
    %184 = math.tanh %183 : vector<8x256xf32>
    %185 = arith.mulf %184, %24 : vector<8x256xf32>
    %186 = arith.addf %185, %27 : vector<8x256xf32>
    %187 = vector.extract_strided_slice %186 {offsets = [0, 0], sizes = [8, 32], strides = [1, 1]} : vector<8x256xf32> to vector<8x32xf32>
    %188 = vector.extract_strided_slice %186 {offsets = [0, 128], sizes = [8, 32], strides = [1, 1]} : vector<8x256xf32> to vector<8x32xf32>
    %189 = tpu.concatenate %187, %188 in 1 : vector<8x32xf32>, vector<8x32xf32> -> vector<8x64xf32>
    %190 = vector.extract_strided_slice %186 {offsets = [0, 32], sizes = [8, 32], strides = [1, 1]} : vector<8x256xf32> to vector<8x32xf32>
    %191 = vector.extract_strided_slice %186 {offsets = [0, 160], sizes = [8, 32], strides = [1, 1]} : vector<8x256xf32> to vector<8x32xf32>
    %192 = tpu.concatenate %190, %191 in 1 : vector<8x32xf32>, vector<8x32xf32> -> vector<8x64xf32>
    %193 = vector.extract_strided_slice %186 {offsets = [0, 64], sizes = [8, 32], strides = [1, 1]} : vector<8x256xf32> to vector<8x32xf32>
    %194 = vector.extract_strided_slice %186 {offsets = [0, 192], sizes = [8, 32], strides = [1, 1]} : vector<8x256xf32> to vector<8x32xf32>
    %195 = tpu.concatenate %193, %194 in 1 : vector<8x32xf32>, vector<8x32xf32> -> vector<8x64xf32>
    %196 = vector.extract_strided_slice %186 {offsets = [0, 96], sizes = [8, 32], strides = [1, 1]} : vector<8x256xf32> to vector<8x32xf32>
    %197 = vector.extract_strided_slice %186 {offsets = [0, 224], sizes = [8, 32], strides = [1, 1]} : vector<8x256xf32> to vector<8x32xf32>
    %198 = tpu.concatenate %196, %197 in 1 : vector<8x32xf32>, vector<8x32xf32> -> vector<8x64xf32>
    %199 = arith.mulf %192, %157 : vector<8x64xf32>
    %200 = arith.mulf %189, %195 : vector<8x64xf32>
    %201 = arith.addf %199, %200 : vector<8x64xf32>
    %202 = math.tanh %201 : vector<8x64xf32>
    %203 = arith.mulf %198, %202 : vector<8x64xf32>
    %204 = arith.truncf %203 : vector<8x64xf32> to vector<8x64xbf16>
    %205 = vector.extract_strided_slice %204 {offsets = [0, 0], sizes = [8, 32], strides = [1, 1]} : vector<8x64xbf16> to vector<8x32xbf16>
    %206 = arith.index_cast %c3_i32 : i32 to index
    %c0_62 = arith.constant 0 : index
    %c0_63 = arith.constant 0 : index
    %207 = vector.load %arg11[%206, %c0_62, %c0_63] : memref<8x8x32xbf16, #tpu.memory_space<vmem>>, vector<1x8x32xbf16>
    %208 = vector.shape_cast %207 : vector<1x8x32xbf16> to vector<8x32xbf16>
    %209 = vector.shape_cast %205 : vector<8x32xbf16> to vector<1x8x32xbf16>
    tpu.vector_store %arg11[%206, %c0_62, %c0_63], %209 {strides = array<i32>} : memref<8x8x32xbf16, #tpu.memory_space<vmem>>, vector<1x8x32xbf16>,
    %210 = vector.extract_strided_slice %204 {offsets = [0, 32], sizes = [8, 32], strides = [1, 1]} : vector<8x64xbf16> to vector<8x32xbf16>
    %211 = arith.index_cast %171 : i32 to index
    %c0_64 = arith.constant 0 : index
    %c0_65 = arith.constant 0 : index
    %212 = vector.load %arg12[%211, %c0_64, %c0_65] : memref<8x8x32xbf16, #tpu.memory_space<vmem>>, vector<1x8x32xbf16>
    %213 = vector.shape_cast %212 : vector<1x8x32xbf16> to vector<8x32xbf16>
    %214 = vector.shape_cast %210 : vector<8x32xbf16> to vector<1x8x32xbf16>
    tpu.vector_store %arg12[%211, %c0_64, %c0_65], %214 {strides = array<i32>} : memref<8x8x32xbf16, #tpu.memory_space<vmem>>, vector<1x8x32xbf16>,
    %c4_i32 = arith.constant 4 : i32
    %c7_i32_66 = arith.constant 7 : i32
    %215 = arith.subi %c7_i32_66, %c4_i32 : i32
    %216 = arith.index_cast %c4_i32 : i32 to index
    %c0_67 = arith.constant 0 : index
    %c0_68 = arith.constant 0 : index
    %217 = vector.load %arg10[%216, %c0_67, %c0_68] : memref<8x8x256xf32, #tpu.memory_space<vmem>>, vector<1x8x256xf32>
    %218 = vector.shape_cast %217 : vector<1x8x256xf32> to vector<8x256xf32>
    %219 = arith.index_cast %215 : i32 to index
    %c0_69 = arith.constant 0 : index
    %c0_70 = arith.constant 0 : index
    %220 = vector.load %arg10[%219, %c0_69, %c0_70] : memref<8x8x256xf32, #tpu.memory_space<vmem>>, vector<1x8x256xf32>
    %221 = vector.shape_cast %220 : vector<1x8x256xf32> to vector<8x256xf32>
    %222 = vector.extract_strided_slice %218 {offsets = [0, 0], sizes = [8, 128], strides = [1, 1]} : vector<8x256xf32> to vector<8x128xf32>
    %223 = vector.extract_strided_slice %221 {offsets = [0, 128], sizes = [8, 128], strides = [1, 1]} : vector<8x256xf32> to vector<8x128xf32>
    %224 = tpu.concatenate %222, %223 in 1 : vector<8x128xf32>, vector<8x128xf32> -> vector<8x256xf32>
    %c0_71 = arith.constant 0 : index
    %c0_72 = arith.constant 0 : index
    %225 = vector.load %arg2[%c0_71, %c0_72] : memref<64x256xbf16, #tpu.memory_space<vmem>>, vector<64x256xbf16>
    %cst_73 = arith.constant dense<0.000000e+00> : vector<8x256xf32>
    %226 = tpu.matmul %204, %225, %cst_73 {dimension_numbers = #tpu.dot_dimension_numbers<[1], [0], [0], [1], [0, 0, 1, 1], [], []>} : vector<8x64xbf16>, vector<64x256xbf16>, vector<8x256xf32> -> vector<8x256xf32>
    %227 = arith.addf %224, %226 : vector<8x256xf32>
    %228 = math.tanh %227 : vector<8x256xf32>
    %229 = arith.mulf %228, %24 : vector<8x256xf32>
    %230 = arith.addf %229, %27 : vector<8x256xf32>
    %231 = vector.extract_strided_slice %230 {offsets = [0, 0], sizes = [8, 32], strides = [1, 1]} : vector<8x256xf32> to vector<8x32xf32>
    %232 = vector.extract_strided_slice %230 {offsets = [0, 128], sizes = [8, 32], strides = [1, 1]} : vector<8x256xf32> to vector<8x32xf32>
    %233 = tpu.concatenate %231, %232 in 1 : vector<8x32xf32>, vector<8x32xf32> -> vector<8x64xf32>
    %234 = vector.extract_strided_slice %230 {offsets = [0, 32], sizes = [8, 32], strides = [1, 1]} : vector<8x256xf32> to vector<8x32xf32>
    %235 = vector.extract_strided_slice %230 {offsets = [0, 160], sizes = [8, 32], strides = [1, 1]} : vector<8x256xf32> to vector<8x32xf32>
    %236 = tpu.concatenate %234, %235 in 1 : vector<8x32xf32>, vector<8x32xf32> -> vector<8x64xf32>
    %237 = vector.extract_strided_slice %230 {offsets = [0, 64], sizes = [8, 32], strides = [1, 1]} : vector<8x256xf32> to vector<8x32xf32>
    %238 = vector.extract_strided_slice %230 {offsets = [0, 192], sizes = [8, 32], strides = [1, 1]} : vector<8x256xf32> to vector<8x32xf32>
    %239 = tpu.concatenate %237, %238 in 1 : vector<8x32xf32>, vector<8x32xf32> -> vector<8x64xf32>
    %240 = vector.extract_strided_slice %230 {offsets = [0, 96], sizes = [8, 32], strides = [1, 1]} : vector<8x256xf32> to vector<8x32xf32>
    %241 = vector.extract_strided_slice %230 {offsets = [0, 224], sizes = [8, 32], strides = [1, 1]} : vector<8x256xf32> to vector<8x32xf32>
    %242 = tpu.concatenate %240, %241 in 1 : vector<8x32xf32>, vector<8x32xf32> -> vector<8x64xf32>
    %243 = arith.mulf %236, %201 : vector<8x64xf32>
    %244 = arith.mulf %233, %239 : vector<8x64xf32>
    %245 = arith.addf %243, %244 : vector<8x64xf32>
    %246 = math.tanh %245 : vector<8x64xf32>
    %247 = arith.mulf %242, %246 : vector<8x64xf32>
    %248 = arith.truncf %247 : vector<8x64xf32> to vector<8x64xbf16>
    %249 = vector.extract_strided_slice %248 {offsets = [0, 0], sizes = [8, 32], strides = [1, 1]} : vector<8x64xbf16> to vector<8x32xbf16>
    %250 = arith.index_cast %c4_i32 : i32 to index
    %c0_74 = arith.constant 0 : index
    %c0_75 = arith.constant 0 : index
    %251 = vector.load %arg11[%250, %c0_74, %c0_75] : memref<8x8x32xbf16, #tpu.memory_space<vmem>>, vector<1x8x32xbf16>
    %252 = vector.shape_cast %251 : vector<1x8x32xbf16> to vector<8x32xbf16>
    %253 = vector.shape_cast %249 : vector<8x32xbf16> to vector<1x8x32xbf16>
    tpu.vector_store %arg11[%250, %c0_74, %c0_75], %253 {strides = array<i32>} : memref<8x8x32xbf16, #tpu.memory_space<vmem>>, vector<1x8x32xbf16>,
    %254 = vector.extract_strided_slice %248 {offsets = [0, 32], sizes = [8, 32], strides = [1, 1]} : vector<8x64xbf16> to vector<8x32xbf16>
    %255 = arith.index_cast %215 : i32 to index
    %c0_76 = arith.constant 0 : index
    %c0_77 = arith.constant 0 : index
    %256 = vector.load %arg12[%255, %c0_76, %c0_77] : memref<8x8x32xbf16, #tpu.memory_space<vmem>>, vector<1x8x32xbf16>
    %257 = vector.shape_cast %256 : vector<1x8x32xbf16> to vector<8x32xbf16>
    %258 = vector.shape_cast %254 : vector<8x32xbf16> to vector<1x8x32xbf16>
    tpu.vector_store %arg12[%255, %c0_76, %c0_77], %258 {strides = array<i32>} : memref<8x8x32xbf16, #tpu.memory_space<vmem>>, vector<1x8x32xbf16>,
    %c5_i32 = arith.constant 5 : i32
    %c7_i32_78 = arith.constant 7 : i32
    %259 = arith.subi %c7_i32_78, %c5_i32 : i32
    %260 = arith.index_cast %c5_i32 : i32 to index
    %c0_79 = arith.constant 0 : index
    %c0_80 = arith.constant 0 : index
    %261 = vector.load %arg10[%260, %c0_79, %c0_80] : memref<8x8x256xf32, #tpu.memory_space<vmem>>, vector<1x8x256xf32>
    %262 = vector.shape_cast %261 : vector<1x8x256xf32> to vector<8x256xf32>
    %263 = arith.index_cast %259 : i32 to index
    %c0_81 = arith.constant 0 : index
    %c0_82 = arith.constant 0 : index
    %264 = vector.load %arg10[%263, %c0_81, %c0_82] : memref<8x8x256xf32, #tpu.memory_space<vmem>>, vector<1x8x256xf32>
    %265 = vector.shape_cast %264 : vector<1x8x256xf32> to vector<8x256xf32>
    %266 = vector.extract_strided_slice %262 {offsets = [0, 0], sizes = [8, 128], strides = [1, 1]} : vector<8x256xf32> to vector<8x128xf32>
    %267 = vector.extract_strided_slice %265 {offsets = [0, 128], sizes = [8, 128], strides = [1, 1]} : vector<8x256xf32> to vector<8x128xf32>
    %268 = tpu.concatenate %266, %267 in 1 : vector<8x128xf32>, vector<8x128xf32> -> vector<8x256xf32>
    %c0_83 = arith.constant 0 : index
    %c0_84 = arith.constant 0 : index
    %269 = vector.load %arg2[%c0_83, %c0_84] : memref<64x256xbf16, #tpu.memory_space<vmem>>, vector<64x256xbf16>
    %cst_85 = arith.constant dense<0.000000e+00> : vector<8x256xf32>
    %270 = tpu.matmul %248, %269, %cst_85 {dimension_numbers = #tpu.dot_dimension_numbers<[1], [0], [0], [1], [0, 0, 1, 1], [], []>} : vector<8x64xbf16>, vector<64x256xbf16>, vector<8x256xf32> -> vector<8x256xf32>
    %271 = arith.addf %268, %270 : vector<8x256xf32>
    %272 = math.tanh %271 : vector<8x256xf32>
    %273 = arith.mulf %272, %24 : vector<8x256xf32>
    %274 = arith.addf %273, %27 : vector<8x256xf32>
    %275 = vector.extract_strided_slice %274 {offsets = [0, 0], sizes = [8, 32], strides = [1, 1]} : vector<8x256xf32> to vector<8x32xf32>
    %276 = vector.extract_strided_slice %274 {offsets = [0, 128], sizes = [8, 32], strides = [1, 1]} : vector<8x256xf32> to vector<8x32xf32>
    %277 = tpu.concatenate %275, %276 in 1 : vector<8x32xf32>, vector<8x32xf32> -> vector<8x64xf32>
    %278 = vector.extract_strided_slice %274 {offsets = [0, 32], sizes = [8, 32], strides = [1, 1]} : vector<8x256xf32> to vector<8x32xf32>
    %279 = vector.extract_strided_slice %274 {offsets = [0, 160], sizes = [8, 32], strides = [1, 1]} : vector<8x256xf32> to vector<8x32xf32>
    %280 = tpu.concatenate %278, %279 in 1 : vector<8x32xf32>, vector<8x32xf32> -> vector<8x64xf32>
    %281 = vector.extract_strided_slice %274 {offsets = [0, 64], sizes = [8, 32], strides = [1, 1]} : vector<8x256xf32> to vector<8x32xf32>
    %282 = vector.extract_strided_slice %274 {offsets = [0, 192], sizes = [8, 32], strides = [1, 1]} : vector<8x256xf32> to vector<8x32xf32>
    %283 = tpu.concatenate %281, %282 in 1 : vector<8x32xf32>, vector<8x32xf32> -> vector<8x64xf32>
    %284 = vector.extract_strided_slice %274 {offsets = [0, 96], sizes = [8, 32], strides = [1, 1]} : vector<8x256xf32> to vector<8x32xf32>
    %285 = vector.extract_strided_slice %274 {offsets = [0, 224], sizes = [8, 32], strides = [1, 1]} : vector<8x256xf32> to vector<8x32xf32>
    %286 = tpu.concatenate %284, %285 in 1 : vector<8x32xf32>, vector<8x32xf32> -> vector<8x64xf32>
    %287 = arith.mulf %280, %245 : vector<8x64xf32>
    %288 = arith.mulf %277, %283 : vector<8x64xf32>
    %289 = arith.addf %287, %288 : vector<8x64xf32>
    %290 = math.tanh %289 : vector<8x64xf32>
    %291 = arith.mulf %286, %290 : vector<8x64xf32>
    %292 = arith.truncf %291 : vector<8x64xf32> to vector<8x64xbf16>
    %293 = vector.extract_strided_slice %292 {offsets = [0, 0], sizes = [8, 32], strides = [1, 1]} : vector<8x64xbf16> to vector<8x32xbf16>
    %294 = arith.index_cast %c5_i32 : i32 to index
    %c0_86 = arith.constant 0 : index
    %c0_87 = arith.constant 0 : index
    %295 = vector.load %arg11[%294, %c0_86, %c0_87] : memref<8x8x32xbf16, #tpu.memory_space<vmem>>, vector<1x8x32xbf16>
    %296 = vector.shape_cast %295 : vector<1x8x32xbf16> to vector<8x32xbf16>
    %297 = vector.shape_cast %293 : vector<8x32xbf16> to vector<1x8x32xbf16>
    tpu.vector_store %arg11[%294, %c0_86, %c0_87], %297 {strides = array<i32>} : memref<8x8x32xbf16, #tpu.memory_space<vmem>>, vector<1x8x32xbf16>,
    %298 = vector.extract_strided_slice %292 {offsets = [0, 32], sizes = [8, 32], strides = [1, 1]} : vector<8x64xbf16> to vector<8x32xbf16>
    %299 = arith.index_cast %259 : i32 to index
    %c0_88 = arith.constant 0 : index
    %c0_89 = arith.constant 0 : index
    %300 = vector.load %arg12[%299, %c0_88, %c0_89] : memref<8x8x32xbf16, #tpu.memory_space<vmem>>, vector<1x8x32xbf16>
    %301 = vector.shape_cast %300 : vector<1x8x32xbf16> to vector<8x32xbf16>
    %302 = vector.shape_cast %298 : vector<8x32xbf16> to vector<1x8x32xbf16>
    tpu.vector_store %arg12[%299, %c0_88, %c0_89], %302 {strides = array<i32>} : memref<8x8x32xbf16, #tpu.memory_space<vmem>>, vector<1x8x32xbf16>,
    %c6_i32 = arith.constant 6 : i32
    %c7_i32_90 = arith.constant 7 : i32
    %303 = arith.subi %c7_i32_90, %c6_i32 : i32
    %304 = arith.index_cast %c6_i32 : i32 to index
    %c0_91 = arith.constant 0 : index
    %c0_92 = arith.constant 0 : index
    %305 = vector.load %arg10[%304, %c0_91, %c0_92] : memref<8x8x256xf32, #tpu.memory_space<vmem>>, vector<1x8x256xf32>
    %306 = vector.shape_cast %305 : vector<1x8x256xf32> to vector<8x256xf32>
    %307 = arith.index_cast %303 : i32 to index
    %c0_93 = arith.constant 0 : index
    %c0_94 = arith.constant 0 : index
    %308 = vector.load %arg10[%307, %c0_93, %c0_94] : memref<8x8x256xf32, #tpu.memory_space<vmem>>, vector<1x8x256xf32>
    %309 = vector.shape_cast %308 : vector<1x8x256xf32> to vector<8x256xf32>
    %310 = vector.extract_strided_slice %306 {offsets = [0, 0], sizes = [8, 128], strides = [1, 1]} : vector<8x256xf32> to vector<8x128xf32>
    %311 = vector.extract_strided_slice %309 {offsets = [0, 128], sizes = [8, 128], strides = [1, 1]} : vector<8x256xf32> to vector<8x128xf32>
    %312 = tpu.concatenate %310, %311 in 1 : vector<8x128xf32>, vector<8x128xf32> -> vector<8x256xf32>
    %c0_95 = arith.constant 0 : index
    %c0_96 = arith.constant 0 : index
    %313 = vector.load %arg2[%c0_95, %c0_96] : memref<64x256xbf16, #tpu.memory_space<vmem>>, vector<64x256xbf16>
    %cst_97 = arith.constant dense<0.000000e+00> : vector<8x256xf32>
    %314 = tpu.matmul %292, %313, %cst_97 {dimension_numbers = #tpu.dot_dimension_numbers<[1], [0], [0], [1], [0, 0, 1, 1], [], []>} : vector<8x64xbf16>, vector<64x256xbf16>, vector<8x256xf32> -> vector<8x256xf32>
    %315 = arith.addf %312, %314 : vector<8x256xf32>
    %316 = math.tanh %315 : vector<8x256xf32>
    %317 = arith.mulf %316, %24 : vector<8x256xf32>
    %318 = arith.addf %317, %27 : vector<8x256xf32>
    %319 = vector.extract_strided_slice %318 {offsets = [0, 0], sizes = [8, 32], strides = [1, 1]} : vector<8x256xf32> to vector<8x32xf32>
    %320 = vector.extract_strided_slice %318 {offsets = [0, 128], sizes = [8, 32], strides = [1, 1]} : vector<8x256xf32> to vector<8x32xf32>
    %321 = tpu.concatenate %319, %320 in 1 : vector<8x32xf32>, vector<8x32xf32> -> vector<8x64xf32>
    %322 = vector.extract_strided_slice %318 {offsets = [0, 32], sizes = [8, 32], strides = [1, 1]} : vector<8x256xf32> to vector<8x32xf32>
    %323 = vector.extract_strided_slice %318 {offsets = [0, 160], sizes = [8, 32], strides = [1, 1]} : vector<8x256xf32> to vector<8x32xf32>
    %324 = tpu.concatenate %322, %323 in 1 : vector<8x32xf32>, vector<8x32xf32> -> vector<8x64xf32>
    %325 = vector.extract_strided_slice %318 {offsets = [0, 64], sizes = [8, 32], strides = [1, 1]} : vector<8x256xf32> to vector<8x32xf32>
    %326 = vector.extract_strided_slice %318 {offsets = [0, 192], sizes = [8, 32], strides = [1, 1]} : vector<8x256xf32> to vector<8x32xf32>
    %327 = tpu.concatenate %325, %326 in 1 : vector<8x32xf32>, vector<8x32xf32> -> vector<8x64xf32>
    %328 = vector.extract_strided_slice %318 {offsets = [0, 96], sizes = [8, 32], strides = [1, 1]} : vector<8x256xf32> to vector<8x32xf32>
    %329 = vector.extract_strided_slice %318 {offsets = [0, 224], sizes = [8, 32], strides = [1, 1]} : vector<8x256xf32> to vector<8x32xf32>
    %330 = tpu.concatenate %328, %329 in 1 : vector<8x32xf32>, vector<8x32xf32> -> vector<8x64xf32>
    %331 = arith.mulf %324, %289 : vector<8x64xf32>
    %332 = arith.mulf %321, %327 : vector<8x64xf32>
    %333 = arith.addf %331, %332 : vector<8x64xf32>
    %334 = math.tanh %333 : vector<8x64xf32>
    %335 = arith.mulf %330, %334 : vector<8x64xf32>
    %336 = arith.truncf %335 : vector<8x64xf32> to vector<8x64xbf16>
    %337 = vector.extract_strided_slice %336 {offsets = [0, 0], sizes = [8, 32], strides = [1, 1]} : vector<8x64xbf16> to vector<8x32xbf16>
    %338 = arith.index_cast %c6_i32 : i32 to index
    %c0_98 = arith.constant 0 : index
    %c0_99 = arith.constant 0 : index
    %339 = vector.load %arg11[%338, %c0_98, %c0_99] : memref<8x8x32xbf16, #tpu.memory_space<vmem>>, vector<1x8x32xbf16>
    %340 = vector.shape_cast %339 : vector<1x8x32xbf16> to vector<8x32xbf16>
    %341 = vector.shape_cast %337 : vector<8x32xbf16> to vector<1x8x32xbf16>
    tpu.vector_store %arg11[%338, %c0_98, %c0_99], %341 {strides = array<i32>} : memref<8x8x32xbf16, #tpu.memory_space<vmem>>, vector<1x8x32xbf16>,
    %342 = vector.extract_strided_slice %336 {offsets = [0, 32], sizes = [8, 32], strides = [1, 1]} : vector<8x64xbf16> to vector<8x32xbf16>
    %343 = arith.index_cast %303 : i32 to index
    %c0_100 = arith.constant 0 : index
    %c0_101 = arith.constant 0 : index
    %344 = vector.load %arg12[%343, %c0_100, %c0_101] : memref<8x8x32xbf16, #tpu.memory_space<vmem>>, vector<1x8x32xbf16>
    %345 = vector.shape_cast %344 : vector<1x8x32xbf16> to vector<8x32xbf16>
    %346 = vector.shape_cast %342 : vector<8x32xbf16> to vector<1x8x32xbf16>
    tpu.vector_store %arg12[%343, %c0_100, %c0_101], %346 {strides = array<i32>} : memref<8x8x32xbf16, #tpu.memory_space<vmem>>, vector<1x8x32xbf16>,
    %c7_i32_102 = arith.constant 7 : i32
    %c7_i32_103 = arith.constant 7 : i32
    %347 = arith.subi %c7_i32_103, %c7_i32_102 : i32
    %348 = arith.index_cast %c7_i32_102 : i32 to index
    %c0_104 = arith.constant 0 : index
    %c0_105 = arith.constant 0 : index
    %349 = vector.load %arg10[%348, %c0_104, %c0_105] : memref<8x8x256xf32, #tpu.memory_space<vmem>>, vector<1x8x256xf32>
    %350 = vector.shape_cast %349 : vector<1x8x256xf32> to vector<8x256xf32>
    %351 = arith.index_cast %347 : i32 to index
    %c0_106 = arith.constant 0 : index
    %c0_107 = arith.constant 0 : index
    %352 = vector.load %arg10[%351, %c0_106, %c0_107] : memref<8x8x256xf32, #tpu.memory_space<vmem>>, vector<1x8x256xf32>
    %353 = vector.shape_cast %352 : vector<1x8x256xf32> to vector<8x256xf32>
    %354 = vector.extract_strided_slice %350 {offsets = [0, 0], sizes = [8, 128], strides = [1, 1]} : vector<8x256xf32> to vector<8x128xf32>
    %355 = vector.extract_strided_slice %353 {offsets = [0, 128], sizes = [8, 128], strides = [1, 1]} : vector<8x256xf32> to vector<8x128xf32>
    %356 = tpu.concatenate %354, %355 in 1 : vector<8x128xf32>, vector<8x128xf32> -> vector<8x256xf32>
    %c0_108 = arith.constant 0 : index
    %c0_109 = arith.constant 0 : index
    %357 = vector.load %arg2[%c0_108, %c0_109] : memref<64x256xbf16, #tpu.memory_space<vmem>>, vector<64x256xbf16>
    %cst_110 = arith.constant dense<0.000000e+00> : vector<8x256xf32>
    %358 = tpu.matmul %336, %357, %cst_110 {dimension_numbers = #tpu.dot_dimension_numbers<[1], [0], [0], [1], [0, 0, 1, 1], [], []>} : vector<8x64xbf16>, vector<64x256xbf16>, vector<8x256xf32> -> vector<8x256xf32>
    %359 = arith.addf %356, %358 : vector<8x256xf32>
    %360 = math.tanh %359 : vector<8x256xf32>
    %361 = arith.mulf %360, %24 : vector<8x256xf32>
    %362 = arith.addf %361, %27 : vector<8x256xf32>
    %363 = vector.extract_strided_slice %362 {offsets = [0, 0], sizes = [8, 32], strides = [1, 1]} : vector<8x256xf32> to vector<8x32xf32>
    %364 = vector.extract_strided_slice %362 {offsets = [0, 128], sizes = [8, 32], strides = [1, 1]} : vector<8x256xf32> to vector<8x32xf32>
    %365 = tpu.concatenate %363, %364 in 1 : vector<8x32xf32>, vector<8x32xf32> -> vector<8x64xf32>
    %366 = vector.extract_strided_slice %362 {offsets = [0, 32], sizes = [8, 32], strides = [1, 1]} : vector<8x256xf32> to vector<8x32xf32>
    %367 = vector.extract_strided_slice %362 {offsets = [0, 160], sizes = [8, 32], strides = [1, 1]} : vector<8x256xf32> to vector<8x32xf32>
    %368 = tpu.concatenate %366, %367 in 1 : vector<8x32xf32>, vector<8x32xf32> -> vector<8x64xf32>
    %369 = vector.extract_strided_slice %362 {offsets = [0, 64], sizes = [8, 32], strides = [1, 1]} : vector<8x256xf32> to vector<8x32xf32>
    %370 = vector.extract_strided_slice %362 {offsets = [0, 192], sizes = [8, 32], strides = [1, 1]} : vector<8x256xf32> to vector<8x32xf32>
    %371 = tpu.concatenate %369, %370 in 1 : vector<8x32xf32>, vector<8x32xf32> -> vector<8x64xf32>
    %372 = vector.extract_strided_slice %362 {offsets = [0, 96], sizes = [8, 32], strides = [1, 1]} : vector<8x256xf32> to vector<8x32xf32>
    %373 = vector.extract_strided_slice %362 {offsets = [0, 224], sizes = [8, 32], strides = [1, 1]} : vector<8x256xf32> to vector<8x32xf32>
    %374 = tpu.concatenate %372, %373 in 1 : vector<8x32xf32>, vector<8x32xf32> -> vector<8x64xf32>
    %375 = arith.mulf %368, %333 : vector<8x64xf32>
    %376 = arith.mulf %365, %371 : vector<8x64xf32>
    %377 = arith.addf %375, %376 : vector<8x64xf32>
    %378 = math.tanh %377 : vector<8x64xf32>
    %379 = arith.mulf %374, %378 : vector<8x64xf32>
    %380 = arith.truncf %379 : vector<8x64xf32> to vector<8x64xbf16>
    %381 = vector.extract_strided_slice %380 {offsets = [0, 0], sizes = [8, 32], strides = [1, 1]} : vector<8x64xbf16> to vector<8x32xbf16>
    %382 = arith.index_cast %c7_i32_102 : i32 to index
    %c0_111 = arith.constant 0 : index
    %c0_112 = arith.constant 0 : index
    %383 = vector.load %arg11[%382, %c0_111, %c0_112] : memref<8x8x32xbf16, #tpu.memory_space<vmem>>, vector<1x8x32xbf16>
    %384 = vector.shape_cast %383 : vector<1x8x32xbf16> to vector<8x32xbf16>
    %385 = vector.shape_cast %381 : vector<8x32xbf16> to vector<1x8x32xbf16>
    tpu.vector_store %arg11[%382, %c0_111, %c0_112], %385 {strides = array<i32>} : memref<8x8x32xbf16, #tpu.memory_space<vmem>>, vector<1x8x32xbf16>,
    %386 = vector.extract_strided_slice %380 {offsets = [0, 32], sizes = [8, 32], strides = [1, 1]} : vector<8x64xbf16> to vector<8x32xbf16>
    %387 = arith.index_cast %347 : i32 to index
    %c0_113 = arith.constant 0 : index
    %c0_114 = arith.constant 0 : index
    %388 = vector.load %arg12[%387, %c0_113, %c0_114] : memref<8x8x32xbf16, #tpu.memory_space<vmem>>, vector<1x8x32xbf16>
    %389 = vector.shape_cast %388 : vector<1x8x32xbf16> to vector<8x32xbf16>
    %390 = vector.shape_cast %386 : vector<8x32xbf16> to vector<1x8x32xbf16>
    tpu.vector_store %arg12[%387, %c0_113, %c0_114], %390 {strides = array<i32>} : memref<8x8x32xbf16, #tpu.memory_space<vmem>>, vector<1x8x32xbf16>,
    %c8_i32 = arith.constant 8 : i32
    %c0_115 = arith.constant 0 : index
    %c0_116 = arith.constant 0 : index
    %c0_117 = arith.constant 0 : index
    %391 = vector.load %arg11[%c0_115, %c0_116, %c0_117] : memref<8x8x32xbf16, #tpu.memory_space<vmem>>, vector<8x8x32xbf16>
    %392 = vector.shape_cast %391 : vector<8x8x32xbf16> to vector<64x32xbf16>
    %c0_118 = arith.constant 0 : index
    %c0_119 = arith.constant 0 : index
    %c0_120 = arith.constant 0 : index
    %393 = vector.load %arg12[%c0_118, %c0_119, %c0_120] : memref<8x8x32xbf16, #tpu.memory_space<vmem>>, vector<8x8x32xbf16>
    %394 = vector.shape_cast %393 : vector<8x8x32xbf16> to vector<64x32xbf16>
    %395 = tpu.concatenate %392, %394 in 1 : vector<64x32xbf16>, vector<64x32xbf16> -> vector<64x64xbf16>
    %c0_121 = arith.constant 0 : index
    %c0_122 = arith.constant 0 : index
    %396 = vector.load %arg4[%c0_121, %c0_122] : memref<64x256xbf16, #tpu.memory_space<vmem>>, vector<64x256xbf16>
    %cst_123 = arith.constant dense<0.000000e+00> : vector<64x256xf32>
    %397 = tpu.matmul %395, %396, %cst_123 {dimension_numbers = #tpu.dot_dimension_numbers<[1], [0], [0], [1], [0, 0, 1, 1], [], []>} : vector<64x64xbf16>, vector<64x256xbf16>, vector<64x256xf32> -> vector<64x256xf32>
    %c0_124 = arith.constant 0 : index
    %c0_125 = arith.constant 0 : index
    %398 = vector.load %arg6[%c0_124, %c0_125] : memref<1x256xf32, #tpu.memory_space<vmem>>, vector<1x256xf32>
    %399 = vector.broadcast %398 : vector<1x256xf32> to vector<64x256xf32>
    %400 = arith.addf %397, %399 : vector<64x256xf32>
    %401 = vector.shape_cast %400 : vector<64x256xf32> to vector<8x8x256xf32>
    %c0_126 = arith.constant 0 : index
    %c0_127 = arith.constant 0 : index
    %c0_128 = arith.constant 0 : index
    %402 = vector.load %arg10[%c0_126, %c0_127, %c0_128] : memref<8x8x256xf32, #tpu.memory_space<vmem>>, vector<8x8x256xf32>
    tpu.vector_store %arg10[%c0_126, %c0_127, %c0_128], %401 {strides = array<i32>} : memref<8x8x256xf32, #tpu.memory_space<vmem>>, vector<8x8x256xf32>,
    %403 = arith.truncf %28 : vector<8x64xf32> to vector<8x64xbf16>
    %cst_129 = arith.constant 0.000000e+00 : f32
    %404 = vector.broadcast %cst_129 : f32 to vector<8x32xf32>
    %c0_i32_130 = arith.constant 0 : i32
    %c7_i32_131 = arith.constant 7 : i32
    %405 = arith.subi %c7_i32_131, %c0_i32_130 : i32
    %406 = arith.index_cast %c0_i32_130 : i32 to index
    %c0_132 = arith.constant 0 : index
    %c0_133 = arith.constant 0 : index
    %407 = vector.load %arg10[%406, %c0_132, %c0_133] : memref<8x8x256xf32, #tpu.memory_space<vmem>>, vector<1x8x256xf32>
    %408 = vector.shape_cast %407 : vector<1x8x256xf32> to vector<8x256xf32>
    %409 = arith.index_cast %405 : i32 to index
    %c0_134 = arith.constant 0 : index
    %c0_135 = arith.constant 0 : index
    %410 = vector.load %arg10[%409, %c0_134, %c0_135] : memref<8x8x256xf32, #tpu.memory_space<vmem>>, vector<1x8x256xf32>
    %411 = vector.shape_cast %410 : vector<1x8x256xf32> to vector<8x256xf32>
    %412 = vector.extract_strided_slice %408 {offsets = [0, 0], sizes = [8, 128], strides = [1, 1]} : vector<8x256xf32> to vector<8x128xf32>
    %413 = vector.extract_strided_slice %411 {offsets = [0, 128], sizes = [8, 128], strides = [1, 1]} : vector<8x256xf32> to vector<8x128xf32>
    %414 = tpu.concatenate %412, %413 in 1 : vector<8x128xf32>, vector<8x128xf32> -> vector<8x256xf32>
    %c0_136 = arith.constant 0 : index
    %c0_137 = arith.constant 0 : index
    %415 = vector.load %arg5[%c0_136, %c0_137] : memref<64x256xbf16, #tpu.memory_space<vmem>>, vector<64x256xbf16>
    %cst_138 = arith.constant dense<0.000000e+00> : vector<8x256xf32>
    %416 = tpu.matmul %403, %415, %cst_138 {dimension_numbers = #tpu.dot_dimension_numbers<[1], [0], [0], [1], [0, 0, 1, 1], [], []>} : vector<8x64xbf16>, vector<64x256xbf16>, vector<8x256xf32> -> vector<8x256xf32>
    %417 = arith.addf %414, %416 : vector<8x256xf32>
    %418 = math.tanh %417 : vector<8x256xf32>
    %419 = arith.mulf %418, %24 : vector<8x256xf32>
    %420 = arith.addf %419, %27 : vector<8x256xf32>
    %421 = vector.extract_strided_slice %420 {offsets = [0, 0], sizes = [8, 32], strides = [1, 1]} : vector<8x256xf32> to vector<8x32xf32>
    %422 = vector.extract_strided_slice %420 {offsets = [0, 128], sizes = [8, 32], strides = [1, 1]} : vector<8x256xf32> to vector<8x32xf32>
    %423 = tpu.concatenate %421, %422 in 1 : vector<8x32xf32>, vector<8x32xf32> -> vector<8x64xf32>
    %424 = vector.extract_strided_slice %420 {offsets = [0, 32], sizes = [8, 32], strides = [1, 1]} : vector<8x256xf32> to vector<8x32xf32>
    %425 = vector.extract_strided_slice %420 {offsets = [0, 160], sizes = [8, 32], strides = [1, 1]} : vector<8x256xf32> to vector<8x32xf32>
    %426 = tpu.concatenate %424, %425 in 1 : vector<8x32xf32>, vector<8x32xf32> -> vector<8x64xf32>
    %427 = vector.extract_strided_slice %420 {offsets = [0, 64], sizes = [8, 32], strides = [1, 1]} : vector<8x256xf32> to vector<8x32xf32>
    %428 = vector.extract_strided_slice %420 {offsets = [0, 192], sizes = [8, 32], strides = [1, 1]} : vector<8x256xf32> to vector<8x32xf32>
    %429 = tpu.concatenate %427, %428 in 1 : vector<8x32xf32>, vector<8x32xf32> -> vector<8x64xf32>
    %430 = vector.extract_strided_slice %420 {offsets = [0, 96], sizes = [8, 32], strides = [1, 1]} : vector<8x256xf32> to vector<8x32xf32>
    %431 = vector.extract_strided_slice %420 {offsets = [0, 224], sizes = [8, 32], strides = [1, 1]} : vector<8x256xf32> to vector<8x32xf32>
    %432 = tpu.concatenate %430, %431 in 1 : vector<8x32xf32>, vector<8x32xf32> -> vector<8x64xf32>
    %433 = arith.mulf %426, %28 : vector<8x64xf32>
    %434 = arith.mulf %423, %429 : vector<8x64xf32>
    %435 = arith.addf %433, %434 : vector<8x64xf32>
    %436 = math.tanh %435 : vector<8x64xf32>
    %437 = arith.mulf %432, %436 : vector<8x64xf32>
    %438 = vector.extract_strided_slice %437 {offsets = [0, 0], sizes = [8, 32], strides = [1, 1]} : vector<8x64xf32> to vector<8x32xf32>
    %439 = arith.addf %404, %438 : vector<8x32xf32>
    %440 = vector.extract_strided_slice %437 {offsets = [0, 32], sizes = [8, 32], strides = [1, 1]} : vector<8x64xf32> to vector<8x32xf32>
    %441 = arith.addf %439, %440 : vector<8x32xf32>
    %442 = arith.truncf %437 : vector<8x64xf32> to vector<8x64xbf16>
    %c1_i32_139 = arith.constant 1 : i32
    %c7_i32_140 = arith.constant 7 : i32
    %443 = arith.subi %c7_i32_140, %c1_i32_139 : i32
    %444 = arith.index_cast %c1_i32_139 : i32 to index
    %c0_141 = arith.constant 0 : index
    %c0_142 = arith.constant 0 : index
    %445 = vector.load %arg10[%444, %c0_141, %c0_142] : memref<8x8x256xf32, #tpu.memory_space<vmem>>, vector<1x8x256xf32>
    %446 = vector.shape_cast %445 : vector<1x8x256xf32> to vector<8x256xf32>
    %447 = arith.index_cast %443 : i32 to index
    %c0_143 = arith.constant 0 : index
    %c0_144 = arith.constant 0 : index
    %448 = vector.load %arg10[%447, %c0_143, %c0_144] : memref<8x8x256xf32, #tpu.memory_space<vmem>>, vector<1x8x256xf32>
    %449 = vector.shape_cast %448 : vector<1x8x256xf32> to vector<8x256xf32>
    %450 = vector.extract_strided_slice %446 {offsets = [0, 0], sizes = [8, 128], strides = [1, 1]} : vector<8x256xf32> to vector<8x128xf32>
    %451 = vector.extract_strided_slice %449 {offsets = [0, 128], sizes = [8, 128], strides = [1, 1]} : vector<8x256xf32> to vector<8x128xf32>
    %452 = tpu.concatenate %450, %451 in 1 : vector<8x128xf32>, vector<8x128xf32> -> vector<8x256xf32>
    %c0_145 = arith.constant 0 : index
    %c0_146 = arith.constant 0 : index
    %453 = vector.load %arg5[%c0_145, %c0_146] : memref<64x256xbf16, #tpu.memory_space<vmem>>, vector<64x256xbf16>
    %cst_147 = arith.constant dense<0.000000e+00> : vector<8x256xf32>
    %454 = tpu.matmul %442, %453, %cst_147 {dimension_numbers = #tpu.dot_dimension_numbers<[1], [0], [0], [1], [0, 0, 1, 1], [], []>} : vector<8x64xbf16>, vector<64x256xbf16>, vector<8x256xf32> -> vector<8x256xf32>
    %455 = arith.addf %452, %454 : vector<8x256xf32>
    %456 = math.tanh %455 : vector<8x256xf32>
    %457 = arith.mulf %456, %24 : vector<8x256xf32>
    %458 = arith.addf %457, %27 : vector<8x256xf32>
    %459 = vector.extract_strided_slice %458 {offsets = [0, 0], sizes = [8, 32], strides = [1, 1]} : vector<8x256xf32> to vector<8x32xf32>
    %460 = vector.extract_strided_slice %458 {offsets = [0, 128], sizes = [8, 32], strides = [1, 1]} : vector<8x256xf32> to vector<8x32xf32>
    %461 = tpu.concatenate %459, %460 in 1 : vector<8x32xf32>, vector<8x32xf32> -> vector<8x64xf32>
    %462 = vector.extract_strided_slice %458 {offsets = [0, 32], sizes = [8, 32], strides = [1, 1]} : vector<8x256xf32> to vector<8x32xf32>
    %463 = vector.extract_strided_slice %458 {offsets = [0, 160], sizes = [8, 32], strides = [1, 1]} : vector<8x256xf32> to vector<8x32xf32>
    %464 = tpu.concatenate %462, %463 in 1 : vector<8x32xf32>, vector<8x32xf32> -> vector<8x64xf32>
    %465 = vector.extract_strided_slice %458 {offsets = [0, 64], sizes = [8, 32], strides = [1, 1]} : vector<8x256xf32> to vector<8x32xf32>
    %466 = vector.extract_strided_slice %458 {offsets = [0, 192], sizes = [8, 32], strides = [1, 1]} : vector<8x256xf32> to vector<8x32xf32>
    %467 = tpu.concatenate %465, %466 in 1 : vector<8x32xf32>, vector<8x32xf32> -> vector<8x64xf32>
    %468 = vector.extract_strided_slice %458 {offsets = [0, 96], sizes = [8, 32], strides = [1, 1]} : vector<8x256xf32> to vector<8x32xf32>
    %469 = vector.extract_strided_slice %458 {offsets = [0, 224], sizes = [8, 32], strides = [1, 1]} : vector<8x256xf32> to vector<8x32xf32>
    %470 = tpu.concatenate %468, %469 in 1 : vector<8x32xf32>, vector<8x32xf32> -> vector<8x64xf32>
    %471 = arith.mulf %464, %435 : vector<8x64xf32>
    %472 = arith.mulf %461, %467 : vector<8x64xf32>
    %473 = arith.addf %471, %472 : vector<8x64xf32>
    %474 = math.tanh %473 : vector<8x64xf32>
    %475 = arith.mulf %470, %474 : vector<8x64xf32>
    %476 = vector.extract_strided_slice %475 {offsets = [0, 0], sizes = [8, 32], strides = [1, 1]} : vector<8x64xf32> to vector<8x32xf32>
    %477 = arith.addf %441, %476 : vector<8x32xf32>
    %478 = vector.extract_strided_slice %475 {offsets = [0, 32], sizes = [8, 32], strides = [1, 1]} : vector<8x64xf32> to vector<8x32xf32>
    %479 = arith.addf %477, %478 : vector<8x32xf32>
    %480 = arith.truncf %475 : vector<8x64xf32> to vector<8x64xbf16>
    %c2_i32_148 = arith.constant 2 : i32
    %c7_i32_149 = arith.constant 7 : i32
    %481 = arith.subi %c7_i32_149, %c2_i32_148 : i32
    %482 = arith.index_cast %c2_i32_148 : i32 to index
    %c0_150 = arith.constant 0 : index
    %c0_151 = arith.constant 0 : index
    %483 = vector.load %arg10[%482, %c0_150, %c0_151] : memref<8x8x256xf32, #tpu.memory_space<vmem>>, vector<1x8x256xf32>
    %484 = vector.shape_cast %483 : vector<1x8x256xf32> to vector<8x256xf32>
    %485 = arith.index_cast %481 : i32 to index
    %c0_152 = arith.constant 0 : index
    %c0_153 = arith.constant 0 : index
    %486 = vector.load %arg10[%485, %c0_152, %c0_153] : memref<8x8x256xf32, #tpu.memory_space<vmem>>, vector<1x8x256xf32>
    %487 = vector.shape_cast %486 : vector<1x8x256xf32> to vector<8x256xf32>
    %488 = vector.extract_strided_slice %484 {offsets = [0, 0], sizes = [8, 128], strides = [1, 1]} : vector<8x256xf32> to vector<8x128xf32>
    %489 = vector.extract_strided_slice %487 {offsets = [0, 128], sizes = [8, 128], strides = [1, 1]} : vector<8x256xf32> to vector<8x128xf32>
    %490 = tpu.concatenate %488, %489 in 1 : vector<8x128xf32>, vector<8x128xf32> -> vector<8x256xf32>
    %c0_154 = arith.constant 0 : index
    %c0_155 = arith.constant 0 : index
    %491 = vector.load %arg5[%c0_154, %c0_155] : memref<64x256xbf16, #tpu.memory_space<vmem>>, vector<64x256xbf16>
    %cst_156 = arith.constant dense<0.000000e+00> : vector<8x256xf32>
    %492 = tpu.matmul %480, %491, %cst_156 {dimension_numbers = #tpu.dot_dimension_numbers<[1], [0], [0], [1], [0, 0, 1, 1], [], []>} : vector<8x64xbf16>, vector<64x256xbf16>, vector<8x256xf32> -> vector<8x256xf32>
    %493 = arith.addf %490, %492 : vector<8x256xf32>
    %494 = math.tanh %493 : vector<8x256xf32>
    %495 = arith.mulf %494, %24 : vector<8x256xf32>
    %496 = arith.addf %495, %27 : vector<8x256xf32>
    %497 = vector.extract_strided_slice %496 {offsets = [0, 0], sizes = [8, 32], strides = [1, 1]} : vector<8x256xf32> to vector<8x32xf32>
    %498 = vector.extract_strided_slice %496 {offsets = [0, 128], sizes = [8, 32], strides = [1, 1]} : vector<8x256xf32> to vector<8x32xf32>
    %499 = tpu.concatenate %497, %498 in 1 : vector<8x32xf32>, vector<8x32xf32> -> vector<8x64xf32>
    %500 = vector.extract_strided_slice %496 {offsets = [0, 32], sizes = [8, 32], strides = [1, 1]} : vector<8x256xf32> to vector<8x32xf32>
    %501 = vector.extract_strided_slice %496 {offsets = [0, 160], sizes = [8, 32], strides = [1, 1]} : vector<8x256xf32> to vector<8x32xf32>
    %502 = tpu.concatenate %500, %501 in 1 : vector<8x32xf32>, vector<8x32xf32> -> vector<8x64xf32>
    %503 = vector.extract_strided_slice %496 {offsets = [0, 64], sizes = [8, 32], strides = [1, 1]} : vector<8x256xf32> to vector<8x32xf32>
    %504 = vector.extract_strided_slice %496 {offsets = [0, 192], sizes = [8, 32], strides = [1, 1]} : vector<8x256xf32> to vector<8x32xf32>
    %505 = tpu.concatenate %503, %504 in 1 : vector<8x32xf32>, vector<8x32xf32> -> vector<8x64xf32>
    %506 = vector.extract_strided_slice %496 {offsets = [0, 96], sizes = [8, 32], strides = [1, 1]} : vector<8x256xf32> to vector<8x32xf32>
    %507 = vector.extract_strided_slice %496 {offsets = [0, 224], sizes = [8, 32], strides = [1, 1]} : vector<8x256xf32> to vector<8x32xf32>
    %508 = tpu.concatenate %506, %507 in 1 : vector<8x32xf32>, vector<8x32xf32> -> vector<8x64xf32>
    %509 = arith.mulf %502, %473 : vector<8x64xf32>
    %510 = arith.mulf %499, %505 : vector<8x64xf32>
    %511 = arith.addf %509, %510 : vector<8x64xf32>
    %512 = math.tanh %511 : vector<8x64xf32>
    %513 = arith.mulf %508, %512 : vector<8x64xf32>
    %514 = vector.extract_strided_slice %513 {offsets = [0, 0], sizes = [8, 32], strides = [1, 1]} : vector<8x64xf32> to vector<8x32xf32>
    %515 = arith.addf %479, %514 : vector<8x32xf32>
    %516 = vector.extract_strided_slice %513 {offsets = [0, 32], sizes = [8, 32], strides = [1, 1]} : vector<8x64xf32> to vector<8x32xf32>
    %517 = arith.addf %515, %516 : vector<8x32xf32>
    %518 = arith.truncf %513 : vector<8x64xf32> to vector<8x64xbf16>
    %c3_i32_157 = arith.constant 3 : i32
    %c7_i32_158 = arith.constant 7 : i32
    %519 = arith.subi %c7_i32_158, %c3_i32_157 : i32
    %520 = arith.index_cast %c3_i32_157 : i32 to index
    %c0_159 = arith.constant 0 : index
    %c0_160 = arith.constant 0 : index
    %521 = vector.load %arg10[%520, %c0_159, %c0_160] : memref<8x8x256xf32, #tpu.memory_space<vmem>>, vector<1x8x256xf32>
    %522 = vector.shape_cast %521 : vector<1x8x256xf32> to vector<8x256xf32>
    %523 = arith.index_cast %519 : i32 to index
    %c0_161 = arith.constant 0 : index
    %c0_162 = arith.constant 0 : index
    %524 = vector.load %arg10[%523, %c0_161, %c0_162] : memref<8x8x256xf32, #tpu.memory_space<vmem>>, vector<1x8x256xf32>
    %525 = vector.shape_cast %524 : vector<1x8x256xf32> to vector<8x256xf32>
    %526 = vector.extract_strided_slice %522 {offsets = [0, 0], sizes = [8, 128], strides = [1, 1]} : vector<8x256xf32> to vector<8x128xf32>
    %527 = vector.extract_strided_slice %525 {offsets = [0, 128], sizes = [8, 128], strides = [1, 1]} : vector<8x256xf32> to vector<8x128xf32>
    %528 = tpu.concatenate %526, %527 in 1 : vector<8x128xf32>, vector<8x128xf32> -> vector<8x256xf32>
    %c0_163 = arith.constant 0 : index
    %c0_164 = arith.constant 0 : index
    %529 = vector.load %arg5[%c0_163, %c0_164] : memref<64x256xbf16, #tpu.memory_space<vmem>>, vector<64x256xbf16>
    %cst_165 = arith.constant dense<0.000000e+00> : vector<8x256xf32>
    %530 = tpu.matmul %518, %529, %cst_165 {dimension_numbers = #tpu.dot_dimension_numbers<[1], [0], [0], [1], [0, 0, 1, 1], [], []>} : vector<8x64xbf16>, vector<64x256xbf16>, vector<8x256xf32> -> vector<8x256xf32>
    %531 = arith.addf %528, %530 : vector<8x256xf32>
    %532 = math.tanh %531 : vector<8x256xf32>
    %533 = arith.mulf %532, %24 : vector<8x256xf32>
    %534 = arith.addf %533, %27 : vector<8x256xf32>
    %535 = vector.extract_strided_slice %534 {offsets = [0, 0], sizes = [8, 32], strides = [1, 1]} : vector<8x256xf32> to vector<8x32xf32>
    %536 = vector.extract_strided_slice %534 {offsets = [0, 128], sizes = [8, 32], strides = [1, 1]} : vector<8x256xf32> to vector<8x32xf32>
    %537 = tpu.concatenate %535, %536 in 1 : vector<8x32xf32>, vector<8x32xf32> -> vector<8x64xf32>
    %538 = vector.extract_strided_slice %534 {offsets = [0, 32], sizes = [8, 32], strides = [1, 1]} : vector<8x256xf32> to vector<8x32xf32>
    %539 = vector.extract_strided_slice %534 {offsets = [0, 160], sizes = [8, 32], strides = [1, 1]} : vector<8x256xf32> to vector<8x32xf32>
    %540 = tpu.concatenate %538, %539 in 1 : vector<8x32xf32>, vector<8x32xf32> -> vector<8x64xf32>
    %541 = vector.extract_strided_slice %534 {offsets = [0, 64], sizes = [8, 32], strides = [1, 1]} : vector<8x256xf32> to vector<8x32xf32>
    %542 = vector.extract_strided_slice %534 {offsets = [0, 192], sizes = [8, 32], strides = [1, 1]} : vector<8x256xf32> to vector<8x32xf32>
    %543 = tpu.concatenate %541, %542 in 1 : vector<8x32xf32>, vector<8x32xf32> -> vector<8x64xf32>
    %544 = vector.extract_strided_slice %534 {offsets = [0, 96], sizes = [8, 32], strides = [1, 1]} : vector<8x256xf32> to vector<8x32xf32>
    %545 = vector.extract_strided_slice %534 {offsets = [0, 224], sizes = [8, 32], strides = [1, 1]} : vector<8x256xf32> to vector<8x32xf32>
    %546 = tpu.concatenate %544, %545 in 1 : vector<8x32xf32>, vector<8x32xf32> -> vector<8x64xf32>
    %547 = arith.mulf %540, %511 : vector<8x64xf32>
    %548 = arith.mulf %537, %543 : vector<8x64xf32>
    %549 = arith.addf %547, %548 : vector<8x64xf32>
    %550 = math.tanh %549 : vector<8x64xf32>
    %551 = arith.mulf %546, %550 : vector<8x64xf32>
    %552 = vector.extract_strided_slice %551 {offsets = [0, 0], sizes = [8, 32], strides = [1, 1]} : vector<8x64xf32> to vector<8x32xf32>
    %553 = arith.addf %517, %552 : vector<8x32xf32>
    %554 = vector.extract_strided_slice %551 {offsets = [0, 32], sizes = [8, 32], strides = [1, 1]} : vector<8x64xf32> to vector<8x32xf32>
    %555 = arith.addf %553, %554 : vector<8x32xf32>
    %556 = arith.truncf %551 : vector<8x64xf32> to vector<8x64xbf16>
    %c4_i32_166 = arith.constant 4 : i32
    %c7_i32_167 = arith.constant 7 : i32
    %557 = arith.subi %c7_i32_167, %c4_i32_166 : i32
    %558 = arith.index_cast %c4_i32_166 : i32 to index
    %c0_168 = arith.constant 0 : index
    %c0_169 = arith.constant 0 : index
    %559 = vector.load %arg10[%558, %c0_168, %c0_169] : memref<8x8x256xf32, #tpu.memory_space<vmem>>, vector<1x8x256xf32>
    %560 = vector.shape_cast %559 : vector<1x8x256xf32> to vector<8x256xf32>
    %561 = arith.index_cast %557 : i32 to index
    %c0_170 = arith.constant 0 : index
    %c0_171 = arith.constant 0 : index
    %562 = vector.load %arg10[%561, %c0_170, %c0_171] : memref<8x8x256xf32, #tpu.memory_space<vmem>>, vector<1x8x256xf32>
    %563 = vector.shape_cast %562 : vector<1x8x256xf32> to vector<8x256xf32>
    %564 = vector.extract_strided_slice %560 {offsets = [0, 0], sizes = [8, 128], strides = [1, 1]} : vector<8x256xf32> to vector<8x128xf32>
    %565 = vector.extract_strided_slice %563 {offsets = [0, 128], sizes = [8, 128], strides = [1, 1]} : vector<8x256xf32> to vector<8x128xf32>
    %566 = tpu.concatenate %564, %565 in 1 : vector<8x128xf32>, vector<8x128xf32> -> vector<8x256xf32>
    %c0_172 = arith.constant 0 : index
    %c0_173 = arith.constant 0 : index
    %567 = vector.load %arg5[%c0_172, %c0_173] : memref<64x256xbf16, #tpu.memory_space<vmem>>, vector<64x256xbf16>
    %cst_174 = arith.constant dense<0.000000e+00> : vector<8x256xf32>
    %568 = tpu.matmul %556, %567, %cst_174 {dimension_numbers = #tpu.dot_dimension_numbers<[1], [0], [0], [1], [0, 0, 1, 1], [], []>} : vector<8x64xbf16>, vector<64x256xbf16>, vector<8x256xf32> -> vector<8x256xf32>
    %569 = arith.addf %566, %568 : vector<8x256xf32>
    %570 = math.tanh %569 : vector<8x256xf32>
    %571 = arith.mulf %570, %24 : vector<8x256xf32>
    %572 = arith.addf %571, %27 : vector<8x256xf32>
    %573 = vector.extract_strided_slice %572 {offsets = [0, 0], sizes = [8, 32], strides = [1, 1]} : vector<8x256xf32> to vector<8x32xf32>
    %574 = vector.extract_strided_slice %572 {offsets = [0, 128], sizes = [8, 32], strides = [1, 1]} : vector<8x256xf32> to vector<8x32xf32>
    %575 = tpu.concatenate %573, %574 in 1 : vector<8x32xf32>, vector<8x32xf32> -> vector<8x64xf32>
    %576 = vector.extract_strided_slice %572 {offsets = [0, 32], sizes = [8, 32], strides = [1, 1]} : vector<8x256xf32> to vector<8x32xf32>
    %577 = vector.extract_strided_slice %572 {offsets = [0, 160], sizes = [8, 32], strides = [1, 1]} : vector<8x256xf32> to vector<8x32xf32>
    %578 = tpu.concatenate %576, %577 in 1 : vector<8x32xf32>, vector<8x32xf32> -> vector<8x64xf32>
    %579 = vector.extract_strided_slice %572 {offsets = [0, 64], sizes = [8, 32], strides = [1, 1]} : vector<8x256xf32> to vector<8x32xf32>
    %580 = vector.extract_strided_slice %572 {offsets = [0, 192], sizes = [8, 32], strides = [1, 1]} : vector<8x256xf32> to vector<8x32xf32>
    %581 = tpu.concatenate %579, %580 in 1 : vector<8x32xf32>, vector<8x32xf32> -> vector<8x64xf32>
    %582 = vector.extract_strided_slice %572 {offsets = [0, 96], sizes = [8, 32], strides = [1, 1]} : vector<8x256xf32> to vector<8x32xf32>
    %583 = vector.extract_strided_slice %572 {offsets = [0, 224], sizes = [8, 32], strides = [1, 1]} : vector<8x256xf32> to vector<8x32xf32>
    %584 = tpu.concatenate %582, %583 in 1 : vector<8x32xf32>, vector<8x32xf32> -> vector<8x64xf32>
    %585 = arith.mulf %578, %549 : vector<8x64xf32>
    %586 = arith.mulf %575, %581 : vector<8x64xf32>
    %587 = arith.addf %585, %586 : vector<8x64xf32>
    %588 = math.tanh %587 : vector<8x64xf32>
    %589 = arith.mulf %584, %588 : vector<8x64xf32>
    %590 = vector.extract_strided_slice %589 {offsets = [0, 0], sizes = [8, 32], strides = [1, 1]} : vector<8x64xf32> to vector<8x32xf32>
    %591 = arith.addf %555, %590 : vector<8x32xf32>
    %592 = vector.extract_strided_slice %589 {offsets = [0, 32], sizes = [8, 32], strides = [1, 1]} : vector<8x64xf32> to vector<8x32xf32>
    %593 = arith.addf %591, %592 : vector<8x32xf32>
    %594 = arith.truncf %589 : vector<8x64xf32> to vector<8x64xbf16>
    %c5_i32_175 = arith.constant 5 : i32
    %c7_i32_176 = arith.constant 7 : i32
    %595 = arith.subi %c7_i32_176, %c5_i32_175 : i32
    %596 = arith.index_cast %c5_i32_175 : i32 to index
    %c0_177 = arith.constant 0 : index
    %c0_178 = arith.constant 0 : index
    %597 = vector.load %arg10[%596, %c0_177, %c0_178] : memref<8x8x256xf32, #tpu.memory_space<vmem>>, vector<1x8x256xf32>
    %598 = vector.shape_cast %597 : vector<1x8x256xf32> to vector<8x256xf32>
    %599 = arith.index_cast %595 : i32 to index
    %c0_179 = arith.constant 0 : index
    %c0_180 = arith.constant 0 : index
    %600 = vector.load %arg10[%599, %c0_179, %c0_180] : memref<8x8x256xf32, #tpu.memory_space<vmem>>, vector<1x8x256xf32>
    %601 = vector.shape_cast %600 : vector<1x8x256xf32> to vector<8x256xf32>
    %602 = vector.extract_strided_slice %598 {offsets = [0, 0], sizes = [8, 128], strides = [1, 1]} : vector<8x256xf32> to vector<8x128xf32>
    %603 = vector.extract_strided_slice %601 {offsets = [0, 128], sizes = [8, 128], strides = [1, 1]} : vector<8x256xf32> to vector<8x128xf32>
    %604 = tpu.concatenate %602, %603 in 1 : vector<8x128xf32>, vector<8x128xf32> -> vector<8x256xf32>
    %c0_181 = arith.constant 0 : index
    %c0_182 = arith.constant 0 : index
    %605 = vector.load %arg5[%c0_181, %c0_182] : memref<64x256xbf16, #tpu.memory_space<vmem>>, vector<64x256xbf16>
    %cst_183 = arith.constant dense<0.000000e+00> : vector<8x256xf32>
    %606 = tpu.matmul %594, %605, %cst_183 {dimension_numbers = #tpu.dot_dimension_numbers<[1], [0], [0], [1], [0, 0, 1, 1], [], []>} : vector<8x64xbf16>, vector<64x256xbf16>, vector<8x256xf32> -> vector<8x256xf32>
    %607 = arith.addf %604, %606 : vector<8x256xf32>
    %608 = math.tanh %607 : vector<8x256xf32>
    %609 = arith.mulf %608, %24 : vector<8x256xf32>
    %610 = arith.addf %609, %27 : vector<8x256xf32>
    %611 = vector.extract_strided_slice %610 {offsets = [0, 0], sizes = [8, 32], strides = [1, 1]} : vector<8x256xf32> to vector<8x32xf32>
    %612 = vector.extract_strided_slice %610 {offsets = [0, 128], sizes = [8, 32], strides = [1, 1]} : vector<8x256xf32> to vector<8x32xf32>
    %613 = tpu.concatenate %611, %612 in 1 : vector<8x32xf32>, vector<8x32xf32> -> vector<8x64xf32>
    %614 = vector.extract_strided_slice %610 {offsets = [0, 32], sizes = [8, 32], strides = [1, 1]} : vector<8x256xf32> to vector<8x32xf32>
    %615 = vector.extract_strided_slice %610 {offsets = [0, 160], sizes = [8, 32], strides = [1, 1]} : vector<8x256xf32> to vector<8x32xf32>
    %616 = tpu.concatenate %614, %615 in 1 : vector<8x32xf32>, vector<8x32xf32> -> vector<8x64xf32>
    %617 = vector.extract_strided_slice %610 {offsets = [0, 64], sizes = [8, 32], strides = [1, 1]} : vector<8x256xf32> to vector<8x32xf32>
    %618 = vector.extract_strided_slice %610 {offsets = [0, 192], sizes = [8, 32], strides = [1, 1]} : vector<8x256xf32> to vector<8x32xf32>
    %619 = tpu.concatenate %617, %618 in 1 : vector<8x32xf32>, vector<8x32xf32> -> vector<8x64xf32>
    %620 = vector.extract_strided_slice %610 {offsets = [0, 96], sizes = [8, 32], strides = [1, 1]} : vector<8x256xf32> to vector<8x32xf32>
    %621 = vector.extract_strided_slice %610 {offsets = [0, 224], sizes = [8, 32], strides = [1, 1]} : vector<8x256xf32> to vector<8x32xf32>
    %622 = tpu.concatenate %620, %621 in 1 : vector<8x32xf32>, vector<8x32xf32> -> vector<8x64xf32>
    %623 = arith.mulf %616, %587 : vector<8x64xf32>
    %624 = arith.mulf %613, %619 : vector<8x64xf32>
    %625 = arith.addf %623, %624 : vector<8x64xf32>
    %626 = math.tanh %625 : vector<8x64xf32>
    %627 = arith.mulf %622, %626 : vector<8x64xf32>
    %628 = vector.extract_strided_slice %627 {offsets = [0, 0], sizes = [8, 32], strides = [1, 1]} : vector<8x64xf32> to vector<8x32xf32>
    %629 = arith.addf %593, %628 : vector<8x32xf32>
    %630 = vector.extract_strided_slice %627 {offsets = [0, 32], sizes = [8, 32], strides = [1, 1]} : vector<8x64xf32> to vector<8x32xf32>
    %631 = arith.addf %629, %630 : vector<8x32xf32>
    %632 = arith.truncf %627 : vector<8x64xf32> to vector<8x64xbf16>
    %c6_i32_184 = arith.constant 6 : i32
    %c7_i32_185 = arith.constant 7 : i32
    %633 = arith.subi %c7_i32_185, %c6_i32_184 : i32
    %634 = arith.index_cast %c6_i32_184 : i32 to index
    %c0_186 = arith.constant 0 : index
    %c0_187 = arith.constant 0 : index
    %635 = vector.load %arg10[%634, %c0_186, %c0_187] : memref<8x8x256xf32, #tpu.memory_space<vmem>>, vector<1x8x256xf32>
    %636 = vector.shape_cast %635 : vector<1x8x256xf32> to vector<8x256xf32>
    %637 = arith.index_cast %633 : i32 to index
    %c0_188 = arith.constant 0 : index
    %c0_189 = arith.constant 0 : index
    %638 = vector.load %arg10[%637, %c0_188, %c0_189] : memref<8x8x256xf32, #tpu.memory_space<vmem>>, vector<1x8x256xf32>
    %639 = vector.shape_cast %638 : vector<1x8x256xf32> to vector<8x256xf32>
    %640 = vector.extract_strided_slice %636 {offsets = [0, 0], sizes = [8, 128], strides = [1, 1]} : vector<8x256xf32> to vector<8x128xf32>
    %641 = vector.extract_strided_slice %639 {offsets = [0, 128], sizes = [8, 128], strides = [1, 1]} : vector<8x256xf32> to vector<8x128xf32>
    %642 = tpu.concatenate %640, %641 in 1 : vector<8x128xf32>, vector<8x128xf32> -> vector<8x256xf32>
    %c0_190 = arith.constant 0 : index
    %c0_191 = arith.constant 0 : index
    %643 = vector.load %arg5[%c0_190, %c0_191] : memref<64x256xbf16, #tpu.memory_space<vmem>>, vector<64x256xbf16>
    %cst_192 = arith.constant dense<0.000000e+00> : vector<8x256xf32>
    %644 = tpu.matmul %632, %643, %cst_192 {dimension_numbers = #tpu.dot_dimension_numbers<[1], [0], [0], [1], [0, 0, 1, 1], [], []>} : vector<8x64xbf16>, vector<64x256xbf16>, vector<8x256xf32> -> vector<8x256xf32>
    %645 = arith.addf %642, %644 : vector<8x256xf32>
    %646 = math.tanh %645 : vector<8x256xf32>
    %647 = arith.mulf %646, %24 : vector<8x256xf32>
    %648 = arith.addf %647, %27 : vector<8x256xf32>
    %649 = vector.extract_strided_slice %648 {offsets = [0, 0], sizes = [8, 32], strides = [1, 1]} : vector<8x256xf32> to vector<8x32xf32>
    %650 = vector.extract_strided_slice %648 {offsets = [0, 128], sizes = [8, 32], strides = [1, 1]} : vector<8x256xf32> to vector<8x32xf32>
    %651 = tpu.concatenate %649, %650 in 1 : vector<8x32xf32>, vector<8x32xf32> -> vector<8x64xf32>
    %652 = vector.extract_strided_slice %648 {offsets = [0, 32], sizes = [8, 32], strides = [1, 1]} : vector<8x256xf32> to vector<8x32xf32>
    %653 = vector.extract_strided_slice %648 {offsets = [0, 160], sizes = [8, 32], strides = [1, 1]} : vector<8x256xf32> to vector<8x32xf32>
    %654 = tpu.concatenate %652, %653 in 1 : vector<8x32xf32>, vector<8x32xf32> -> vector<8x64xf32>
    %655 = vector.extract_strided_slice %648 {offsets = [0, 64], sizes = [8, 32], strides = [1, 1]} : vector<8x256xf32> to vector<8x32xf32>
    %656 = vector.extract_strided_slice %648 {offsets = [0, 192], sizes = [8, 32], strides = [1, 1]} : vector<8x256xf32> to vector<8x32xf32>
    %657 = tpu.concatenate %655, %656 in 1 : vector<8x32xf32>, vector<8x32xf32> -> vector<8x64xf32>
    %658 = vector.extract_strided_slice %648 {offsets = [0, 96], sizes = [8, 32], strides = [1, 1]} : vector<8x256xf32> to vector<8x32xf32>
    %659 = vector.extract_strided_slice %648 {offsets = [0, 224], sizes = [8, 32], strides = [1, 1]} : vector<8x256xf32> to vector<8x32xf32>
    %660 = tpu.concatenate %658, %659 in 1 : vector<8x32xf32>, vector<8x32xf32> -> vector<8x64xf32>
    %661 = arith.mulf %654, %625 : vector<8x64xf32>
    %662 = arith.mulf %651, %657 : vector<8x64xf32>
    %663 = arith.addf %661, %662 : vector<8x64xf32>
    %664 = math.tanh %663 : vector<8x64xf32>
    %665 = arith.mulf %660, %664 : vector<8x64xf32>
    %666 = vector.extract_strided_slice %665 {offsets = [0, 0], sizes = [8, 32], strides = [1, 1]} : vector<8x64xf32> to vector<8x32xf32>
    %667 = arith.addf %631, %666 : vector<8x32xf32>
    %668 = vector.extract_strided_slice %665 {offsets = [0, 32], sizes = [8, 32], strides = [1, 1]} : vector<8x64xf32> to vector<8x32xf32>
    %669 = arith.addf %667, %668 : vector<8x32xf32>
    %670 = arith.truncf %665 : vector<8x64xf32> to vector<8x64xbf16>
    %c7_i32_193 = arith.constant 7 : i32
    %c7_i32_194 = arith.constant 7 : i32
    %671 = arith.subi %c7_i32_194, %c7_i32_193 : i32
    %672 = arith.index_cast %c7_i32_193 : i32 to index
    %c0_195 = arith.constant 0 : index
    %c0_196 = arith.constant 0 : index
    %673 = vector.load %arg10[%672, %c0_195, %c0_196] : memref<8x8x256xf32, #tpu.memory_space<vmem>>, vector<1x8x256xf32>
    %674 = vector.shape_cast %673 : vector<1x8x256xf32> to vector<8x256xf32>
    %675 = arith.index_cast %671 : i32 to index
    %c0_197 = arith.constant 0 : index
    %c0_198 = arith.constant 0 : index
    %676 = vector.load %arg10[%675, %c0_197, %c0_198] : memref<8x8x256xf32, #tpu.memory_space<vmem>>, vector<1x8x256xf32>
    %677 = vector.shape_cast %676 : vector<1x8x256xf32> to vector<8x256xf32>
    %678 = vector.extract_strided_slice %674 {offsets = [0, 0], sizes = [8, 128], strides = [1, 1]} : vector<8x256xf32> to vector<8x128xf32>
    %679 = vector.extract_strided_slice %677 {offsets = [0, 128], sizes = [8, 128], strides = [1, 1]} : vector<8x256xf32> to vector<8x128xf32>
    %680 = tpu.concatenate %678, %679 in 1 : vector<8x128xf32>, vector<8x128xf32> -> vector<8x256xf32>
    %c0_199 = arith.constant 0 : index
    %c0_200 = arith.constant 0 : index
    %681 = vector.load %arg5[%c0_199, %c0_200] : memref<64x256xbf16, #tpu.memory_space<vmem>>, vector<64x256xbf16>
    %cst_201 = arith.constant dense<0.000000e+00> : vector<8x256xf32>
    %682 = tpu.matmul %670, %681, %cst_201 {dimension_numbers = #tpu.dot_dimension_numbers<[1], [0], [0], [1], [0, 0, 1, 1], [], []>} : vector<8x64xbf16>, vector<64x256xbf16>, vector<8x256xf32> -> vector<8x256xf32>
    %683 = arith.addf %680, %682 : vector<8x256xf32>
    %684 = math.tanh %683 : vector<8x256xf32>
    %685 = arith.mulf %684, %24 : vector<8x256xf32>
    %686 = arith.addf %685, %27 : vector<8x256xf32>
    %687 = vector.extract_strided_slice %686 {offsets = [0, 0], sizes = [8, 32], strides = [1, 1]} : vector<8x256xf32> to vector<8x32xf32>
    %688 = vector.extract_strided_slice %686 {offsets = [0, 128], sizes = [8, 32], strides = [1, 1]} : vector<8x256xf32> to vector<8x32xf32>
    %689 = tpu.concatenate %687, %688 in 1 : vector<8x32xf32>, vector<8x32xf32> -> vector<8x64xf32>
    %690 = vector.extract_strided_slice %686 {offsets = [0, 32], sizes = [8, 32], strides = [1, 1]} : vector<8x256xf32> to vector<8x32xf32>
    %691 = vector.extract_strided_slice %686 {offsets = [0, 160], sizes = [8, 32], strides = [1, 1]} : vector<8x256xf32> to vector<8x32xf32>
    %692 = tpu.concatenate %690, %691 in 1 : vector<8x32xf32>, vector<8x32xf32> -> vector<8x64xf32>
    %693 = vector.extract_strided_slice %686 {offsets = [0, 64], sizes = [8, 32], strides = [1, 1]} : vector<8x256xf32> to vector<8x32xf32>
    %694 = vector.extract_strided_slice %686 {offsets = [0, 192], sizes = [8, 32], strides = [1, 1]} : vector<8x256xf32> to vector<8x32xf32>
    %695 = tpu.concatenate %693, %694 in 1 : vector<8x32xf32>, vector<8x32xf32> -> vector<8x64xf32>
    %696 = vector.extract_strided_slice %686 {offsets = [0, 96], sizes = [8, 32], strides = [1, 1]} : vector<8x256xf32> to vector<8x32xf32>
    %697 = vector.extract_strided_slice %686 {offsets = [0, 224], sizes = [8, 32], strides = [1, 1]} : vector<8x256xf32> to vector<8x32xf32>
    %698 = tpu.concatenate %696, %697 in 1 : vector<8x32xf32>, vector<8x32xf32> -> vector<8x64xf32>
    %699 = arith.mulf %692, %663 : vector<8x64xf32>
    %700 = arith.mulf %689, %695 : vector<8x64xf32>
    %701 = arith.addf %699, %700 : vector<8x64xf32>
    %702 = math.tanh %701 : vector<8x64xf32>
    %703 = arith.mulf %698, %702 : vector<8x64xf32>
    %704 = vector.extract_strided_slice %703 {offsets = [0, 0], sizes = [8, 32], strides = [1, 1]} : vector<8x64xf32> to vector<8x32xf32>
    %705 = arith.addf %669, %704 : vector<8x32xf32>
    %706 = vector.extract_strided_slice %703 {offsets = [0, 32], sizes = [8, 32], strides = [1, 1]} : vector<8x64xf32> to vector<8x32xf32>
    %707 = arith.addf %705, %706 : vector<8x32xf32>
    %708 = arith.truncf %703 : vector<8x64xf32> to vector<8x64xbf16>
    %c8_i32_202 = arith.constant 8 : i32
    %cst_203 = arith.constant 1.250000e-01 : f32
    %709 = vector.broadcast %cst_203 : f32 to vector<8x32xf32>
    %710 = arith.mulf %707, %709 : vector<8x32xf32>
    %c0_204 = arith.constant 0 : index
    %c0_205 = arith.constant 0 : index
    %711 = vector.load %arg8[%c0_204, %c0_205] : memref<8x32xf32, #tpu.memory_space<vmem>>, vector<8x32xf32>
    tpu.vector_store %arg8[%c0_204, %c0_205], %710 {strides = array<i32>} : memref<8x32xf32, #tpu.memory_space<vmem>>, vector<8x32xf32>,
    %c0_206 = arith.constant 0 : index
    %c0_207 = arith.constant 0 : index
    %712 = vector.load %arg7[%c0_206, %c0_207] : memref<32x4xf32, #tpu.memory_space<vmem>>, vector<32x4xf32>
    %cst_208 = arith.constant dense<0.000000e+00> : vector<8x4xf32>
    %713 = tpu.matmul %710, %712, %cst_208 {dimension_numbers = #tpu.dot_dimension_numbers<[1], [0], [0], [1], [0, 0, 1, 1], [], []>} : vector<8x32xf32>, vector<32x4xf32>, vector<8x4xf32> -> vector<8x4xf32>
    %c0_209 = arith.constant 0 : index
    %c0_210 = arith.constant 0 : index
    %714 = vector.load %arg9[%c0_209, %c0_210] : memref<8x4xf32, #tpu.memory_space<vmem>>, vector<8x4xf32>
    tpu.vector_store %arg9[%c0_209, %c0_210], %713 {strides = array<i32>} : memref<8x4xf32, #tpu.memory_space<vmem>>, vector<8x4xf32>,
    return
  }
}

</mosaic_0001>

<llo_original>
// kernel: _forward_core.1
$region0: #{_forward_core.1}
  #allocation0 [shape = 'u32[]', space=smem, size = 0x4, offset = 0x4, fixed_abs, tag = 'smem constant byte address 0x4 - core index']
  #allocation1 [shape = 'u32[144,128]{1,0:T(1,128)}', space=vmem, size = 0x12000, scoped, tag = 'internal scratch']
  #allocation2 [shape = 'f32[8,8,256]{2,1,0:T(8,128)}', space=vmem, size = 0x10000, scoped, tag = 'scratch operand']
  #allocation3 [shape = 'bf16[8,8,32]{2,1,0:T(8,128)(2,1)}', space=vmem, size = 0x4000, scoped, tag = 'scratch operand']
  #allocation4 [shape = 'bf16[8,8,32]{2,1,0:T(8,128)(2,1)}', space=vmem, size = 0x4000, scoped, tag = 'scratch operand']
  %s0 = inlined_call_operand.vmem [shape: bf16[8,8,32], index: 0, kind: input, shape index: {}]
  %s1 = inlined_call_operand.vmem [shape: bf16[32,256], index: 1, kind: input, shape index: {}]
  %s2 = inlined_call_operand.vmem [shape: bf16[64,256], index: 2, kind: input, shape index: {}]
  %s3 = inlined_call_operand.vmem [shape: f32[1,256], index: 3, kind: input, shape index: {}]
  %s4 = inlined_call_operand.vmem [shape: bf16[64,256], index: 4, kind: input, shape index: {}]
  %s5 = inlined_call_operand.vmem [shape: bf16[64,256], index: 5, kind: input, shape index: {}]
  %s6 = inlined_call_operand.vmem [shape: f32[1,256], index: 6, kind: input, shape index: {}]
  %s7 = inlined_call_operand.vmem [shape: f32[32,4], index: 7, kind: input, shape index: {}]
  %s8 = inlined_call_operand.vmem [shape: f32[8,32], index: 8, kind: output, shape index: {0}]
  %s9 = inlined_call_operand.vmem [shape: f32[8,4], index: 9, kind: output, shape index: {1}]
  %10 = xla_tuple %s8, %s9
  %s11 = sld [smem:[#allocation0]]
  $region50: #{_forward_core.1} parent=0
    _
  %s13 = ssub.s32 1, %s11
  %s14 = scalar_select 0, %s13, %s11
  // Predicated region
  $region2: #{_forward_core.1} parent=0 // pred_check
    _
  $region3: #{_forward_core.1} parent=0 // pred_check_branch
    %16 = sbr.rel (0) target = $region5
  $region4: #{_forward_core.1} parent=0 // pred_region
    _
  $region5: #{_forward_core.1} parent=0 // pred_fallthru
    _
  // Predicated region
  $region6: #{_forward_core.1} parent=0 // pred_check
    _
  $region7: #{_forward_core.1} parent=0 // pred_check_branch
    %18 = sbr.rel (0) target = $region9
  $region8: #{_forward_core.1} parent=0 // pred_region
    _
  $region9: #{_forward_core.1} parent=0 // pred_fallthru
    _
  // Predicated region
  $region10: #{_forward_core.1} parent=0 // pred_check
    _
  $region11: #{_forward_core.1} parent=0 // pred_check_branch
    %20 = sbr.rel (0) target = $region13
  $region12: #{_forward_core.1} parent=0 // pred_region
    _
  $region13: #{_forward_core.1} parent=0 // pred_fallthru
    _
  // Predicated region
  $region14: #{_forward_core.1} parent=0 // pred_check
    _
  $region15: #{_forward_core.1} parent=0 // pred_check_branch
    %22 = sbr.rel (0) target = $region17
  $region16: #{_forward_core.1} parent=0 // pred_region
    _
  $region17: #{_forward_core.1} parent=0 // pred_fallthru
    _
  // Predicated region
  $region18: #{_forward_core.1} parent=0 // pred_check
    _
  $region19: #{_forward_core.1} parent=0 // pred_check_branch
    %24 = sbr.rel (0) target = $region21
  $region20: #{_forward_core.1} parent=0 // pred_region
    _
  $region21: #{_forward_core.1} parent=0 // pred_fallthru
    _
  // Predicated region
  $region22: #{_forward_core.1} parent=0 // pred_check
    _
  $region23: #{_forward_core.1} parent=0 // pred_check_branch
    %26 = sbr.rel (0) target = $region25
  $region24: #{_forward_core.1} parent=0 // pred_region
    _
  $region25: #{_forward_core.1} parent=0 // pred_fallthru
    _
  // Predicated region
  $region26: #{_forward_core.1} parent=0 // pred_check
    _
  $region27: #{_forward_core.1} parent=0 // pred_check_branch
    %28 = sbr.rel (0) target = $region29
  $region28: #{_forward_core.1} parent=0 // pred_region
    _
  $region29: #{_forward_core.1} parent=0 // pred_fallthru
    _
  // Predicated region
  $region30: #{_forward_core.1} parent=0 // pred_check
    _
  $region31: #{_forward_core.1} parent=0 // pred_check_branch
    %30 = sbr.rel (0) target = $region33
  $region32: #{_forward_core.1} parent=0 // pred_region
    _
  $region33: #{_forward_core.1} parent=0 // pred_fallthru
    _
  %v32 = vlaneseq
  %v33 = vand.u32 %v32, 127
  %v34 = vadd.s32 %v33, 128
  %vm35 = vcmp.lt.s32.totalorder %v33, 0
  %v36 = vsub.s32 0, %v33
  %v37 = vsel %vm35, %v36, %v33
  %v38 = vshrl.u32 %v37, 7
  %v39 = vand.u32 %v37, 127
  %v40 = vsub.s32 0, %v39
  %v41 = vsel %vm35, %v40, %v39
  %vm42 = vcmp.lt.s32.totalorder %v34, 0
  %v43 = vsub.s32 0, %v34
  %v44 = vsel %vm42, %v43, %v34
  %v45 = vshrl.u32 %v44, 7
  %v46 = vand.u32 %v44, 127
  %v47 = vsub.s32 0, %v46
  %v48 = vsel %vm42, %v47, %v46
  %vm49 = vcmp.ne.s32.totalorder %v41, 0
  %vm50 = vcmp.ne.s32.totalorder %v48, 0
  %vm51 = vcmp.lt.s32.totalorder %v41, 0
  %vm52 = vcmp.lt.s32.totalorder %v48, 0
  %vm53 = vmand %vm51, %vm49
  %vm54 = vmand %vm52, %vm50
  %v55 = vadd.s32 %v41, 128
  %v56 = vadd.s32 %v48, 128
  %v57 = vsel %vm53, %v55, %v41
  %v58 = vsel %vm54, %v56, %v48
  %vm59 = vcmp.ge.s32.totalorder %v57, 64
  %vm60 = vcmp.ge.s32.totalorder %v58, 64
  %vm61 = vcmp.lt.s32.totalorder %v57, 96
  %vm62 = vcmp.lt.s32.totalorder %v58, 96
  %vm63 = vmand %vm59, %vm61
  %vm64 = vmand %vm60, %vm62
  %v65 = vsel %vm63, 1.0, 0.5
  %v66 = vsel %vm64, 1.0, 0.5
  %v67 = vsel %vm63, 0.0, 0.5
  %v68 = vsel %vm64, 0.0, 0.5
  %v69 = vld [vmem:[%s0] sm:$0xf]
  %v70 = vld [vmem:[%s0 + $0x4] sm:$0xf]
  %v71 = vld [vmem:[%s0 + $0x8] sm:$0xf]
  %v72 = vld [vmem:[%s0 + $0xc] sm:$0xf]
  %v73 = vld [vmem:[%s0 + $0x10] sm:$0xf]
  %v74 = vld [vmem:[%s0 + $0x14] sm:$0xf]
  %v75 = vld [vmem:[%s0 + $0x18] sm:$0xf]
  %v76 = vld [vmem:[%s0 + $0x1c] sm:$0xf]
  %v77 = vld [vmem:[%s1] sm:$0xff]
  %v78 = vld [vmem:[%s1 + $0x8] sm:$0xff]
  %v79 = vld [vmem:[%s1 + $0x10] sm:$0xff]
  %v80 = vld [vmem:[%s1 + $0x18] sm:$0xff]
  %v81 = vld [vmem:[%s3] sm:$0x3]
  %v83 = vlaneseq
  %v84 = vshrl.u32 %v83, 7
  %v85 = vsub.s32 0, %v84
  %v86 = vrot.slane %v81, %v85
  %v87 = vlaneseq
  %v88 = vshrl.u32 %v87, 7
  %v89 = vsub.s32 1, %v88
  %v90 = vrot.slane %v81, %v89
  %v101 = vunpack.c.l.b16 %v69
  %v102 = vunpack.c.l.b16 %v70
  %v103 = vunpack.c.l.b16 %v71
  %v104 = vunpack.c.l.b16 %v72
  %v105 = vunpack.c.l.b16 %v73
  %v106 = vunpack.c.l.b16 %v74
  %v107 = vunpack.c.l.b16 %v75
  %v108 = vunpack.c.l.b16 %v76
  %v109 = vpack.c.b16 %v102, %v101
  %v110 = vpack.c.b16 %v104, %v103
  %v111 = vpack.c.b16 %v106, %v105
  %v112 = vpack.c.b16 %v108, %v107
  %v117 = vunpack.c.l.b16 %v77
  %v118 = vunpack.c.h.b16 %v77
  %v119 = vunpack.c.l.b16 %v78
  %v120 = vunpack.c.h.b16 %v78
  %v121 = vunpack.c.l.b16 %v79
  %v122 = vunpack.c.h.b16 %v79
  %v123 = vunpack.c.l.b16 %v80
  %v124 = vunpack.c.h.b16 %v80
  %v125 = vpack.c.b16 %v119, %v117
  %v126 = vpack.c.b16 %v120, %v118
  %v127 = vpack.c.b16 %v123, %v121
  %v128 = vpack.c.b16 %v124, %v122
  %vm133 = vcmask 261120
  %v135 = vsel %vm133, %v109, 0
  %v138 = vsel %vm133, %v110, 0
  %v141 = vsel %vm133, %v111, 0
  %v144 = vsel %vm133, %v112, 0
  %146 = vmatprep.subr.bf16.mxu0 0
  %147 = vmatpush1.bf16.msra.mxu0 0
  %148 = vmatprep.subr.bf16.mxu0 0
  %149 = vmatpush1.bf16.msra.mxu0 0
  %150 = vmatprep.subr.bf16.mxu0 0
  %151 = vmatpush1.bf16.msra.mxu0 0
  %152 = vmatprep.subr.bf16.mxu0 0
  %153 = vmatpush1.bf16.msra.mxu0 0
  %154 = vmatprep.subr.bf16.mxu0 0
  %155 = vmatpush1.bf16.msra.mxu0 0
  %156 = vmatprep.subr.bf16.mxu0 0
  %157 = vmatpush1.bf16.msra.mxu0 0
  %158 = vmatprep.subr.bf16.mxu0 %v128
  %159 = vmatpush1.bf16.msra.mxu0 %v127
  %160 = vmatprep.subr.bf16.mxu0 %v126
  %161 = vmatpush1.bf16.msra.mxu0 %v125
  %162 = vmatprep.subr.bf16.mxu0 0
  %163 = vmatpush2.bf16.msra.mxu0 0
  %164 = vmatprep.subr.bf16.mxu0 0
  %165 = vmatpush2.bf16.msra.mxu0 0
  %166 = vmatprep.subr.bf16.mxu0 0
  %167 = vmatpush2.bf16.msra.mxu0 0
  %168 = vmatprep.subr.bf16.mxu0 0
  %169 = vmatpush2.bf16.msra.mxu0 0
  %170 = vmatprep.subr.bf16.mxu0 0
  %171 = vmatpush2.bf16.msra.mxu0 0
  %172 = vmatprep.subr.bf16.mxu0 0
  %173 = vmatpush2.bf16.msra.mxu0 0
  %174 = vmatprep.subr.bf16.mxu0 0
  %175 = vmatpush2.bf16.msra.mxu0 0
  %176 = vmatprep.subr.bf16.mxu0 0
  %177 = vmatpush2.bf16.msra.mxu0 0
  %178 = vmatprep.mubr.bf16.mxu0 0
  %179 = vmatmul.mubr.bf16.gmra.mxu0 %v135
  %v180 = vpop.f32.mrf.mxu0
  %v181 = vadd.f32 %v86, %v180
  %v182 = vpop.f32.mrf.mxu0
  %v183 = vadd.f32 %v90, %v182
  %v184 = vpop.f32.mrf.mxu0
  %v185 = vadd.f32 %v86, %v184
  %v186 = vpop.f32.mrf.mxu0
  %v187 = vadd.f32 %v90, %v186
  %188 = vmatprep.mubr.bf16.mxu0 0
  %189 = vmatmul.mubr.bf16.gmra.mxu0 %v138
  %v190 = vpop.f32.mrf.mxu0
  %v191 = vadd.f32 %v86, %v190
  %v192 = vpop.f32.mrf.mxu0
  %v193 = vadd.f32 %v90, %v192
  %v194 = vpop.f32.mrf.mxu0
  %v195 = vadd.f32 %v86, %v194
  %v196 = vpop.f32.mrf.mxu0
  %v197 = vadd.f32 %v90, %v196
  %198 = vmatprep.mubr.bf16.mxu0 0
  %199 = vmatmul.mubr.bf16.gmra.mxu0 %v141
  %v200 = vpop.f32.mrf.mxu0
  %v201 = vadd.f32 %v86, %v200
  %v202 = vpop.f32.mrf.mxu0
  %v203 = vadd.f32 %v90, %v202
  %v204 = vpop.f32.mrf.mxu0
  %v205 = vadd.f32 %v86, %v204
  %v206 = vpop.f32.mrf.mxu0
  %v207 = vadd.f32 %v90, %v206
  %208 = vmatprep.mubr.bf16.mxu0 0
  %209 = vmatmul.mubr.bf16.gmra.mxu0 %v144
  %v210 = vpop.f32.mrf.mxu0
  %v211 = vadd.f32 %v86, %v210
  %v212 = vpop.f32.mrf.mxu0
  %v213 = vadd.f32 %v90, %v212
  %v214 = vpop.f32.mrf.mxu0
  %v215 = vadd.f32 %v86, %v214
  %v216 = vpop.f32.mrf.mxu0
  %v217 = vadd.f32 %v90, %v216
  %218 = vdwg.mxu0
  %219 = vst [vmem:[#allocation2] sm:$0xff] %v181
  %220 = vst [vmem:[#allocation2 + $0x8] sm:$0xff] %v183
  %221 = vst [vmem:[#allocation2 + $0x10] sm:$0xff] %v185
  %222 = vst [vmem:[#allocation2 + $0x18] sm:$0xff] %v187
  %223 = vst [vmem:[#allocation2 + $0x20] sm:$0xff] %v191
  %224 = vst [vmem:[#allocation2 + $0x28] sm:$0xff] %v193
  %225 = vst [vmem:[#allocation2 + $0x30] sm:$0xff] %v195
  %226 = vst [vmem:[#allocation2 + $0x38] sm:$0xff] %v197
  %227 = vst [vmem:[#allocation2 + $0x40] sm:$0xff] %v201
  %228 = vst [vmem:[#allocation2 + $0x48] sm:$0xff] %v203
  %229 = vst [vmem:[#allocation2 + $0x50] sm:$0xff] %v205
  %230 = vst [vmem:[#allocation2 + $0x58] sm:$0xff] %v207
  %231 = vst [vmem:[#allocation2 + $0x60] sm:$0xff] %v211
  %232 = vst [vmem:[#allocation2 + $0x68] sm:$0xff] %v213
  %233 = vst [vmem:[#allocation2 + $0x70] sm:$0xff] %v215
  %234 = vst [vmem:[#allocation2 + $0x78] sm:$0xff] %v217
  %v235 = vld [vmem:[#allocation2] sm:$0xff]
  %s236 = scalar_lea.vmem [#allocation2], 112
  %v237 = vld [vmem:[%s236 + $0x8] sm:$0xff]
  %v238 = vld [vmem:[%s2] sm:$0xff]
  %v239 = vld [vmem:[%s2 + $0x8] sm:$0xff]
  %v240 = vld [vmem:[%s2 + $0x10] sm:$0xff]
  %v241 = vld [vmem:[%s2 + $0x18] sm:$0xff]
  %v242 = vld [vmem:[%s2 + $0x20] sm:$0xff]
  %v243 = vld [vmem:[%s2 + $0x28] sm:$0xff]
  %v244 = vld [vmem:[%s2 + $0x30] sm:$0xff]
  %v245 = vld [vmem:[%s2 + $0x38] sm:$0xff]
  %v254 = vunpack.c.l.b16 %v238
  %v255 = vunpack.c.h.b16 %v238
  %v256 = vunpack.c.l.b16 %v239
  %v257 = vunpack.c.h.b16 %v239
  %v258 = vunpack.c.l.b16 %v240
  %v259 = vunpack.c.h.b16 %v240
  %v260 = vunpack.c.l.b16 %v241
  %v261 = vunpack.c.h.b16 %v241
  %v262 = vunpack.c.l.b16 %v242
  %v263 = vunpack.c.h.b16 %v242
  %v264 = vunpack.c.l.b16 %v243
  %v265 = vunpack.c.h.b16 %v243
  %v266 = vunpack.c.l.b16 %v244
  %v267 = vunpack.c.h.b16 %v244
  %v268 = vunpack.c.l.b16 %v245
  %v269 = vunpack.c.h.b16 %v245
  %v270 = vpack.c.b16 %v256, %v254
  %v271 = vpack.c.b16 %v257, %v255
  %v272 = vpack.c.b16 %v260, %v258
  %v273 = vpack.c.b16 %v261, %v259
  %v274 = vpack.c.b16 %v264, %v262
  %v275 = vpack.c.b16 %v265, %v263
  %v276 = vpack.c.b16 %v268, %v266
  %v277 = vpack.c.b16 %v269, %v267
  %vm286 = vcmask 523264
  %v288 = vsel %vm286, 0, 0
  %290 = vmatprep.subr.bf16.mxu0 0
  %291 = vmatpush1.bf16.msra.mxu0 0
  %292 = vmatprep.subr.bf16.mxu0 0
  %293 = vmatpush1.bf16.msra.mxu0 0
  %294 = vmatprep.subr.bf16.mxu0 0
  %295 = vmatpush1.bf16.msra.mxu0 0
  %296 = vmatprep.subr.bf16.mxu0 0
  %297 = vmatpush1.bf16.msra.mxu0 0
  %298 = vmatprep.subr.bf16.mxu0 %v277
  %299 = vmatpush1.bf16.msra.mxu0 %v276
  %300 = vmatprep.subr.bf16.mxu0 %v275
  %301 = vmatpush1.bf16.msra.mxu0 %v274
  %302 = vmatprep.subr.bf16.mxu0 %v273
  %303 = vmatpush1.bf16.msra.mxu0 %v272
  %304 = vmatprep.subr.bf16.mxu0 %v271
  %305 = vmatpush1.bf16.msra.mxu0 %v270
  %306 = vmatprep.subr.bf16.mxu0 0
  %307 = vmatpush2.bf16.msra.mxu0 0
  %308 = vmatprep.subr.bf16.mxu0 0
  %309 = vmatpush2.bf16.msra.mxu0 0
  %310 = vmatprep.subr.bf16.mxu0 0
  %311 = vmatpush2.bf16.msra.mxu0 0
  %312 = vmatprep.subr.bf16.mxu0 0
  %313 = vmatpush2.bf16.msra.mxu0 0
  %314 = vmatprep.subr.bf16.mxu0 0
  %315 = vmatpush2.bf16.msra.mxu0 0
  %316 = vmatprep.subr.bf16.mxu0 0
  %317 = vmatpush2.bf16.msra.mxu0 0
  %318 = vmatprep.subr.bf16.mxu0 0
  %319 = vmatpush2.bf16.msra.mxu0 0
  %320 = vmatprep.subr.bf16.mxu0 0
  %321 = vmatpush2.bf16.msra.mxu0 0
  %322 = vmatprep.mubr.bf16.mxu0 0
  %323 = vmatmul.mubr.bf16.gmra.mxu0 %v288
  %v324 = vpop.f32.mrf.mxu0
  %v325 = vadd.f32 0.0, %v324
  %v326 = vpop.f32.mrf.mxu0
  %v327 = vadd.f32 0.0, %v326
  %v328 = vpop.f32.mrf.mxu0
  %v329 = vpop.f32.mrf.mxu0
  %330 = vdwg.mxu0
  %v331 = vadd.f32 %v235, %v325
  %v332 = vadd.f32 %v237, %v327
  %v333 = vtanh.pop %v331
  %v334 = vtanh.pop %v332
  %v335 = vmul.f32 %v333, %v65
  %v336 = vmul.f32 %v334, %v66
  %v337 = vadd.f32 %v335, %v67
  %v338 = vadd.f32 %v336, %v68
  %340 = vrot.lane.b32.xlu0 %v338, 32
  %v341 = vpop.permute.xlu0 %340
  %v343 = vsel %vm133, %v337, %v341
  %345 = vrot.lane.b32.xlu0 %v337, 96
  %v346 = vpop.permute.xlu0 %345
  %v348 = vsel %vm133, %v346, %v338
  %349 = vrot.lane.b32.xlu0 %v337, 64
  %v350 = vpop.permute.xlu0 %349
  %352 = vrot.lane.b32.xlu0 %v338, 96
  %v353 = vpop.permute.xlu0 %352
  %v355 = vsel %vm133, %v350, %v353
  %356 = vrot.lane.b32.xlu0 %v337, 32
  %v357 = vpop.permute.xlu0 %356
  %359 = vrot.lane.b32.xlu0 %v338, 64
  %v360 = vpop.permute.xlu0 %359
  %v362 = vsel %vm133, %v357, %v360
  %v363 = vmul.f32 %v348, 0.0
  %v364 = vmul.f32 %v343, %v355
  %v365 = vadd.f32 %v363, %v364
  %v366 = vtanh.pop %v365
  %v367 = vmul.f32 %v362, %v366
  %v368 = vpack.c.bf16 %v367, %v367
  %vm369 = vcmask 257024
  %370 = vst.msk [vmem:[#allocation3] sm:$0xf] %vm369, %v368
  %v372 = vunpack.c.l.b16 %v368
  %v373 = vpack.c.b16 %v372, %v372
  %374 = vrot.lane.b32.xlu0 %v373, 96
  %v375 = vpop.permute.xlu0 %374
  %s377 = scalar_lea.vmem [#allocation4], 28
  %378 = vst.msk [vmem:[%s377] sm:$0xf] %vm369, %v375
  %s379 = scalar_lea.vmem [#allocation2], 16
  %v380 = vld [vmem:[%s379] sm:$0xff]
  %s381 = scalar_lea.vmem [#allocation2], 96
  %v382 = vld [vmem:[%s381 + $0x8] sm:$0xff]
  %v383 = vld [vmem:[%s2] sm:$0xff]
  %v384 = vld [vmem:[%s2 + $0x8] sm:$0xff]
  %v385 = vld [vmem:[%s2 + $0x10] sm:$0xff]
  %v386 = vld [vmem:[%s2 + $0x18] sm:$0xff]
  %v387 = vld [vmem:[%s2 + $0x20] sm:$0xff]
  %v388 = vld [vmem:[%s2 + $0x28] sm:$0xff]
  %v389 = vld [vmem:[%s2 + $0x30] sm:$0xff]
  %v390 = vld [vmem:[%s2 + $0x38] sm:$0xff]
  %v399 = vunpack.c.l.b16 %v383
  %v400 = vunpack.c.h.b16 %v383
  %v401 = vunpack.c.l.b16 %v384
  %v402 = vunpack.c.h.b16 %v384
  %v403 = vunpack.c.l.b16 %v385
  %v404 = vunpack.c.h.b16 %v385
  %v405 = vunpack.c.l.b16 %v386
  %v406 = vunpack.c.h.b16 %v386
  %v407 = vunpack.c.l.b16 %v387
  %v408 = vunpack.c.h.b16 %v387
  %v409 = vunpack.c.l.b16 %v388
  %v410 = vunpack.c.h.b16 %v388
  %v411 = vunpack.c.l.b16 %v389
  %v412 = vunpack.c.h.b16 %v389
  %v413 = vunpack.c.l.b16 %v390
  %v414 = vunpack.c.h.b16 %v390
  %v415 = vpack.c.b16 %v401, %v399
  %v416 = vpack.c.b16 %v402, %v400
  %v417 = vpack.c.b16 %v405, %v403
  %v418 = vpack.c.b16 %v406, %v404
  %v419 = vpack.c.b16 %v409, %v407
  %v420 = vpack.c.b16 %v410, %v408
  %v421 = vpack.c.b16 %v413, %v411
  %v422 = vpack.c.b16 %v414, %v412
  %v432 = vsel %vm286, %v368, 0
  %434 = vmatprep.subr.bf16.mxu0 0
  %435 = vmatpush1.bf16.msra.mxu0 0
  %436 = vmatprep.subr.bf16.mxu0 0
  %437 = vmatpush1.bf16.msra.mxu0 0
  %438 = vmatprep.subr.bf16.mxu0 0
  %439 = vmatpush1.bf16.msra.mxu0 0
  %440 = vmatprep.subr.bf16.mxu0 0
  %441 = vmatpush1.bf16.msra.mxu0 0
  %442 = vmatprep.subr.bf16.mxu0 %v422
  %443 = vmatpush1.bf16.msra.mxu0 %v421
  %444 = vmatprep.subr.bf16.mxu0 %v420
  %445 = vmatpush1.bf16.msra.mxu0 %v419
  %446 = vmatprep.subr.bf16.mxu0 %v418
  %447 = vmatpush1.bf16.msra.mxu0 %v417
  %448 = vmatprep.subr.bf16.mxu0 %v416
  %449 = vmatpush1.bf16.msra.mxu0 %v415
  %450 = vmatprep.subr.bf16.mxu0 0
  %451 = vmatpush2.bf16.msra.mxu0 0
  %452 = vmatprep.subr.bf16.mxu0 0
  %453 = vmatpush2.bf16.msra.mxu0 0
  %454 = vmatprep.subr.bf16.mxu0 0
  %455 = vmatpush2.bf16.msra.mxu0 0
  %456 = vmatprep.subr.bf16.mxu0 0
  %457 = vmatpush2.bf16.msra.mxu0 0
  %458 = vmatprep.subr.bf16.mxu0 0
  %459 = vmatpush2.bf16.msra.mxu0 0
  %460 = vmatprep.subr.bf16.mxu0 0
  %461 = vmatpush2.bf16.msra.mxu0 0
  %462 = vmatprep.subr.bf16.mxu0 0
  %463 = vmatpush2.bf16.msra.mxu0 0
  %464 = vmatprep.subr.bf16.mxu0 0
  %465 = vmatpush2.bf16.msra.mxu0 0
  %466 = vmatprep.mubr.bf16.mxu0 0
  %467 = vmatmul.mubr.bf16.gmra.mxu0 %v432
  %v468 = vpop.f32.mrf.mxu0
  %v469 = vadd.f32 0.0, %v468
  %v470 = vpop.f32.mrf.mxu0
  %v471 = vadd.f32 0.0, %v470
  %v472 = vpop.f32.mrf.mxu0
  %v473 = vpop.f32.mrf.mxu0
  %474 = vdwg.mxu0
  %v475 = vadd.f32 %v380, %v469
  %v476 = vadd.f32 %v382, %v471
  %v477 = vtanh.pop %v475
  %v478 = vtanh.pop %v476
  %v479 = vmul.f32 %v477, %v65
  %v480 = vmul.f32 %v478, %v66
  %v481 = vadd.f32 %v479, %v67
  %v482 = vadd.f32 %v480, %v68
  %484 = vrot.lane.b32.xlu0 %v482, 32
  %v485 = vpop.permute.xlu0 %484
  %v487 = vsel %vm133, %v481, %v485
  %489 = vrot.lane.b32.xlu0 %v481, 96
  %v490 = vpop.permute.xlu0 %489
  %v492 = vsel %vm133, %v490, %v482
  %493 = vrot.lane.b32.xlu0 %v481, 64
  %v494 = vpop.permute.xlu0 %493
  %496 = vrot.lane.b32.xlu0 %v482, 96
  %v497 = vpop.permute.xlu0 %496
  %v499 = vsel %vm133, %v494, %v497
  %500 = vrot.lane.b32.xlu0 %v481, 32
  %v501 = vpop.permute.xlu0 %500
  %503 = vrot.lane.b32.xlu0 %v482, 64
  %v504 = vpop.permute.xlu0 %503
  %v506 = vsel %vm133, %v501, %v504
  %v507 = vmul.f32 %v492, %v365
  %v508 = vmul.f32 %v487, %v499
  %v509 = vadd.f32 %v507, %v508
  %v510 = vtanh.pop %v509
  %v511 = vmul.f32 %v506, %v510
  %v512 = vpack.c.bf16 %v511, %v511
  %s513 = scalar_lea.vmem [#allocation3], 4
  %514 = vst.msk [vmem:[%s513] sm:$0xf] %vm369, %v512
  %v516 = vunpack.c.l.b16 %v512
  %v517 = vpack.c.b16 %v516, %v516
  %518 = vrot.lane.b32.xlu0 %v517, 96
  %v519 = vpop.permute.xlu0 %518
  %s521 = scalar_lea.vmem [#allocation4], 24
  %522 = vst.msk [vmem:[%s521] sm:$0xf] %vm369, %v519
  %s523 = scalar_lea.vmem [#allocation2], 32
  %v524 = vld [vmem:[%s523] sm:$0xff]
  %s525 = scalar_lea.vmem [#allocation2], 80
  %v526 = vld [vmem:[%s525 + $0x8] sm:$0xff]
  %v527 = vld [vmem:[%s2] sm:$0xff]
  %v528 = vld [vmem:[%s2 + $0x8] sm:$0xff]
  %v529 = vld [vmem:[%s2 + $0x10] sm:$0xff]
  %v530 = vld [vmem:[%s2 + $0x18] sm:$0xff]
  %v531 = vld [vmem:[%s2 + $0x20] sm:$0xff]
  %v532 = vld [vmem:[%s2 + $0x28] sm:$0xff]
  %v533 = vld [vmem:[%s2 + $0x30] sm:$0xff]
  %v534 = vld [vmem:[%s2 + $0x38] sm:$0xff]
  %v543 = vunpack.c.l.b16 %v527
  %v544 = vunpack.c.h.b16 %v527
  %v545 = vunpack.c.l.b16 %v528
  %v546 = vunpack.c.h.b16 %v528
  %v547 = vunpack.c.l.b16 %v529
  %v548 = vunpack.c.h.b16 %v529
  %v549 = vunpack.c.l.b16 %v530
  %v550 = vunpack.c.h.b16 %v530
  %v551 = vunpack.c.l.b16 %v531
  %v552 = vunpack.c.h.b16 %v531
  %v553 = vunpack.c.l.b16 %v532
  %v554 = vunpack.c.h.b16 %v532
  %v555 = vunpack.c.l.b16 %v533
  %v556 = vunpack.c.h.b16 %v533
  %v557 = vunpack.c.l.b16 %v534
  %v558 = vunpack.c.h.b16 %v534
  %v559 = vpack.c.b16 %v545, %v543
  %v560 = vpack.c.b16 %v546, %v544
  %v561 = vpack.c.b16 %v549, %v547
  %v562 = vpack.c.b16 %v550, %v548
  %v563 = vpack.c.b16 %v553, %v551
  %v564 = vpack.c.b16 %v554, %v552
  %v565 = vpack.c.b16 %v557, %v555
  %v566 = vpack.c.b16 %v558, %v556
  %v576 = vsel %vm286, %v512, 0
  %578 = vmatprep.subr.bf16.mxu0 0
  %579 = vmatpush1.bf16.msra.mxu0 0
  %580 = vmatprep.subr.bf16.mxu0 0
  %581 = vmatpush1.bf16.msra.mxu0 0
  %582 = vmatprep.subr.bf16.mxu0 0
  %583 = vmatpush1.bf16.msra.mxu0 0
  %584 = vmatprep.subr.bf16.mxu0 0
  %585 = vmatpush1.bf16.msra.mxu0 0
  %586 = vmatprep.subr.bf16.mxu0 %v566
  %587 = vmatpush1.bf16.msra.mxu0 %v565
  %588 = vmatprep.subr.bf16.mxu0 %v564
  %589 = vmatpush1.bf16.msra.mxu0 %v563
  %590 = vmatprep.subr.bf16.mxu0 %v562
  %591 = vmatpush1.bf16.msra.mxu0 %v561
  %592 = vmatprep.subr.bf16.mxu0 %v560
  %593 = vmatpush1.bf16.msra.mxu0 %v559
  %594 = vmatprep.subr.bf16.mxu0 0
  %595 = vmatpush2.bf16.msra.mxu0 0
  %596 = vmatprep.subr.bf16.mxu0 0
  %597 = vmatpush2.bf16.msra.mxu0 0
  %598 = vmatprep.subr.bf16.mxu0 0
  %599 = vmatpush2.bf16.msra.mxu0 0
  %600 = vmatprep.subr.bf16.mxu0 0
  %601 = vmatpush2.bf16.msra.mxu0 0
  %602 = vmatprep.subr.bf16.mxu0 0
  %603 = vmatpush2.bf16.msra.mxu0 0
  %604 = vmatprep.subr.bf16.mxu0 0
  %605 = vmatpush2.bf16.msra.mxu0 0
  %606 = vmatprep.subr.bf16.mxu0 0
  %607 = vmatpush2.bf16.msra.mxu0 0
  %608 = vmatprep.subr.bf16.mxu0 0
  %609 = vmatpush2.bf16.msra.mxu0 0
  %610 = vmatprep.mubr.bf16.mxu0 0
  %611 = vmatmul.mubr.bf16.gmra.mxu0 %v576
  %v612 = vpop.f32.mrf.mxu0
  %v613 = vadd.f32 0.0, %v612
  %v614 = vpop.f32.mrf.mxu0
  %v615 = vadd.f32 0.0, %v614
  %v616 = vpop.f32.mrf.mxu0
  %v617 = vpop.f32.mrf.mxu0
  %618 = vdwg.mxu0
  %v619 = vadd.f32 %v524, %v613
  %v620 = vadd.f32 %v526, %v615
  %v621 = vtanh.pop %v619
  %v622 = vtanh.pop %v620
  %v623 = vmul.f32 %v621, %v65
  %v624 = vmul.f32 %v622, %v66
  %v625 = vadd.f32 %v623, %v67
  %v626 = vadd.f32 %v624, %v68
  %628 = vrot.lane.b32.xlu0 %v626, 32
  %v629 = vpop.permute.xlu0 %628
  %v631 = vsel %vm133, %v625, %v629
  %633 = vrot.lane.b32.xlu0 %v625, 96
  %v634 = vpop.permute.xlu0 %633
  %v636 = vsel %vm133, %v634, %v626
  %637 = vrot.lane.b32.xlu0 %v625, 64
  %v638 = vpop.permute.xlu0 %637
  %640 = vrot.lane.b32.xlu0 %v626, 96
  %v641 = vpop.permute.xlu0 %640
  %v643 = vsel %vm133, %v638, %v641
  %644 = vrot.lane.b32.xlu0 %v625, 32
  %v645 = vpop.permute.xlu0 %644
  %647 = vrot.lane.b32.xlu0 %v626, 64
  %v648 = vpop.permute.xlu0 %647
  %v650 = vsel %vm133, %v645, %v648
  %v651 = vmul.f32 %v636, %v509
  %v652 = vmul.f32 %v631, %v643
  %v653 = vadd.f32 %v651, %v652
  %v654 = vtanh.pop %v653
  %v655 = vmul.f32 %v650, %v654
  %v656 = vpack.c.bf16 %v655, %v655
  %s657 = scalar_lea.vmem [#allocation3], 8
  %658 = vst.msk [vmem:[%s657] sm:$0xf] %vm369, %v656
  %v660 = vunpack.c.l.b16 %v656
  %v661 = vpack.c.b16 %v660, %v660
  %662 = vrot.lane.b32.xlu0 %v661, 96
  %v663 = vpop.permute.xlu0 %662
  %s665 = scalar_lea.vmem [#allocation4], 20
  %666 = vst.msk [vmem:[%s665] sm:$0xf] %vm369, %v663
  %s667 = scalar_lea.vmem [#allocation2], 48
  %v668 = vld [vmem:[%s667] sm:$0xff]
  %s669 = scalar_lea.vmem [#allocation2], 64
  %v670 = vld [vmem:[%s669 + $0x8] sm:$0xff]
  %v671 = vld [vmem:[%s2] sm:$0xff]
  %v672 = vld [vmem:[%s2 + $0x8] sm:$0xff]
  %v673 = vld [vmem:[%s2 + $0x10] sm:$0xff]
  %v674 = vld [vmem:[%s2 + $0x18] sm:$0xff]
  %v675 = vld [vmem:[%s2 + $0x20] sm:$0xff]
  %v676 = vld [vmem:[%s2 + $0x28] sm:$0xff]
  %v677 = vld [vmem:[%s2 + $0x30] sm:$0xff]
  %v678 = vld [vmem:[%s2 + $0x38] sm:$0xff]
  %v687 = vunpack.c.l.b16 %v671
  %v688 = vunpack.c.h.b16 %v671
  %v689 = vunpack.c.l.b16 %v672
  %v690 = vunpack.c.h.b16 %v672
  %v691 = vunpack.c.l.b16 %v673
  %v692 = vunpack.c.h.b16 %v673
  %v693 = vunpack.c.l.b16 %v674
  %v694 = vunpack.c.h.b16 %v674
  %v695 = vunpack.c.l.b16 %v675
  %v696 = vunpack.c.h.b16 %v675
  %v697 = vunpack.c.l.b16 %v676
  %v698 = vunpack.c.h.b16 %v676
  %v699 = vunpack.c.l.b16 %v677
  %v700 = vunpack.c.h.b16 %v677
  %v701 = vunpack.c.l.b16 %v678
  %v702 = vunpack.c.h.b16 %v678
  %v703 = vpack.c.b16 %v689, %v687
  %v704 = vpack.c.b16 %v690, %v688
  %v705 = vpack.c.b16 %v693, %v691
  %v706 = vpack.c.b16 %v694, %v692
  %v707 = vpack.c.b16 %v697, %v695
  %v708 = vpack.c.b16 %v698, %v696
  %v709 = vpack.c.b16 %v701, %v699
  %v710 = vpack.c.b16 %v702, %v700
  %v720 = vsel %vm286, %v656, 0
  %722 = vmatprep.subr.bf16.mxu0 0
  %723 = vmatpush1.bf16.msra.mxu0 0
  %724 = vmatprep.subr.bf16.mxu0 0
  %725 = vmatpush1.bf16.msra.mxu0 0
  %726 = vmatprep.subr.bf16.mxu0 0
  %727 = vmatpush1.bf16.msra.mxu0 0
  %728 = vmatprep.subr.bf16.mxu0 0
  %729 = vmatpush1.bf16.msra.mxu0 0
  %730 = vmatprep.subr.bf16.mxu0 %v710
  %731 = vmatpush1.bf16.msra.mxu0 %v709
  %732 = vmatprep.subr.bf16.mxu0 %v708
  %733 = vmatpush1.bf16.msra.mxu0 %v707
  %734 = vmatprep.subr.bf16.mxu0 %v706
  %735 = vmatpush1.bf16.msra.mxu0 %v705
  %736 = vmatprep.subr.bf16.mxu0 %v704
  %737 = vmatpush1.bf16.msra.mxu0 %v703
  %738 = vmatprep.subr.bf16.mxu0 0
  %739 = vmatpush2.bf16.msra.mxu0 0
  %740 = vmatprep.subr.bf16.mxu0 0
  %741 = vmatpush2.bf16.msra.mxu0 0
  %742 = vmatprep.subr.bf16.mxu0 0
  %743 = vmatpush2.bf16.msra.mxu0 0
  %744 = vmatprep.subr.bf16.mxu0 0
  %745 = vmatpush2.bf16.msra.mxu0 0
  %746 = vmatprep.subr.bf16.mxu0 0
  %747 = vmatpush2.bf16.msra.mxu0 0
  %748 = vmatprep.subr.bf16.mxu0 0
  %749 = vmatpush2.bf16.msra.mxu0 0
  %750 = vmatprep.subr.bf16.mxu0 0
  %751 = vmatpush2.bf16.msra.mxu0 0
  %752 = vmatprep.subr.bf16.mxu0 0
  %753 = vmatpush2.bf16.msra.mxu0 0
  %754 = vmatprep.mubr.bf16.mxu0 0
  %755 = vmatmul.mubr.bf16.gmra.mxu0 %v720
  %v756 = vpop.f32.mrf.mxu0
  %v757 = vadd.f32 0.0, %v756
  %v758 = vpop.f32.mrf.mxu0
  %v759 = vadd.f32 0.0, %v758
  %v760 = vpop.f32.mrf.mxu0
  %v761 = vpop.f32.mrf.mxu0
  %762 = vdwg.mxu0
  %v763 = vadd.f32 %v668, %v757
  %v764 = vadd.f32 %v670, %v759
  %v765 = vtanh.pop %v763
  %v766 = vtanh.pop %v764
  %v767 = vmul.f32 %v765, %v65
  %v768 = vmul.f32 %v766, %v66
  %v769 = vadd.f32 %v767, %v67
  %v770 = vadd.f32 %v768, %v68
  %772 = vrot.lane.b32.xlu0 %v770, 32
  %v773 = vpop.permute.xlu0 %772
  %v775 = vsel %vm133, %v769, %v773
  %777 = vrot.lane.b32.xlu0 %v769, 96
  %v778 = vpop.permute.xlu0 %777
  %v780 = vsel %vm133, %v778, %v770
  %781 = vrot.lane.b32.xlu0 %v769, 64
  %v782 = vpop.permute.xlu0 %781
  %784 = vrot.lane.b32.xlu0 %v770, 96
  %v785 = vpop.permute.xlu0 %784
  %v787 = vsel %vm133, %v782, %v785
  %788 = vrot.lane.b32.xlu0 %v769, 32
  %v789 = vpop.permute.xlu0 %788
  %791 = vrot.lane.b32.xlu0 %v770, 64
  %v792 = vpop.permute.xlu0 %791
  %v794 = vsel %vm133, %v789, %v792
  %v795 = vmul.f32 %v780, %v653
  %v796 = vmul.f32 %v775, %v787
  %v797 = vadd.f32 %v795, %v796
  %v798 = vtanh.pop %v797
  %v799 = vmul.f32 %v794, %v798
  %v800 = vpack.c.bf16 %v799, %v799
  %s801 = scalar_lea.vmem [#allocation3], 12
  %802 = vst.msk [vmem:[%s801] sm:$0xf] %vm369, %v800
  %v804 = vunpack.c.l.b16 %v800
  %v805 = vpack.c.b16 %v804, %v804
  %806 = vrot.lane.b32.xlu0 %v805, 96
  %v807 = vpop.permute.xlu0 %806
  %s809 = scalar_lea.vmem [#allocation4], 16
  %810 = vst.msk [vmem:[%s809] sm:$0xf] %vm369, %v807
  %v811 = vld [vmem:[%s669] sm:$0xff]
  %v812 = vld [vmem:[%s667 + $0x8] sm:$0xff]
  %v813 = vld [vmem:[%s2] sm:$0xff]
  %v814 = vld [vmem:[%s2 + $0x8] sm:$0xff]
  %v815 = vld [vmem:[%s2 + $0x10] sm:$0xff]
  %v816 = vld [vmem:[%s2 + $0x18] sm:$0xff]
  %v817 = vld [vmem:[%s2 + $0x20] sm:$0xff]
  %v818 = vld [vmem:[%s2 + $0x28] sm:$0xff]
  %v819 = vld [vmem:[%s2 + $0x30] sm:$0xff]
  %v820 = vld [vmem:[%s2 + $0x38] sm:$0xff]
  %v829 = vunpack.c.l.b16 %v813
  %v830 = vunpack.c.h.b16 %v813
  %v831 = vunpack.c.l.b16 %v814
  %v832 = vunpack.c.h.b16 %v814
  %v833 = vunpack.c.l.b16 %v815
  %v834 = vunpack.c.h.b16 %v815
  %v835 = vunpack.c.l.b16 %v816
  %v836 = vunpack.c.h.b16 %v816
  %v837 = vunpack.c.l.b16 %v817
  %v838 = vunpack.c.h.b16 %v817
  %v839 = vunpack.c.l.b16 %v818
  %v840 = vunpack.c.h.b16 %v818
  %v841 = vunpack.c.l.b16 %v819
  %v842 = vunpack.c.h.b16 %v819
  %v843 = vunpack.c.l.b16 %v820
  %v844 = vunpack.c.h.b16 %v820
  %v845 = vpack.c.b16 %v831, %v829
  %v846 = vpack.c.b16 %v832, %v830
  %v847 = vpack.c.b16 %v835, %v833
  %v848 = vpack.c.b16 %v836, %v834
  %v849 = vpack.c.b16 %v839, %v837
  %v850 = vpack.c.b16 %v840, %v838
  %v851 = vpack.c.b16 %v843, %v841
  %v852 = vpack.c.b16 %v844, %v842
  %v862 = vsel %vm286, %v800, 0
  %864 = vmatprep.subr.bf16.mxu0 0
  %865 = vmatpush1.bf16.msra.mxu0 0
  %866 = vmatprep.subr.bf16.mxu0 0
  %867 = vmatpush1.bf16.msra.mxu0 0
  %868 = vmatprep.subr.bf16.mxu0 0
  %869 = vmatpush1.bf16.msra.mxu0 0
  %870 = vmatprep.subr.bf16.mxu0 0
  %871 = vmatpush1.bf16.msra.mxu0 0
  %872 = vmatprep.subr.bf16.mxu0 %v852
  %873 = vmatpush1.bf16.msra.mxu0 %v851
  %874 = vmatprep.subr.bf16.mxu0 %v850
  %875 = vmatpush1.bf16.msra.mxu0 %v849
  %876 = vmatprep.subr.bf16.mxu0 %v848
  %877 = vmatpush1.bf16.msra.mxu0 %v847
  %878 = vmatprep.subr.bf16.mxu0 %v846
  %879 = vmatpush1.bf16.msra.mxu0 %v845
  %880 = vmatprep.subr.bf16.mxu0 0
  %881 = vmatpush2.bf16.msra.mxu0 0
  %882 = vmatprep.subr.bf16.mxu0 0
  %883 = vmatpush2.bf16.msra.mxu0 0
  %884 = vmatprep.subr.bf16.mxu0 0
  %885 = vmatpush2.bf16.msra.mxu0 0
  %886 = vmatprep.subr.bf16.mxu0 0
  %887 = vmatpush2.bf16.msra.mxu0 0
  %888 = vmatprep.subr.bf16.mxu0 0
  %889 = vmatpush2.bf16.msra.mxu0 0
  %890 = vmatprep.subr.bf16.mxu0 0
  %891 = vmatpush2.bf16.msra.mxu0 0
  %892 = vmatprep.subr.bf16.mxu0 0
  %893 = vmatpush2.bf16.msra.mxu0 0
  %894 = vmatprep.subr.bf16.mxu0 0
  %895 = vmatpush2.bf16.msra.mxu0 0
  %896 = vmatprep.mubr.bf16.mxu0 0
  %897 = vmatmul.mubr.bf16.gmra.mxu0 %v862
  %v898 = vpop.f32.mrf.mxu0
  %v899 = vadd.f32 0.0, %v898
  %v900 = vpop.f32.mrf.mxu0
  %v901 = vadd.f32 0.0, %v900
  %v902 = vpop.f32.mrf.mxu0
  %v903 = vpop.f32.mrf.mxu0
  %904 = vdwg.mxu0
  %v905 = vadd.f32 %v811, %v899
  %v906 = vadd.f32 %v812, %v901
  %v907 = vtanh.pop %v905
  %v908 = vtanh.pop %v906
  %v909 = vmul.f32 %v907, %v65
  %v910 = vmul.f32 %v908, %v66
  %v911 = vadd.f32 %v909, %v67
  %v912 = vadd.f32 %v910, %v68
  %914 = vrot.lane.b32.xlu0 %v912, 32
  %v915 = vpop.permute.xlu0 %914
  %v917 = vsel %vm133, %v911, %v915
  %919 = vrot.lane.b32.xlu0 %v911, 96
  %v920 = vpop.permute.xlu0 %919
  %v922 = vsel %vm133, %v920, %v912
  %923 = vrot.lane.b32.xlu0 %v911, 64
  %v924 = vpop.permute.xlu0 %923
  %926 = vrot.lane.b32.xlu0 %v912, 96
  %v927 = vpop.permute.xlu0 %926
  %v929 = vsel %vm133, %v924, %v927
  %930 = vrot.lane.b32.xlu0 %v911, 32
  %v931 = vpop.permute.xlu0 %930
  %933 = vrot.lane.b32.xlu0 %v912, 64
  %v934 = vpop.permute.xlu0 %933
  %v936 = vsel %vm133, %v931, %v934
  %v937 = vmul.f32 %v922, %v797
  %v938 = vmul.f32 %v917, %v929
  %v939 = vadd.f32 %v937, %v938
  %v940 = vtanh.pop %v939
  %v941 = vmul.f32 %v936, %v940
  %v942 = vpack.c.bf16 %v941, %v941
  %s943 = scalar_lea.vmem [#allocation3], 16
  %944 = vst.msk [vmem:[%s943] sm:$0xf] %vm369, %v942
  %v946 = vunpack.c.l.b16 %v942
  %v947 = vpack.c.b16 %v946, %v946
  %948 = vrot.lane.b32.xlu0 %v947, 96
  %v949 = vpop.permute.xlu0 %948
  %s951 = scalar_lea.vmem [#allocation4], 12
  %952 = vst.msk [vmem:[%s951] sm:$0xf] %vm369, %v949
  %v953 = vld [vmem:[%s525] sm:$0xff]
  %v954 = vld [vmem:[%s523 + $0x8] sm:$0xff]
  %v955 = vld [vmem:[%s2] sm:$0xff]
  %v956 = vld [vmem:[%s2 + $0x8] sm:$0xff]
  %v957 = vld [vmem:[%s2 + $0x10] sm:$0xff]
  %v958 = vld [vmem:[%s2 + $0x18] sm:$0xff]
  %v959 = vld [vmem:[%s2 + $0x20] sm:$0xff]
  %v960 = vld [vmem:[%s2 + $0x28] sm:$0xff]
  %v961 = vld [vmem:[%s2 + $0x30] sm:$0xff]
  %v962 = vld [vmem:[%s2 + $0x38] sm:$0xff]
  %v971 = vunpack.c.l.b16 %v955
  %v972 = vunpack.c.h.b16 %v955
  %v973 = vunpack.c.l.b16 %v956
  %v974 = vunpack.c.h.b16 %v956
  %v975 = vunpack.c.l.b16 %v957
  %v976 = vunpack.c.h.b16 %v957
  %v977 = vunpack.c.l.b16 %v958
  %v978 = vunpack.c.h.b16 %v958
  %v979 = vunpack.c.l.b16 %v959
  %v980 = vunpack.c.h.b16 %v959
  %v981 = vunpack.c.l.b16 %v960
  %v982 = vunpack.c.h.b16 %v960
  %v983 = vunpack.c.l.b16 %v961
  %v984 = vunpack.c.h.b16 %v961
  %v985 = vunpack.c.l.b16 %v962
  %v986 = vunpack.c.h.b16 %v962
  %v987 = vpack.c.b16 %v973, %v971
  %v988 = vpack.c.b16 %v974, %v972
  %v989 = vpack.c.b16 %v977, %v975
  %v990 = vpack.c.b16 %v978, %v976
  %v991 = vpack.c.b16 %v981, %v979
  %v992 = vpack.c.b16 %v982, %v980
  %v993 = vpack.c.b16 %v985, %v983
  %v994 = vpack.c.b16 %v986, %v984
  %v1004 = vsel %vm286, %v942, 0
  %1006 = vmatprep.subr.bf16.mxu0 0
  %1007 = vmatpush1.bf16.msra.mxu0 0
  %1008 = vmatprep.subr.bf16.mxu0 0
  %1009 = vmatpush1.bf16.msra.mxu0 0
  %1010 = vmatprep.subr.bf16.mxu0 0
  %1011 = vmatpush1.bf16.msra.mxu0 0
  %1012 = vmatprep.subr.bf16.mxu0 0
  %1013 = vmatpush1.bf16.msra.mxu0 0
  %1014 = vmatprep.subr.bf16.mxu0 %v994
  %1015 = vmatpush1.bf16.msra.mxu0 %v993
  %1016 = vmatprep.subr.bf16.mxu0 %v992
  %1017 = vmatpush1.bf16.msra.mxu0 %v991
  %1018 = vmatprep.subr.bf16.mxu0 %v990
  %1019 = vmatpush1.bf16.msra.mxu0 %v989
  %1020 = vmatprep.subr.bf16.mxu0 %v988
  %1021 = vmatpush1.bf16.msra.mxu0 %v987
  %1022 = vmatprep.subr.bf16.mxu0 0
  %1023 = vmatpush2.bf16.msra.mxu0 0
  %1024 = vmatprep.subr.bf16.mxu0 0
  %1025 = vmatpush2.bf16.msra.mxu0 0
  %1026 = vmatprep.subr.bf16.mxu0 0
  %1027 = vmatpush2.bf16.msra.mxu0 0
  %1028 = vmatprep.subr.bf16.mxu0 0
  %1029 = vmatpush2.bf16.msra.mxu0 0
  %1030 = vmatprep.subr.bf16.mxu0 0
  %1031 = vmatpush2.bf16.msra.mxu0 0
  %1032 = vmatprep.subr.bf16.mxu0 0
  %1033 = vmatpush2.bf16.msra.mxu0 0
  %1034 = vmatprep.subr.bf16.mxu0 0
  %1035 = vmatpush2.bf16.msra.mxu0 0
  %1036 = vmatprep.subr.bf16.mxu0 0
  %1037 = vmatpush2.bf16.msra.mxu0 0
  %1038 = vmatprep.mubr.bf16.mxu0 0
  %1039 = vmatmul.mubr.bf16.gmra.mxu0 %v1004
  %v1040 = vpop.f32.mrf.mxu0
  %v1041 = vadd.f32 0.0, %v1040
  %v1042 = vpop.f32.mrf.mxu0
  %v1043 = vadd.f32 0.0, %v1042
  %v1044 = vpop.f32.mrf.mxu0
  %v1045 = vpop.f32.mrf.mxu0
  %1046 = vdwg.mxu0
  %v1047 = vadd.f32 %v953, %v1041
  %v1048 = vadd.f32 %v954, %v1043
  %v1049 = vtanh.pop %v1047
  %v1050 = vtanh.pop %v1048
  %v1051 = vmul.f32 %v1049, %v65
  %v1052 = vmul.f32 %v1050, %v66
  %v1053 = vadd.f32 %v1051, %v67
  %v1054 = vadd.f32 %v1052, %v68
  %1056 = vrot.lane.b32.xlu0 %v1054, 32
  %v1057 = vpop.permute.xlu0 %1056
  %v1059 = vsel %vm133, %v1053, %v1057
  %1061 = vrot.lane.b32.xlu0 %v1053, 96
  %v1062 = vpop.permute.xlu0 %1061
  %v1064 = vsel %vm133, %v1062, %v1054
  %1065 = vrot.lane.b32.xlu0 %v1053, 64
  %v1066 = vpop.permute.xlu0 %1065
  %1068 = vrot.lane.b32.xlu0 %v1054, 96
  %v1069 = vpop.permute.xlu0 %1068
  %v1071 = vsel %vm133, %v1066, %v1069
  %1072 = vrot.lane.b32.xlu0 %v1053, 32
  %v1073 = vpop.permute.xlu0 %1072
  %1075 = vrot.lane.b32.xlu0 %v1054, 64
  %v1076 = vpop.permute.xlu0 %1075
  %v1078 = vsel %vm133, %v1073, %v1076
  %v1079 = vmul.f32 %v1064, %v939
  %v1080 = vmul.f32 %v1059, %v1071
  %v1081 = vadd.f32 %v1079, %v1080
  %v1082 = vtanh.pop %v1081
  %v1083 = vmul.f32 %v1078, %v1082
  %v1084 = vpack.c.bf16 %v1083, %v1083
  %s1085 = scalar_lea.vmem [#allocation3], 20
  %1086 = vst.msk [vmem:[%s1085] sm:$0xf] %vm369, %v1084
  %v1088 = vunpack.c.l.b16 %v1084
  %v1089 = vpack.c.b16 %v1088, %v1088
  %1090 = vrot.lane.b32.xlu0 %v1089, 96
  %v1091 = vpop.permute.xlu0 %1090
  %s1093 = scalar_lea.vmem [#allocation4], 8
  %1094 = vst.msk [vmem:[%s1093] sm:$0xf] %vm369, %v1091
  %v1095 = vld [vmem:[%s381] sm:$0xff]
  %v1096 = vld [vmem:[%s379 + $0x8] sm:$0xff]
  %v1097 = vld [vmem:[%s2] sm:$0xff]
  %v1098 = vld [vmem:[%s2 + $0x8] sm:$0xff]
  %v1099 = vld [vmem:[%s2 + $0x10] sm:$0xff]
  %v1100 = vld [vmem:[%s2 + $0x18] sm:$0xff]
  %v1101 = vld [vmem:[%s2 + $0x20] sm:$0xff]
  %v1102 = vld [vmem:[%s2 + $0x28] sm:$0xff]
  %v1103 = vld [vmem:[%s2 + $0x30] sm:$0xff]
  %v1104 = vld [vmem:[%s2 + $0x38] sm:$0xff]
  %v1113 = vunpack.c.l.b16 %v1097
  %v1114 = vunpack.c.h.b16 %v1097
  %v1115 = vunpack.c.l.b16 %v1098
  %v1116 = vunpack.c.h.b16 %v1098
  %v1117 = vunpack.c.l.b16 %v1099
  %v1118 = vunpack.c.h.b16 %v1099
  %v1119 = vunpack.c.l.b16 %v1100
  %v1120 = vunpack.c.h.b16 %v1100
  %v1121 = vunpack.c.l.b16 %v1101
  %v1122 = vunpack.c.h.b16 %v1101
  %v1123 = vunpack.c.l.b16 %v1102
  %v1124 = vunpack.c.h.b16 %v1102
  %v1125 = vunpack.c.l.b16 %v1103
  %v1126 = vunpack.c.h.b16 %v1103
  %v1127 = vunpack.c.l.b16 %v1104
  %v1128 = vunpack.c.h.b16 %v1104
  %v1129 = vpack.c.b16 %v1115, %v1113
  %v1130 = vpack.c.b16 %v1116, %v1114
  %v1131 = vpack.c.b16 %v1119, %v1117
  %v1132 = vpack.c.b16 %v1120, %v1118
  %v1133 = vpack.c.b16 %v1123, %v1121
  %v1134 = vpack.c.b16 %v1124, %v1122
  %v1135 = vpack.c.b16 %v1127, %v1125
  %v1136 = vpack.c.b16 %v1128, %v1126
  %v1146 = vsel %vm286, %v1084, 0
  %1148 = vmatprep.subr.bf16.mxu0 0
  %1149 = vmatpush1.bf16.msra.mxu0 0
  %1150 = vmatprep.subr.bf16.mxu0 0
  %1151 = vmatpush1.bf16.msra.mxu0 0
  %1152 = vmatprep.subr.bf16.mxu0 0
  %1153 = vmatpush1.bf16.msra.mxu0 0
  %1154 = vmatprep.subr.bf16.mxu0 0
  %1155 = vmatpush1.bf16.msra.mxu0 0
  %1156 = vmatprep.subr.bf16.mxu0 %v1136
  %1157 = vmatpush1.bf16.msra.mxu0 %v1135
  %1158 = vmatprep.subr.bf16.mxu0 %v1134
  %1159 = vmatpush1.bf16.msra.mxu0 %v1133
  %1160 = vmatprep.subr.bf16.mxu0 %v1132
  %1161 = vmatpush1.bf16.msra.mxu0 %v1131
  %1162 = vmatprep.subr.bf16.mxu0 %v1130
  %1163 = vmatpush1.bf16.msra.mxu0 %v1129
  %1164 = vmatprep.subr.bf16.mxu0 0
  %1165 = vmatpush2.bf16.msra.mxu0 0
  %1166 = vmatprep.subr.bf16.mxu0 0
  %1167 = vmatpush2.bf16.msra.mxu0 0
  %1168 = vmatprep.subr.bf16.mxu0 0
  %1169 = vmatpush2.bf16.msra.mxu0 0
  %1170 = vmatprep.subr.bf16.mxu0 0
  %1171 = vmatpush2.bf16.msra.mxu0 0
  %1172 = vmatprep.subr.bf16.mxu0 0
  %1173 = vmatpush2.bf16.msra.mxu0 0
  %1174 = vmatprep.subr.bf16.mxu0 0
  %1175 = vmatpush2.bf16.msra.mxu0 0
  %1176 = vmatprep.subr.bf16.mxu0 0
  %1177 = vmatpush2.bf16.msra.mxu0 0
  %1178 = vmatprep.subr.bf16.mxu0 0
  %1179 = vmatpush2.bf16.msra.mxu0 0
  %1180 = vmatprep.mubr.bf16.mxu0 0
  %1181 = vmatmul.mubr.bf16.gmra.mxu0 %v1146
  %v1182 = vpop.f32.mrf.mxu0
  %v1183 = vadd.f32 0.0, %v1182
  %v1184 = vpop.f32.mrf.mxu0
  %v1185 = vadd.f32 0.0, %v1184
  %v1186 = vpop.f32.mrf.mxu0
  %v1187 = vpop.f32.mrf.mxu0
  %1188 = vdwg.mxu0
  %v1189 = vadd.f32 %v1095, %v1183
  %v1190 = vadd.f32 %v1096, %v1185
  %v1191 = vtanh.pop %v1189
  %v1192 = vtanh.pop %v1190
  %v1193 = vmul.f32 %v1191, %v65
  %v1194 = vmul.f32 %v1192, %v66
  %v1195 = vadd.f32 %v1193, %v67
  %v1196 = vadd.f32 %v1194, %v68
  %1198 = vrot.lane.b32.xlu0 %v1196, 32
  %v1199 = vpop.permute.xlu0 %1198
  %v1201 = vsel %vm133, %v1195, %v1199
  %1203 = vrot.lane.b32.xlu0 %v1195, 96
  %v1204 = vpop.permute.xlu0 %1203
  %v1206 = vsel %vm133, %v1204, %v1196
  %1207 = vrot.lane.b32.xlu0 %v1195, 64
  %v1208 = vpop.permute.xlu0 %1207
  %1210 = vrot.lane.b32.xlu0 %v1196, 96
  %v1211 = vpop.permute.xlu0 %1210
  %v1213 = vsel %vm133, %v1208, %v1211
  %1214 = vrot.lane.b32.xlu0 %v1195, 32
  %v1215 = vpop.permute.xlu0 %1214
  %1217 = vrot.lane.b32.xlu0 %v1196, 64
  %v1218 = vpop.permute.xlu0 %1217
  %v1220 = vsel %vm133, %v1215, %v1218
  %v1221 = vmul.f32 %v1206, %v1081
  %v1222 = vmul.f32 %v1201, %v1213
  %v1223 = vadd.f32 %v1221, %v1222
  %v1224 = vtanh.pop %v1223
  %v1225 = vmul.f32 %v1220, %v1224
  %v1226 = vpack.c.bf16 %v1225, %v1225
  %s1227 = scalar_lea.vmem [#allocation3], 24
  %1228 = vst.msk [vmem:[%s1227] sm:$0xf] %vm369, %v1226
  %v1230 = vunpack.c.l.b16 %v1226
  %v1231 = vpack.c.b16 %v1230, %v1230
  %1232 = vrot.lane.b32.xlu0 %v1231, 96
  %v1233 = vpop.permute.xlu0 %1232
  %s1235 = scalar_lea.vmem [#allocation4], 4
  %1236 = vst.msk [vmem:[%s1235] sm:$0xf] %vm369, %v1233
  %v1237 = vld [vmem:[%s236] sm:$0xff]
  %v1238 = vld [vmem:[#allocation2 + $0x8] sm:$0xff]
  %v1239 = vld [vmem:[%s2] sm:$0xff]
  %v1240 = vld [vmem:[%s2 + $0x8] sm:$0xff]
  %v1241 = vld [vmem:[%s2 + $0x10] sm:$0xff]
  %v1242 = vld [vmem:[%s2 + $0x18] sm:$0xff]
  %v1243 = vld [vmem:[%s2 + $0x20] sm:$0xff]
  %v1244 = vld [vmem:[%s2 + $0x28] sm:$0xff]
  %v1245 = vld [vmem:[%s2 + $0x30] sm:$0xff]
  %v1246 = vld [vmem:[%s2 + $0x38] sm:$0xff]
  %v1255 = vunpack.c.l.b16 %v1239
  %v1256 = vunpack.c.h.b16 %v1239
  %v1257 = vunpack.c.l.b16 %v1240
  %v1258 = vunpack.c.h.b16 %v1240
  %v1259 = vunpack.c.l.b16 %v1241
  %v1260 = vunpack.c.h.b16 %v1241
  %v1261 = vunpack.c.l.b16 %v1242
  %v1262 = vunpack.c.h.b16 %v1242
  %v1263 = vunpack.c.l.b16 %v1243
  %v1264 = vunpack.c.h.b16 %v1243
  %v1265 = vunpack.c.l.b16 %v1244
  %v1266 = vunpack.c.h.b16 %v1244
  %v1267 = vunpack.c.l.b16 %v1245
  %v1268 = vunpack.c.h.b16 %v1245
  %v1269 = vunpack.c.l.b16 %v1246
  %v1270 = vunpack.c.h.b16 %v1246
  %v1271 = vpack.c.b16 %v1257, %v1255
  %v1272 = vpack.c.b16 %v1258, %v1256
  %v1273 = vpack.c.b16 %v1261, %v1259
  %v1274 = vpack.c.b16 %v1262, %v1260
  %v1275 = vpack.c.b16 %v1265, %v1263
  %v1276 = vpack.c.b16 %v1266, %v1264
  %v1277 = vpack.c.b16 %v1269, %v1267
  %v1278 = vpack.c.b16 %v1270, %v1268
  %v1288 = vsel %vm286, %v1226, 0
  %1290 = vmatprep.subr.bf16.mxu0 0
  %1291 = vmatpush1.bf16.msra.mxu0 0
  %1292 = vmatprep.subr.bf16.mxu0 0
  %1293 = vmatpush1.bf16.msra.mxu0 0
  %1294 = vmatprep.subr.bf16.mxu0 0
  %1295 = vmatpush1.bf16.msra.mxu0 0
  %1296 = vmatprep.subr.bf16.mxu0 0
  %1297 = vmatpush1.bf16.msra.mxu0 0
  %1298 = vmatprep.subr.bf16.mxu0 %v1278
  %1299 = vmatpush1.bf16.msra.mxu0 %v1277
  %1300 = vmatprep.subr.bf16.mxu0 %v1276
  %1301 = vmatpush1.bf16.msra.mxu0 %v1275
  %1302 = vmatprep.subr.bf16.mxu0 %v1274
  %1303 = vmatpush1.bf16.msra.mxu0 %v1273
  %1304 = vmatprep.subr.bf16.mxu0 %v1272
  %1305 = vmatpush1.bf16.msra.mxu0 %v1271
  %1306 = vmatprep.subr.bf16.mxu0 0
  %1307 = vmatpush2.bf16.msra.mxu0 0
  %1308 = vmatprep.subr.bf16.mxu0 0
  %1309 = vmatpush2.bf16.msra.mxu0 0
  %1310 = vmatprep.subr.bf16.mxu0 0
  %1311 = vmatpush2.bf16.msra.mxu0 0
  %1312 = vmatprep.subr.bf16.mxu0 0
  %1313 = vmatpush2.bf16.msra.mxu0 0
  %1314 = vmatprep.subr.bf16.mxu0 0
  %1315 = vmatpush2.bf16.msra.mxu0 0
  %1316 = vmatprep.subr.bf16.mxu0 0
  %1317 = vmatpush2.bf16.msra.mxu0 0
  %1318 = vmatprep.subr.bf16.mxu0 0
  %1319 = vmatpush2.bf16.msra.mxu0 0
  %1320 = vmatprep.subr.bf16.mxu0 0
  %1321 = vmatpush2.bf16.msra.mxu0 0
  %1322 = vmatprep.mubr.bf16.mxu0 0
  %1323 = vmatmul.mubr.bf16.gmra.mxu0 %v1288
  %v1324 = vpop.f32.mrf.mxu0
  %v1325 = vadd.f32 0.0, %v1324
  %v1326 = vpop.f32.mrf.mxu0
  %v1327 = vadd.f32 0.0, %v1326
  %v1328 = vpop.f32.mrf.mxu0
  %v1329 = vpop.f32.mrf.mxu0
  %1330 = vdwg.mxu0
  %v1331 = vadd.f32 %v1237, %v1325
  %v1332 = vadd.f32 %v1238, %v1327
  %v1333 = vtanh.pop %v1331
  %v1334 = vtanh.pop %v1332
  %v1335 = vmul.f32 %v1333, %v65
  %v1336 = vmul.f32 %v1334, %v66
  %v1337 = vadd.f32 %v1335, %v67
  %v1338 = vadd.f32 %v1336, %v68
  %1340 = vrot.lane.b32.xlu0 %v1338, 32
  %v1341 = vpop.permute.xlu0 %1340
  %v1343 = vsel %vm133, %v1337, %v1341
  %1345 = vrot.lane.b32.xlu0 %v1337, 96
  %v1346 = vpop.permute.xlu0 %1345
  %v1348 = vsel %vm133, %v1346, %v1338
  %1349 = vrot.lane.b32.xlu0 %v1337, 64
  %v1350 = vpop.permute.xlu0 %1349
  %1352 = vrot.lane.b32.xlu0 %v1338, 96
  %v1353 = vpop.permute.xlu0 %1352
  %v1355 = vsel %vm133, %v1350, %v1353
  %1356 = vrot.lane.b32.xlu0 %v1337, 32
  %v1357 = vpop.permute.xlu0 %1356
  %1359 = vrot.lane.b32.xlu0 %v1338, 64
  %v1360 = vpop.permute.xlu0 %1359
  %v1362 = vsel %vm133, %v1357, %v1360
  %v1363 = vmul.f32 %v1348, %v1223
  %v1364 = vmul.f32 %v1343, %v1355
  %v1365 = vadd.f32 %v1363, %v1364
  %v1366 = vtanh.pop %v1365
  %v1367 = vmul.f32 %v1362, %v1366
  %v1368 = vpack.c.bf16 %v1367, %v1367
  %s1369 = scalar_lea.vmem [#allocation3], 28
  %1370 = vst.msk [vmem:[%s1369] sm:$0xf] %vm369, %v1368
  %v1372 = vunpack.c.l.b16 %v1368
  %v1373 = vpack.c.b16 %v1372, %v1372
  %1374 = vrot.lane.b32.xlu0 %v1373, 96
  %v1375 = vpop.permute.xlu0 %1374
  %1377 = vst.msk [vmem:[#allocation4] sm:$0xf] %vm369, %v1375
  %v1378 = vld [vmem:[#allocation3] sm:$0xf]
  %v1379 = vld [vmem:[#allocation3 + $0x4] sm:$0xf]
  %v1380 = vld [vmem:[#allocation3 + $0x8] sm:$0xf]
  %v1381 = vld [vmem:[#allocation3 + $0xc] sm:$0xf]
  %v1382 = vld [vmem:[#allocation3 + $0x10] sm:$0xf]
  %v1383 = vld [vmem:[#allocation3 + $0x14] sm:$0xf]
  %v1384 = vld [vmem:[#allocation3 + $0x18] sm:$0xf]
  %v1385 = vld [vmem:[#allocation3 + $0x1c] sm:$0xf]
  %v1386 = vld [vmem:[#allocation4] sm:$0xf]
  %v1387 = vld [vmem:[#allocation4 + $0x4] sm:$0xf]
  %v1388 = vld [vmem:[#allocation4 + $0x8] sm:$0xf]
  %v1389 = vld [vmem:[#allocation4 + $0xc] sm:$0xf]
  %v1390 = vld [vmem:[#allocation4 + $0x10] sm:$0xf]
  %v1391 = vld [vmem:[#allocation4 + $0x14] sm:$0xf]
  %v1392 = vld [vmem:[#allocation4 + $0x18] sm:$0xf]
  %v1393 = vld [vmem:[#allocation4 + $0x1c] sm:$0xf]
  %v1402 = vunpack.c.l.b16 %v1378
  %v1403 = vunpack.c.l.b16 %v1379
  %v1404 = vunpack.c.l.b16 %v1380
  %v1405 = vunpack.c.l.b16 %v1381
  %v1406 = vunpack.c.l.b16 %v1382
  %v1407 = vunpack.c.l.b16 %v1383
  %v1408 = vunpack.c.l.b16 %v1384
  %v1409 = vunpack.c.l.b16 %v1385
  %v1410 = vpack.c.b16 %v1403, %v1402
  %v1411 = vpack.c.b16 %v1405, %v1404
  %v1412 = vpack.c.b16 %v1407, %v1406
  %v1413 = vpack.c.b16 %v1409, %v1408
  %v1422 = vunpack.c.l.b16 %v1386
  %v1423 = vunpack.c.l.b16 %v1387
  %v1424 = vunpack.c.l.b16 %v1388
  %v1425 = vunpack.c.l.b16 %v1389
  %v1426 = vunpack.c.l.b16 %v1390
  %v1427 = vunpack.c.l.b16 %v1391
  %v1428 = vunpack.c.l.b16 %v1392
  %v1429 = vunpack.c.l.b16 %v1393
  %v1430 = vpack.c.b16 %v1423, %v1422
  %v1431 = vpack.c.b16 %v1425, %v1424
  %v1432 = vpack.c.b16 %v1427, %v1426
  %v1433 = vpack.c.b16 %v1429, %v1428
  %1434 = vrot.lane.b32.xlu0 %v1430, 32
  %v1435 = vpop.permute.xlu0 %1434
  %1436 = vrot.lane.b32.xlu0 %v1431, 32
  %v1437 = vpop.permute.xlu0 %1436
  %1438 = vrot.lane.b32.xlu0 %v1432, 32
  %v1439 = vpop.permute.xlu0 %1438
  %1440 = vrot.lane.b32.xlu0 %v1433, 32
  %v1441 = vpop.permute.xlu0 %1440
  %v1444 = vsel %vm133, %v1410, %v1435
  %v1447 = vsel %vm133, %v1411, %v1437
  %v1450 = vsel %vm133, %v1412, %v1439
  %v1453 = vsel %vm133, %v1413, %v1441
  %v1454 = vld [vmem:[%s4] sm:$0xff]
  %v1455 = vld [vmem:[%s4 + $0x8] sm:$0xff]
  %v1456 = vld [vmem:[%s4 + $0x10] sm:$0xff]
  %v1457 = vld [vmem:[%s4 + $0x18] sm:$0xff]
  %v1458 = vld [vmem:[%s4 + $0x20] sm:$0xff]
  %v1459 = vld [vmem:[%s4 + $0x28] sm:$0xff]
  %v1460 = vld [vmem:[%s4 + $0x30] sm:$0xff]
  %v1461 = vld [vmem:[%s4 + $0x38] sm:$0xff]
  %v1462 = vld [vmem:[%s6] sm:$0x3]
  %v1464 = vlaneseq
  %v1465 = vshrl.u32 %v1464, 7
  %v1466 = vsub.s32 0, %v1465
  %v1467 = vrot.slane %v1462, %v1466
  %v1468 = vlaneseq
  %v1469 = vshrl.u32 %v1468, 7
  %v1470 = vsub.s32 1, %v1469
  %v1471 = vrot.slane %v1462, %v1470
  %v1482 = vunpack.c.l.b16 %v1454
  %v1483 = vunpack.c.h.b16 %v1454
  %v1484 = vunpack.c.l.b16 %v1455
  %v1485 = vunpack.c.h.b16 %v1455
  %v1486 = vunpack.c.l.b16 %v1456
  %v1487 = vunpack.c.h.b16 %v1456
  %v1488 = vunpack.c.l.b16 %v1457
  %v1489 = vunpack.c.h.b16 %v1457
  %v1490 = vunpack.c.l.b16 %v1458
  %v1491 = vunpack.c.h.b16 %v1458
  %v1492 = vunpack.c.l.b16 %v1459
  %v1493 = vunpack.c.h.b16 %v1459
  %v1494 = vunpack.c.l.b16 %v1460
  %v1495 = vunpack.c.h.b16 %v1460
  %v1496 = vunpack.c.l.b16 %v1461
  %v1497 = vunpack.c.h.b16 %v1461
  %v1498 = vpack.c.b16 %v1484, %v1482
  %v1499 = vpack.c.b16 %v1485, %v1483
  %v1500 = vpack.c.b16 %v1488, %v1486
  %v1501 = vpack.c.b16 %v1489, %v1487
  %v1502 = vpack.c.b16 %v1492, %v1490
  %v1503 = vpack.c.b16 %v1493, %v1491
  %v1504 = vpack.c.b16 %v1496, %v1494
  %v1505 = vpack.c.b16 %v1497, %v1495
  %v1514 = vsel %vm286, %v1444, 0
  %v1516 = vsel %vm286, %v1447, 0
  %v1518 = vsel %vm286, %v1450, 0
  %v1520 = vsel %vm286, %v1453, 0
  %1522 = vmatprep.subr.bf16.mxu0 0
  %1523 = vmatpush1.bf16.msra.mxu0 0
  %1524 = vmatprep.subr.bf16.mxu0 0
  %1525 = vmatpush1.bf16.msra.mxu0 0
  %1526 = vmatprep.subr.bf16.mxu0 0
  %1527 = vmatpush1.bf16.msra.mxu0 0
  %1528 = vmatprep.subr.bf16.mxu0 0
  %1529 = vmatpush1.bf16.msra.mxu0 0
  %1530 = vmatprep.subr.bf16.mxu0 %v1505
  %1531 = vmatpush1.bf16.msra.mxu0 %v1504
  %1532 = vmatprep.subr.bf16.mxu0 %v1503
  %1533 = vmatpush1.bf16.msra.mxu0 %v1502
  %1534 = vmatprep.subr.bf16.mxu0 %v1501
  %1535 = vmatpush1.bf16.msra.mxu0 %v1500
  %1536 = vmatprep.subr.bf16.mxu0 %v1499
  %1537 = vmatpush1.bf16.msra.mxu0 %v1498
  %1538 = vmatprep.subr.bf16.mxu0 0
  %1539 = vmatpush2.bf16.msra.mxu0 0
  %1540 = vmatprep.subr.bf16.mxu0 0
  %1541 = vmatpush2.bf16.msra.mxu0 0
  %1542 = vmatprep.subr.bf16.mxu0 0
  %1543 = vmatpush2.bf16.msra.mxu0 0
  %1544 = vmatprep.subr.bf16.mxu0 0
  %1545 = vmatpush2.bf16.msra.mxu0 0
  %1546 = vmatprep.subr.bf16.mxu0 0
  %1547 = vmatpush2.bf16.msra.mxu0 0
  %1548 = vmatprep.subr.bf16.mxu0 0
  %1549 = vmatpush2.bf16.msra.mxu0 0
  %1550 = vmatprep.subr.bf16.mxu0 0
  %1551 = vmatpush2.bf16.msra.mxu0 0
  %1552 = vmatprep.subr.bf16.mxu0 0
  %1553 = vmatpush2.bf16.msra.mxu0 0
  %1554 = vmatprep.mubr.bf16.mxu0 0
  %1555 = vmatmul.mubr.bf16.gmra.mxu0 %v1514
  %v1556 = vpop.f32.mrf.mxu0
  %v1557 = vadd.f32 %v1467, %v1556
  %v1558 = vpop.f32.mrf.mxu0
  %v1559 = vadd.f32 %v1471, %v1558
  %v1560 = vpop.f32.mrf.mxu0
  %v1561 = vadd.f32 %v1467, %v1560
  %v1562 = vpop.f32.mrf.mxu0
  %v1563 = vadd.f32 %v1471, %v1562
  %1564 = vmatprep.mubr.bf16.mxu0 0
  %1565 = vmatmul.mubr.bf16.gmra.mxu0 %v1516
  %v1566 = vpop.f32.mrf.mxu0
  %v1567 = vadd.f32 %v1467, %v1566
  %v1568 = vpop.f32.mrf.mxu0
  %v1569 = vadd.f32 %v1471, %v1568
  %v1570 = vpop.f32.mrf.mxu0
  %v1571 = vadd.f32 %v1467, %v1570
  %v1572 = vpop.f32.mrf.mxu0
  %v1573 = vadd.f32 %v1471, %v1572
  %1574 = vmatprep.mubr.bf16.mxu0 0
  %1575 = vmatmul.mubr.bf16.gmra.mxu0 %v1518
  %v1576 = vpop.f32.mrf.mxu0
  %v1577 = vadd.f32 %v1467, %v1576
  %v1578 = vpop.f32.mrf.mxu0
  %v1579 = vadd.f32 %v1471, %v1578
  %v1580 = vpop.f32.mrf.mxu0
  %v1581 = vadd.f32 %v1467, %v1580
  %v1582 = vpop.f32.mrf.mxu0
  %v1583 = vadd.f32 %v1471, %v1582
  %1584 = vmatprep.mubr.bf16.mxu0 0
  %1585 = vmatmul.mubr.bf16.gmra.mxu0 %v1520
  %v1586 = vpop.f32.mrf.mxu0
  %v1587 = vadd.f32 %v1467, %v1586
  %v1588 = vpop.f32.mrf.mxu0
  %v1589 = vadd.f32 %v1471, %v1588
  %v1590 = vpop.f32.mrf.mxu0
  %v1591 = vadd.f32 %v1467, %v1590
  %v1592 = vpop.f32.mrf.mxu0
  %v1593 = vadd.f32 %v1471, %v1592
  %1594 = vdwg.mxu0
  %1595 = vst [vmem:[#allocation2] sm:$0xff] %v1557
  %1596 = vst [vmem:[#allocation2 + $0x8] sm:$0xff] %v1559
  %1597 = vst [vmem:[#allocation2 + $0x10] sm:$0xff] %v1561
  %1598 = vst [vmem:[#allocation2 + $0x18] sm:$0xff] %v1563
  %1599 = vst [vmem:[#allocation2 + $0x20] sm:$0xff] %v1567
  %1600 = vst [vmem:[#allocation2 + $0x28] sm:$0xff] %v1569
  %1601 = vst [vmem:[#allocation2 + $0x30] sm:$0xff] %v1571
  %1602 = vst [vmem:[#allocation2 + $0x38] sm:$0xff] %v1573
  %1603 = vst [vmem:[#allocation2 + $0x40] sm:$0xff] %v1577
  %1604 = vst [vmem:[#allocation2 + $0x48] sm:$0xff] %v1579
  %1605 = vst [vmem:[#allocation2 + $0x50] sm:$0xff] %v1581
  %1606 = vst [vmem:[#allocation2 + $0x58] sm:$0xff] %v1583
  %1607 = vst [vmem:[#allocation2 + $0x60] sm:$0xff] %v1587
  %1608 = vst [vmem:[#allocation2 + $0x68] sm:$0xff] %v1589
  %1609 = vst [vmem:[#allocation2 + $0x70] sm:$0xff] %v1591
  %1610 = vst [vmem:[#allocation2 + $0x78] sm:$0xff] %v1593
  %v1611 = vld [vmem:[#allocation2] sm:$0xff]
  %v1612 = vld [vmem:[#allocation2 + $0x8] sm:$0xff]
  %v1613 = vld [vmem:[%s236] sm:$0xff]
  %v1614 = vld [vmem:[%s236 + $0x8] sm:$0xff]
  %v1615 = vld [vmem:[%s5] sm:$0xff]
  %v1616 = vld [vmem:[%s5 + $0x8] sm:$0xff]
  %v1617 = vld [vmem:[%s5 + $0x10] sm:$0xff]
  %v1618 = vld [vmem:[%s5 + $0x18] sm:$0xff]
  %v1619 = vld [vmem:[%s5 + $0x20] sm:$0xff]
  %v1620 = vld [vmem:[%s5 + $0x28] sm:$0xff]
  %v1621 = vld [vmem:[%s5 + $0x30] sm:$0xff]
  %v1622 = vld [vmem:[%s5 + $0x38] sm:$0xff]
  %v1631 = vunpack.c.l.b16 %v1615
  %v1632 = vunpack.c.h.b16 %v1615
  %v1633 = vunpack.c.l.b16 %v1616
  %v1634 = vunpack.c.h.b16 %v1616
  %v1635 = vunpack.c.l.b16 %v1617
  %v1636 = vunpack.c.h.b16 %v1617
  %v1637 = vunpack.c.l.b16 %v1618
  %v1638 = vunpack.c.h.b16 %v1618
  %v1639 = vunpack.c.l.b16 %v1619
  %v1640 = vunpack.c.h.b16 %v1619
  %v1641 = vunpack.c.l.b16 %v1620
  %v1642 = vunpack.c.h.b16 %v1620
  %v1643 = vunpack.c.l.b16 %v1621
  %v1644 = vunpack.c.h.b16 %v1621
  %v1645 = vunpack.c.l.b16 %v1622
  %v1646 = vunpack.c.h.b16 %v1622
  %v1647 = vpack.c.b16 %v1633, %v1631
  %v1648 = vpack.c.b16 %v1634, %v1632
  %v1649 = vpack.c.b16 %v1637, %v1635
  %v1650 = vpack.c.b16 %v1638, %v1636
  %v1651 = vpack.c.b16 %v1641, %v1639
  %v1652 = vpack.c.b16 %v1642, %v1640
  %v1653 = vpack.c.b16 %v1645, %v1643
  %v1654 = vpack.c.b16 %v1646, %v1644
  %1663 = vmatprep.subr.bf16.mxu0 0
  %1664 = vmatpush1.bf16.msra.mxu0 0
  %1665 = vmatprep.subr.bf16.mxu0 0
  %1666 = vmatpush1.bf16.msra.mxu0 0
  %1667 = vmatprep.subr.bf16.mxu0 0
  %1668 = vmatpush1.bf16.msra.mxu0 0
  %1669 = vmatprep.subr.bf16.mxu0 0
  %1670 = vmatpush1.bf16.msra.mxu0 0
  %1671 = vmatprep.subr.bf16.mxu0 %v1654
  %1672 = vmatpush1.bf16.msra.mxu0 %v1653
  %1673 = vmatprep.subr.bf16.mxu0 %v1652
  %1674 = vmatpush1.bf16.msra.mxu0 %v1651
  %1675 = vmatprep.subr.bf16.mxu0 %v1650
  %1676 = vmatpush1.bf16.msra.mxu0 %v1649
  %1677 = vmatprep.subr.bf16.mxu0 %v1648
  %1678 = vmatpush1.bf16.msra.mxu0 %v1647
  %1679 = vmatprep.subr.bf16.mxu0 0
  %1680 = vmatpush2.bf16.msra.mxu0 0
  %1681 = vmatprep.subr.bf16.mxu0 0
  %1682 = vmatpush2.bf16.msra.mxu0 0
  %1683 = vmatprep.subr.bf16.mxu0 0
  %1684 = vmatpush2.bf16.msra.mxu0 0
  %1685 = vmatprep.subr.bf16.mxu0 0
  %1686 = vmatpush2.bf16.msra.mxu0 0
  %1687 = vmatprep.subr.bf16.mxu0 0
  %1688 = vmatpush2.bf16.msra.mxu0 0
  %1689 = vmatprep.subr.bf16.mxu0 0
  %1690 = vmatpush2.bf16.msra.mxu0 0
  %1691 = vmatprep.subr.bf16.mxu0 0
  %1692 = vmatpush2.bf16.msra.mxu0 0
  %1693 = vmatprep.subr.bf16.mxu0 0
  %1694 = vmatpush2.bf16.msra.mxu0 0
  %1695 = vmatprep.mubr.bf16.mxu0 0
  %1696 = vmatmul.mubr.bf16.gmra.mxu0 %v288
  %v1697 = vpop.f32.mrf.mxu0
  %v1698 = vadd.f32 0.0, %v1697
  %v1699 = vpop.f32.mrf.mxu0
  %v1700 = vadd.f32 0.0, %v1699
  %v1701 = vpop.f32.mrf.mxu0
  %v1702 = vpop.f32.mrf.mxu0
  %1703 = vdwg.mxu0
  %v1704 = vadd.f32 %v1611, %v1698
  %v1705 = vadd.f32 %v1614, %v1700
  %v1706 = vtanh.pop %v1704
  %v1707 = vtanh.pop %v1705
  %v1708 = vmul.f32 %v1706, %v65
  %v1709 = vmul.f32 %v1707, %v66
  %v1710 = vadd.f32 %v1708, %v67
  %v1711 = vadd.f32 %v1709, %v68
  %1713 = vrot.lane.b32.xlu0 %v1711, 32
  %v1714 = vpop.permute.xlu0 %1713
  %v1716 = vsel %vm133, %v1710, %v1714
  %1718 = vrot.lane.b32.xlu0 %v1710, 96
  %v1719 = vpop.permute.xlu0 %1718
  %v1721 = vsel %vm133, %v1719, %v1711
  %1722 = vrot.lane.b32.xlu0 %v1710, 64
  %v1723 = vpop.permute.xlu0 %1722
  %1725 = vrot.lane.b32.xlu0 %v1711, 96
  %v1726 = vpop.permute.xlu0 %1725
  %v1728 = vsel %vm133, %v1723, %v1726
  %1729 = vrot.lane.b32.xlu0 %v1710, 32
  %v1730 = vpop.permute.xlu0 %1729
  %1732 = vrot.lane.b32.xlu0 %v1711, 64
  %v1733 = vpop.permute.xlu0 %1732
  %v1735 = vsel %vm133, %v1730, %v1733
  %v1736 = vmul.f32 %v1721, 0.0
  %v1737 = vmul.f32 %v1716, %v1728
  %v1738 = vadd.f32 %v1736, %v1737
  %v1739 = vtanh.pop %v1738
  %v1740 = vmul.f32 %v1735, %v1739
  %v1741 = vadd.f32 %v1740, 0.0
  %1743 = vrot.lane.b32.xlu0 %v1740, 96
  %v1744 = vpop.permute.xlu0 %1743
  %v1746 = vadd.f32 %v1741, %v1744
  %v1747 = vpack.c.bf16 %v1740, %v1740
  %v1748 = vld [vmem:[%s379] sm:$0xff]
  %v1749 = vld [vmem:[%s379 + $0x8] sm:$0xff]
  %v1750 = vld [vmem:[%s381] sm:$0xff]
  %v1751 = vld [vmem:[%s381 + $0x8] sm:$0xff]
  %v1753 = vsel %vm286, %v1747, 0
  %1755 = vmatprep.subr.bf16.mxu0 0
  %1756 = vmatpush1.bf16.msra.mxu0 0
  %1757 = vmatprep.subr.bf16.mxu0 0
  %1758 = vmatpush1.bf16.msra.mxu0 0
  %1759 = vmatprep.subr.bf16.mxu0 0
  %1760 = vmatpush1.bf16.msra.mxu0 0
  %1761 = vmatprep.subr.bf16.mxu0 0
  %1762 = vmatpush1.bf16.msra.mxu0 0
  %1763 = vmatprep.subr.bf16.mxu0 %v1654
  %1764 = vmatpush1.bf16.msra.mxu0 %v1653
  %1765 = vmatprep.subr.bf16.mxu0 %v1652
  %1766 = vmatpush1.bf16.msra.mxu0 %v1651
  %1767 = vmatprep.subr.bf16.mxu0 %v1650
  %1768 = vmatpush1.bf16.msra.mxu0 %v1649
  %1769 = vmatprep.subr.bf16.mxu0 %v1648
  %1770 = vmatpush1.bf16.msra.mxu0 %v1647
  %1771 = vmatprep.subr.bf16.mxu0 0
  %1772 = vmatpush2.bf16.msra.mxu0 0
  %1773 = vmatprep.subr.bf16.mxu0 0
  %1774 = vmatpush2.bf16.msra.mxu0 0
  %1775 = vmatprep.subr.bf16.mxu0 0
  %1776 = vmatpush2.bf16.msra.mxu0 0
  %1777 = vmatprep.subr.bf16.mxu0 0
  %1778 = vmatpush2.bf16.msra.mxu0 0
  %1779 = vmatprep.subr.bf16.mxu0 0
  %1780 = vmatpush2.bf16.msra.mxu0 0
  %1781 = vmatprep.subr.bf16.mxu0 0
  %1782 = vmatpush2.bf16.msra.mxu0 0
  %1783 = vmatprep.subr.bf16.mxu0 0
  %1784 = vmatpush2.bf16.msra.mxu0 0
  %1785 = vmatprep.subr.bf16.mxu0 0
  %1786 = vmatpush2.bf16.msra.mxu0 0
  %1787 = vmatprep.mubr.bf16.mxu0 0
  %1788 = vmatmul.mubr.bf16.gmra.mxu0 %v1753
  %v1789 = vpop.f32.mrf.mxu0
  %v1790 = vadd.f32 0.0, %v1789
  %v1791 = vpop.f32.mrf.mxu0
  %v1792 = vadd.f32 0.0, %v1791
  %v1793 = vpop.f32.mrf.mxu0
  %v1794 = vpop.f32.mrf.mxu0
  %1795 = vdwg.mxu0
  %v1796 = vadd.f32 %v1748, %v1790
  %v1797 = vadd.f32 %v1751, %v1792
  %v1798 = vtanh.pop %v1796
  %v1799 = vtanh.pop %v1797
  %v1800 = vmul.f32 %v1798, %v65
  %v1801 = vmul.f32 %v1799, %v66
  %v1802 = vadd.f32 %v1800, %v67
  %v1803 = vadd.f32 %v1801, %v68
  %1805 = vrot.lane.b32.xlu0 %v1803, 32
  %v1806 = vpop.permute.xlu0 %1805
  %v1808 = vsel %vm133, %v1802, %v1806
  %1810 = vrot.lane.b32.xlu0 %v1802, 96
  %v1811 = vpop.permute.xlu0 %1810
  %v1813 = vsel %vm133, %v1811, %v1803
  %1814 = vrot.lane.b32.xlu0 %v1802, 64
  %v1815 = vpop.permute.xlu0 %1814
  %1817 = vrot.lane.b32.xlu0 %v1803, 96
  %v1818 = vpop.permute.xlu0 %1817
  %v1820 = vsel %vm133, %v1815, %v1818
  %1821 = vrot.lane.b32.xlu0 %v1802, 32
  %v1822 = vpop.permute.xlu0 %1821
  %1824 = vrot.lane.b32.xlu0 %v1803, 64
  %v1825 = vpop.permute.xlu0 %1824
  %v1827 = vsel %vm133, %v1822, %v1825
  %v1828 = vmul.f32 %v1813, %v1738
  %v1829 = vmul.f32 %v1808, %v1820
  %v1830 = vadd.f32 %v1828, %v1829
  %v1831 = vtanh.pop %v1830
  %v1832 = vmul.f32 %v1827, %v1831
  %v1833 = vadd.f32 %v1746, %v1832
  %1835 = vrot.lane.b32.xlu0 %v1832, 96
  %v1836 = vpop.permute.xlu0 %1835
  %v1838 = vadd.f32 %v1833, %v1836
  %v1839 = vpack.c.bf16 %v1832, %v1832
  %v1840 = vld [vmem:[%s523] sm:$0xff]
  %v1841 = vld [vmem:[%s523 + $0x8] sm:$0xff]
  %v1842 = vld [vmem:[%s525] sm:$0xff]
  %v1843 = vld [vmem:[%s525 + $0x8] sm:$0xff]
  %v1845 = vsel %vm286, %v1839, 0
  %1847 = vmatprep.subr.bf16.mxu0 0
  %1848 = vmatpush1.bf16.msra.mxu0 0
  %1849 = vmatprep.subr.bf16.mxu0 0
  %1850 = vmatpush1.bf16.msra.mxu0 0
  %1851 = vmatprep.subr.bf16.mxu0 0
  %1852 = vmatpush1.bf16.msra.mxu0 0
  %1853 = vmatprep.subr.bf16.mxu0 0
  %1854 = vmatpush1.bf16.msra.mxu0 0
  %1855 = vmatprep.subr.bf16.mxu0 %v1654
  %1856 = vmatpush1.bf16.msra.mxu0 %v1653
  %1857 = vmatprep.subr.bf16.mxu0 %v1652
  %1858 = vmatpush1.bf16.msra.mxu0 %v1651
  %1859 = vmatprep.subr.bf16.mxu0 %v1650
  %1860 = vmatpush1.bf16.msra.mxu0 %v1649
  %1861 = vmatprep.subr.bf16.mxu0 %v1648
  %1862 = vmatpush1.bf16.msra.mxu0 %v1647
  %1863 = vmatprep.subr.bf16.mxu0 0
  %1864 = vmatpush2.bf16.msra.mxu0 0
  %1865 = vmatprep.subr.bf16.mxu0 0
  %1866 = vmatpush2.bf16.msra.mxu0 0
  %1867 = vmatprep.subr.bf16.mxu0 0
  %1868 = vmatpush2.bf16.msra.mxu0 0
  %1869 = vmatprep.subr.bf16.mxu0 0
  %1870 = vmatpush2.bf16.msra.mxu0 0
  %1871 = vmatprep.subr.bf16.mxu0 0
  %1872 = vmatpush2.bf16.msra.mxu0 0
  %1873 = vmatprep.subr.bf16.mxu0 0
  %1874 = vmatpush2.bf16.msra.mxu0 0
  %1875 = vmatprep.subr.bf16.mxu0 0
  %1876 = vmatpush2.bf16.msra.mxu0 0
  %1877 = vmatprep.subr.bf16.mxu0 0
  %1878 = vmatpush2.bf16.msra.mxu0 0
  %1879 = vmatprep.mubr.bf16.mxu0 0
  %1880 = vmatmul.mubr.bf16.gmra.mxu0 %v1845
  %v1881 = vpop.f32.mrf.mxu0
  %v1882 = vadd.f32 0.0, %v1881
  %v1883 = vpop.f32.mrf.mxu0
  %v1884 = vadd.f32 0.0, %v1883
  %v1885 = vpop.f32.mrf.mxu0
  %v1886 = vpop.f32.mrf.mxu0
  %1887 = vdwg.mxu0
  %v1888 = vadd.f32 %v1840, %v1882
  %v1889 = vadd.f32 %v1843, %v1884
  %v1890 = vtanh.pop %v1888
  %v1891 = vtanh.pop %v1889
  %v1892 = vmul.f32 %v1890, %v65
  %v1893 = vmul.f32 %v1891, %v66
  %v1894 = vadd.f32 %v1892, %v67
  %v1895 = vadd.f32 %v1893, %v68
  %1897 = vrot.lane.b32.xlu0 %v1895, 32
  %v1898 = vpop.permute.xlu0 %1897
  %v1900 = vsel %vm133, %v1894, %v1898
  %1902 = vrot.lane.b32.xlu0 %v1894, 96
  %v1903 = vpop.permute.xlu0 %1902
  %v1905 = vsel %vm133, %v1903, %v1895
  %1906 = vrot.lane.b32.xlu0 %v1894, 64
  %v1907 = vpop.permute.xlu0 %1906
  %1909 = vrot.lane.b32.xlu0 %v1895, 96
  %v1910 = vpop.permute.xlu0 %1909
  %v1912 = vsel %vm133, %v1907, %v1910
  %1913 = vrot.lane.b32.xlu0 %v1894, 32
  %v1914 = vpop.permute.xlu0 %1913
  %1916 = vrot.lane.b32.xlu0 %v1895, 64
  %v1917 = vpop.permute.xlu0 %1916
  %v1919 = vsel %vm133, %v1914, %v1917
  %v1920 = vmul.f32 %v1905, %v1830
  %v1921 = vmul.f32 %v1900, %v1912
  %v1922 = vadd.f32 %v1920, %v1921
  %v1923 = vtanh.pop %v1922
  %v1924 = vmul.f32 %v1919, %v1923
  %v1925 = vadd.f32 %v1838, %v1924
  %1927 = vrot.lane.b32.xlu0 %v1924, 96
  %v1928 = vpop.permute.xlu0 %1927
  %v1930 = vadd.f32 %v1925, %v1928
  %v1931 = vpack.c.bf16 %v1924, %v1924
  %v1932 = vld [vmem:[%s667] sm:$0xff]
  %v1933 = vld [vmem:[%s667 + $0x8] sm:$0xff]
  %v1934 = vld [vmem:[%s669] sm:$0xff]
  %v1935 = vld [vmem:[%s669 + $0x8] sm:$0xff]
  %v1937 = vsel %vm286, %v1931, 0
  %1939 = vmatprep.subr.bf16.mxu0 0
  %1940 = vmatpush1.bf16.msra.mxu0 0
  %1941 = vmatprep.subr.bf16.mxu0 0
  %1942 = vmatpush1.bf16.msra.mxu0 0
  %1943 = vmatprep.subr.bf16.mxu0 0
  %1944 = vmatpush1.bf16.msra.mxu0 0
  %1945 = vmatprep.subr.bf16.mxu0 0
  %1946 = vmatpush1.bf16.msra.mxu0 0
  %1947 = vmatprep.subr.bf16.mxu0 %v1654
  %1948 = vmatpush1.bf16.msra.mxu0 %v1653
  %1949 = vmatprep.subr.bf16.mxu0 %v1652
  %1950 = vmatpush1.bf16.msra.mxu0 %v1651
  %1951 = vmatprep.subr.bf16.mxu0 %v1650
  %1952 = vmatpush1.bf16.msra.mxu0 %v1649
  %1953 = vmatprep.subr.bf16.mxu0 %v1648
  %1954 = vmatpush1.bf16.msra.mxu0 %v1647
  %1955 = vmatprep.subr.bf16.mxu0 0
  %1956 = vmatpush2.bf16.msra.mxu0 0
  %1957 = vmatprep.subr.bf16.mxu0 0
  %1958 = vmatpush2.bf16.msra.mxu0 0
  %1959 = vmatprep.subr.bf16.mxu0 0
  %1960 = vmatpush2.bf16.msra.mxu0 0
  %1961 = vmatprep.subr.bf16.mxu0 0
  %1962 = vmatpush2.bf16.msra.mxu0 0
  %1963 = vmatprep.subr.bf16.mxu0 0
  %1964 = vmatpush2.bf16.msra.mxu0 0
  %1965 = vmatprep.subr.bf16.mxu0 0
  %1966 = vmatpush2.bf16.msra.mxu0 0
  %1967 = vmatprep.subr.bf16.mxu0 0
  %1968 = vmatpush2.bf16.msra.mxu0 0
  %1969 = vmatprep.subr.bf16.mxu0 0
  %1970 = vmatpush2.bf16.msra.mxu0 0
  %1971 = vmatprep.mubr.bf16.mxu0 0
  %1972 = vmatmul.mubr.bf16.gmra.mxu0 %v1937
  %v1973 = vpop.f32.mrf.mxu0
  %v1974 = vadd.f32 0.0, %v1973
  %v1975 = vpop.f32.mrf.mxu0
  %v1976 = vadd.f32 0.0, %v1975
  %v1977 = vpop.f32.mrf.mxu0
  %v1978 = vpop.f32.mrf.mxu0
  %1979 = vdwg.mxu0
  %v1980 = vadd.f32 %v1932, %v1974
  %v1981 = vadd.f32 %v1935, %v1976
  %v1982 = vtanh.pop %v1980
  %v1983 = vtanh.pop %v1981
  %v1984 = vmul.f32 %v1982, %v65
  %v1985 = vmul.f32 %v1983, %v66
  %v1986 = vadd.f32 %v1984, %v67
  %v1987 = vadd.f32 %v1985, %v68
  %1989 = vrot.lane.b32.xlu0 %v1987, 32
  %v1990 = vpop.permute.xlu0 %1989
  %v1992 = vsel %vm133, %v1986, %v1990
  %1994 = vrot.lane.b32.xlu0 %v1986, 96
  %v1995 = vpop.permute.xlu0 %1994
  %v1997 = vsel %vm133, %v1995, %v1987
  %1998 = vrot.lane.b32.xlu0 %v1986, 64
  %v1999 = vpop.permute.xlu0 %1998
  %2001 = vrot.lane.b32.xlu0 %v1987, 96
  %v2002 = vpop.permute.xlu0 %2001
  %v2004 = vsel %vm133, %v1999, %v2002
  %2005 = vrot.lane.b32.xlu0 %v1986, 32
  %v2006 = vpop.permute.xlu0 %2005
  %2008 = vrot.lane.b32.xlu0 %v1987, 64
  %v2009 = vpop.permute.xlu0 %2008
  %v2011 = vsel %vm133, %v2006, %v2009
  %v2012 = vmul.f32 %v1997, %v1922
  %v2013 = vmul.f32 %v1992, %v2004
  %v2014 = vadd.f32 %v2012, %v2013
  %v2015 = vtanh.pop %v2014
  %v2016 = vmul.f32 %v2011, %v2015
  %v2017 = vadd.f32 %v1930, %v2016
  %2019 = vrot.lane.b32.xlu0 %v2016, 96
  %v2020 = vpop.permute.xlu0 %2019
  %v2022 = vadd.f32 %v2017, %v2020
  %v2023 = vpack.c.bf16 %v2016, %v2016
  %v2025 = vsel %vm286, %v2023, 0
  %2027 = vmatprep.subr.bf16.mxu0 0
  %2028 = vmatpush1.bf16.msra.mxu0 0
  %2029 = vmatprep.subr.bf16.mxu0 0
  %2030 = vmatpush1.bf16.msra.mxu0 0
  %2031 = vmatprep.subr.bf16.mxu0 0
  %2032 = vmatpush1.bf16.msra.mxu0 0
  %2033 = vmatprep.subr.bf16.mxu0 0
  %2034 = vmatpush1.bf16.msra.mxu0 0
  %2035 = vmatprep.subr.bf16.mxu0 %v1654
  %2036 = vmatpush1.bf16.msra.mxu0 %v1653
  %2037 = vmatprep.subr.bf16.mxu0 %v1652
  %2038 = vmatpush1.bf16.msra.mxu0 %v1651
  %2039 = vmatprep.subr.bf16.mxu0 %v1650
  %2040 = vmatpush1.bf16.msra.mxu0 %v1649
  %2041 = vmatprep.subr.bf16.mxu0 %v1648
  %2042 = vmatpush1.bf16.msra.mxu0 %v1647
  %2043 = vmatprep.subr.bf16.mxu0 0
  %2044 = vmatpush2.bf16.msra.mxu0 0
  %2045 = vmatprep.subr.bf16.mxu0 0
  %2046 = vmatpush2.bf16.msra.mxu0 0
  %2047 = vmatprep.subr.bf16.mxu0 0
  %2048 = vmatpush2.bf16.msra.mxu0 0
  %2049 = vmatprep.subr.bf16.mxu0 0
  %2050 = vmatpush2.bf16.msra.mxu0 0
  %2051 = vmatprep.subr.bf16.mxu0 0
  %2052 = vmatpush2.bf16.msra.mxu0 0
  %2053 = vmatprep.subr.bf16.mxu0 0
  %2054 = vmatpush2.bf16.msra.mxu0 0
  %2055 = vmatprep.subr.bf16.mxu0 0
  %2056 = vmatpush2.bf16.msra.mxu0 0
  %2057 = vmatprep.subr.bf16.mxu0 0
  %2058 = vmatpush2.bf16.msra.mxu0 0
  %2059 = vmatprep.mubr.bf16.mxu0 0
  %2060 = vmatmul.mubr.bf16.gmra.mxu0 %v2025
  %v2061 = vpop.f32.mrf.mxu0
  %v2062 = vadd.f32 0.0, %v2061
  %v2063 = vpop.f32.mrf.mxu0
  %v2064 = vadd.f32 0.0, %v2063
  %v2065 = vpop.f32.mrf.mxu0
  %v2066 = vpop.f32.mrf.mxu0
  %2067 = vdwg.mxu0
  %v2068 = vadd.f32 %v1934, %v2062
  %v2069 = vadd.f32 %v1933, %v2064
  %v2070 = vtanh.pop %v2068
  %v2071 = vtanh.pop %v2069
  %v2072 = vmul.f32 %v2070, %v65
  %v2073 = vmul.f32 %v2071, %v66
  %v2074 = vadd.f32 %v2072, %v67
  %v2075 = vadd.f32 %v2073, %v68
  %2077 = vrot.lane.b32.xlu0 %v2075, 32
  %v2078 = vpop.permute.xlu0 %2077
  %v2080 = vsel %vm133, %v2074, %v2078
  %2082 = vrot.lane.b32.xlu0 %v2074, 96
  %v2083 = vpop.permute.xlu0 %2082
  %v2085 = vsel %vm133, %v2083, %v2075
  %2086 = vrot.lane.b32.xlu0 %v2074, 64
  %v2087 = vpop.permute.xlu0 %2086
  %2089 = vrot.lane.b32.xlu0 %v2075, 96
  %v2090 = vpop.permute.xlu0 %2089
  %v2092 = vsel %vm133, %v2087, %v2090
  %2093 = vrot.lane.b32.xlu0 %v2074, 32
  %v2094 = vpop.permute.xlu0 %2093
  %2096 = vrot.lane.b32.xlu0 %v2075, 64
  %v2097 = vpop.permute.xlu0 %2096
  %v2099 = vsel %vm133, %v2094, %v2097
  %v2100 = vmul.f32 %v2085, %v2014
  %v2101 = vmul.f32 %v2080, %v2092
  %v2102 = vadd.f32 %v2100, %v2101
  %v2103 = vtanh.pop %v2102
  %v2104 = vmul.f32 %v2099, %v2103
  %v2105 = vadd.f32 %v2022, %v2104
  %2107 = vrot.lane.b32.xlu0 %v2104, 96
  %v2108 = vpop.permute.xlu0 %2107
  %v2110 = vadd.f32 %v2105, %v2108
  %v2111 = vpack.c.bf16 %v2104, %v2104
  %v2113 = vsel %vm286, %v2111, 0
  %2115 = vmatprep.subr.bf16.mxu0 0
  %2116 = vmatpush1.bf16.msra.mxu0 0
  %2117 = vmatprep.subr.bf16.mxu0 0
  %2118 = vmatpush1.bf16.msra.mxu0 0
  %2119 = vmatprep.subr.bf16.mxu0 0
  %2120 = vmatpush1.bf16.msra.mxu0 0
  %2121 = vmatprep.subr.bf16.mxu0 0
  %2122 = vmatpush1.bf16.msra.mxu0 0
  %2123 = vmatprep.subr.bf16.mxu0 %v1654
  %2124 = vmatpush1.bf16.msra.mxu0 %v1653
  %2125 = vmatprep.subr.bf16.mxu0 %v1652
  %2126 = vmatpush1.bf16.msra.mxu0 %v1651
  %2127 = vmatprep.subr.bf16.mxu0 %v1650
  %2128 = vmatpush1.bf16.msra.mxu0 %v1649
  %2129 = vmatprep.subr.bf16.mxu0 %v1648
  %2130 = vmatpush1.bf16.msra.mxu0 %v1647
  %2131 = vmatprep.subr.bf16.mxu0 0
  %2132 = vmatpush2.bf16.msra.mxu0 0
  %2133 = vmatprep.subr.bf16.mxu0 0
  %2134 = vmatpush2.bf16.msra.mxu0 0
  %2135 = vmatprep.subr.bf16.mxu0 0
  %2136 = vmatpush2.bf16.msra.mxu0 0
  %2137 = vmatprep.subr.bf16.mxu0 0
  %2138 = vmatpush2.bf16.msra.mxu0 0
  %2139 = vmatprep.subr.bf16.mxu0 0
  %2140 = vmatpush2.bf16.msra.mxu0 0
  %2141 = vmatprep.subr.bf16.mxu0 0
  %2142 = vmatpush2.bf16.msra.mxu0 0
  %2143 = vmatprep.subr.bf16.mxu0 0
  %2144 = vmatpush2.bf16.msra.mxu0 0
  %2145 = vmatprep.subr.bf16.mxu0 0
  %2146 = vmatpush2.bf16.msra.mxu0 0
  %2147 = vmatprep.mubr.bf16.mxu0 0
  %2148 = vmatmul.mubr.bf16.gmra.mxu0 %v2113
  %v2149 = vpop.f32.mrf.mxu0
  %v2150 = vadd.f32 0.0, %v2149
  %v2151 = vpop.f32.mrf.mxu0
  %v2152 = vadd.f32 0.0, %v2151
  %v2153 = vpop.f32.mrf.mxu0
  %v2154 = vpop.f32.mrf.mxu0
  %2155 = vdwg.mxu0
  %v2156 = vadd.f32 %v1842, %v2150
  %v2157 = vadd.f32 %v1841, %v2152
  %v2158 = vtanh.pop %v2156
  %v2159 = vtanh.pop %v2157
  %v2160 = vmul.f32 %v2158, %v65
  %v2161 = vmul.f32 %v2159, %v66
  %v2162 = vadd.f32 %v2160, %v67
  %v2163 = vadd.f32 %v2161, %v68
  %2165 = vrot.lane.b32.xlu0 %v2163, 32
  %v2166 = vpop.permute.xlu0 %2165
  %v2168 = vsel %vm133, %v2162, %v2166
  %2170 = vrot.lane.b32.xlu0 %v2162, 96
  %v2171 = vpop.permute.xlu0 %2170
  %v2173 = vsel %vm133, %v2171, %v2163
  %2174 = vrot.lane.b32.xlu0 %v2162, 64
  %v2175 = vpop.permute.xlu0 %2174
  %2177 = vrot.lane.b32.xlu0 %v2163, 96
  %v2178 = vpop.permute.xlu0 %2177
  %v2180 = vsel %vm133, %v2175, %v2178
  %2181 = vrot.lane.b32.xlu0 %v2162, 32
  %v2182 = vpop.permute.xlu0 %2181
  %2184 = vrot.lane.b32.xlu0 %v2163, 64
  %v2185 = vpop.permute.xlu0 %2184
  %v2187 = vsel %vm133, %v2182, %v2185
  %v2188 = vmul.f32 %v2173, %v2102
  %v2189 = vmul.f32 %v2168, %v2180
  %v2190 = vadd.f32 %v2188, %v2189
  %v2191 = vtanh.pop %v2190
  %v2192 = vmul.f32 %v2187, %v2191
  %v2193 = vadd.f32 %v2110, %v2192
  %2195 = vrot.lane.b32.xlu0 %v2192, 96
  %v2196 = vpop.permute.xlu0 %2195
  %v2198 = vadd.f32 %v2193, %v2196
  %v2199 = vpack.c.bf16 %v2192, %v2192
  %v2201 = vsel %vm286, %v2199, 0
  %2203 = vmatprep.subr.bf16.mxu0 0
  %2204 = vmatpush1.bf16.msra.mxu0 0
  %2205 = vmatprep.subr.bf16.mxu0 0
  %2206 = vmatpush1.bf16.msra.mxu0 0
  %2207 = vmatprep.subr.bf16.mxu0 0
  %2208 = vmatpush1.bf16.msra.mxu0 0
  %2209 = vmatprep.subr.bf16.mxu0 0
  %2210 = vmatpush1.bf16.msra.mxu0 0
  %2211 = vmatprep.subr.bf16.mxu0 %v1654
  %2212 = vmatpush1.bf16.msra.mxu0 %v1653
  %2213 = vmatprep.subr.bf16.mxu0 %v1652
  %2214 = vmatpush1.bf16.msra.mxu0 %v1651
  %2215 = vmatprep.subr.bf16.mxu0 %v1650
  %2216 = vmatpush1.bf16.msra.mxu0 %v1649
  %2217 = vmatprep.subr.bf16.mxu0 %v1648
  %2218 = vmatpush1.bf16.msra.mxu0 %v1647
  %2219 = vmatprep.subr.bf16.mxu0 0
  %2220 = vmatpush2.bf16.msra.mxu0 0
  %2221 = vmatprep.subr.bf16.mxu0 0
  %2222 = vmatpush2.bf16.msra.mxu0 0
  %2223 = vmatprep.subr.bf16.mxu0 0
  %2224 = vmatpush2.bf16.msra.mxu0 0
  %2225 = vmatprep.subr.bf16.mxu0 0
  %2226 = vmatpush2.bf16.msra.mxu0 0
  %2227 = vmatprep.subr.bf16.mxu0 0
  %2228 = vmatpush2.bf16.msra.mxu0 0
  %2229 = vmatprep.subr.bf16.mxu0 0
  %2230 = vmatpush2.bf16.msra.mxu0 0
  %2231 = vmatprep.subr.bf16.mxu0 0
  %2232 = vmatpush2.bf16.msra.mxu0 0
  %2233 = vmatprep.subr.bf16.mxu0 0
  %2234 = vmatpush2.bf16.msra.mxu0 0
  %2235 = vmatprep.mubr.bf16.mxu0 0
  %2236 = vmatmul.mubr.bf16.gmra.mxu0 %v2201
  %v2237 = vpop.f32.mrf.mxu0
  %v2238 = vadd.f32 0.0, %v2237
  %v2239 = vpop.f32.mrf.mxu0
  %v2240 = vadd.f32 0.0, %v2239
  %v2241 = vpop.f32.mrf.mxu0
  %v2242 = vpop.f32.mrf.mxu0
  %2243 = vdwg.mxu0
  %v2244 = vadd.f32 %v1750, %v2238
  %v2245 = vadd.f32 %v1749, %v2240
  %v2246 = vtanh.pop %v2244
  %v2247 = vtanh.pop %v2245
  %v2248 = vmul.f32 %v2246, %v65
  %v2249 = vmul.f32 %v2247, %v66
  %v2250 = vadd.f32 %v2248, %v67
  %v2251 = vadd.f32 %v2249, %v68
  %2253 = vrot.lane.b32.xlu0 %v2251, 32
  %v2254 = vpop.permute.xlu0 %2253
  %v2256 = vsel %vm133, %v2250, %v2254
  %2258 = vrot.lane.b32.xlu0 %v2250, 96
  %v2259 = vpop.permute.xlu0 %2258
  %v2261 = vsel %vm133, %v2259, %v2251
  %2262 = vrot.lane.b32.xlu0 %v2250, 64
  %v2263 = vpop.permute.xlu0 %2262
  %2265 = vrot.lane.b32.xlu0 %v2251, 96
  %v2266 = vpop.permute.xlu0 %2265
  %v2268 = vsel %vm133, %v2263, %v2266
  %2269 = vrot.lane.b32.xlu0 %v2250, 32
  %v2270 = vpop.permute.xlu0 %2269
  %2272 = vrot.lane.b32.xlu0 %v2251, 64
  %v2273 = vpop.permute.xlu0 %2272
  %v2275 = vsel %vm133, %v2270, %v2273
  %v2276 = vmul.f32 %v2261, %v2190
  %v2277 = vmul.f32 %v2256, %v2268
  %v2278 = vadd.f32 %v2276, %v2277
  %v2279 = vtanh.pop %v2278
  %v2280 = vmul.f32 %v2275, %v2279
  %v2281 = vadd.f32 %v2198, %v2280
  %2283 = vrot.lane.b32.xlu0 %v2280, 96
  %v2284 = vpop.permute.xlu0 %2283
  %v2286 = vadd.f32 %v2281, %v2284
  %v2287 = vpack.c.bf16 %v2280, %v2280
  %v2289 = vsel %vm286, %v2287, 0
  %2291 = vmatprep.subr.bf16.mxu0 0
  %2292 = vmatpush1.bf16.msra.mxu0 0
  %2293 = vmatprep.subr.bf16.mxu0 0
  %2294 = vmatpush1.bf16.msra.mxu0 0
  %2295 = vmatprep.subr.bf16.mxu0 0
  %2296 = vmatpush1.bf16.msra.mxu0 0
  %2297 = vmatprep.subr.bf16.mxu0 0
  %2298 = vmatpush1.bf16.msra.mxu0 0
  %2299 = vmatprep.subr.bf16.mxu0 %v1654
  %2300 = vmatpush1.bf16.msra.mxu0 %v1653
  %2301 = vmatprep.subr.bf16.mxu0 %v1652
  %2302 = vmatpush1.bf16.msra.mxu0 %v1651
  %2303 = vmatprep.subr.bf16.mxu0 %v1650
  %2304 = vmatpush1.bf16.msra.mxu0 %v1649
  %2305 = vmatprep.subr.bf16.mxu0 %v1648
  %2306 = vmatpush1.bf16.msra.mxu0 %v1647
  %2307 = vmatprep.subr.bf16.mxu0 0
  %2308 = vmatpush2.bf16.msra.mxu0 0
  %2309 = vmatprep.subr.bf16.mxu0 0
  %2310 = vmatpush2.bf16.msra.mxu0 0
  %2311 = vmatprep.subr.bf16.mxu0 0
  %2312 = vmatpush2.bf16.msra.mxu0 0
  %2313 = vmatprep.subr.bf16.mxu0 0
  %2314 = vmatpush2.bf16.msra.mxu0 0
  %2315 = vmatprep.subr.bf16.mxu0 0
  %2316 = vmatpush2.bf16.msra.mxu0 0
  %2317 = vmatprep.subr.bf16.mxu0 0
  %2318 = vmatpush2.bf16.msra.mxu0 0
  %2319 = vmatprep.subr.bf16.mxu0 0
  %2320 = vmatpush2.bf16.msra.mxu0 0
  %2321 = vmatprep.subr.bf16.mxu0 0
  %2322 = vmatpush2.bf16.msra.mxu0 0
  %2323 = vmatprep.mubr.bf16.mxu0 0
  %2324 = vmatmul.mubr.bf16.gmra.mxu0 %v2289
  %v2325 = vpop.f32.mrf.mxu0
  %v2326 = vadd.f32 0.0, %v2325
  %v2327 = vpop.f32.mrf.mxu0
  %v2328 = vadd.f32 0.0, %v2327
  %v2329 = vpop.f32.mrf.mxu0
  %v2330 = vpop.f32.mrf.mxu0
  %2331 = vdwg.mxu0
  %v2332 = vadd.f32 %v1613, %v2326
  %v2333 = vadd.f32 %v1612, %v2328
  %v2334 = vtanh.pop %v2332
  %v2335 = vtanh.pop %v2333
  %v2336 = vmul.f32 %v2334, %v65
  %v2337 = vmul.f32 %v2335, %v66
  %v2338 = vadd.f32 %v2336, %v67
  %v2339 = vadd.f32 %v2337, %v68
  %2341 = vrot.lane.b32.xlu0 %v2339, 32
  %v2342 = vpop.permute.xlu0 %2341
  %v2344 = vsel %vm133, %v2338, %v2342
  %2346 = vrot.lane.b32.xlu0 %v2338, 96
  %v2347 = vpop.permute.xlu0 %2346
  %v2349 = vsel %vm133, %v2347, %v2339
  %2350 = vrot.lane.b32.xlu0 %v2338, 64
  %v2351 = vpop.permute.xlu0 %2350
  %2353 = vrot.lane.b32.xlu0 %v2339, 96
  %v2354 = vpop.permute.xlu0 %2353
  %v2356 = vsel %vm133, %v2351, %v2354
  %2357 = vrot.lane.b32.xlu0 %v2338, 32
  %v2358 = vpop.permute.xlu0 %2357
  %2360 = vrot.lane.b32.xlu0 %v2339, 64
  %v2361 = vpop.permute.xlu0 %2360
  %v2363 = vsel %vm133, %v2358, %v2361
  %v2364 = vmul.f32 %v2349, %v2278
  %v2365 = vmul.f32 %v2344, %v2356
  %v2366 = vadd.f32 %v2364, %v2365
  %v2367 = vtanh.pop %v2366
  %v2368 = vmul.f32 %v2363, %v2367
  %v2369 = vadd.f32 %v2286, %v2368
  %2371 = vrot.lane.b32.xlu0 %v2368, 96
  %v2372 = vpop.permute.xlu0 %2371
  %v2374 = vadd.f32 %v2369, %v2372
  %v2375 = vmul.f32 %v2374, 0.125
  %2376 = vst.msk [vmem:[%s8] sm:$0xff] %vm133, %v2375
  %v2377 = vld [vmem:[%s7] sm:$0xff]
  %v2378 = vld [vmem:[%s7 + $0x8] sm:$0xff]
  %v2379 = vld [vmem:[%s7 + $0x10] sm:$0xff]
  %v2380 = vld [vmem:[%s7 + $0x18] sm:$0xff]
  %v2382 = vsel %vm133, %v2375, 0
  %2384 = vmatprep.subr.mxu0 0.0
  %2385 = vmatpush1.msra.mxu0 0.0
  %2386 = vmatprep.subr.mxu0 0.0
  %2387 = vmatpush1.msra.mxu0 0.0
  %2388 = vmatprep.subr.mxu0 0.0
  %2389 = vmatpush1.msra.mxu0 0.0
  %2390 = vmatprep.subr.mxu0 0.0
  %2391 = vmatpush1.msra.mxu0 0.0
  %2392 = vmatprep.subr.mxu0 0.0
  %2393 = vmatpush1.msra.mxu0 0.0
  %2394 = vmatprep.subr.mxu0 0.0
  %2395 = vmatpush1.msra.mxu0 0.0
  %2396 = vmatprep.subr.mxu0 0.0
  %2397 = vmatpush1.msra.mxu0 0.0
  %2398 = vmatprep.subr.mxu0 0.0
  %2399 = vmatpush1.msra.mxu0 0.0
  %2400 = vmatprep.subr.mxu0 0.0
  %2401 = vmatpush1.msra.mxu0 0.0
  %2402 = vmatprep.subr.mxu0 0.0
  %2403 = vmatpush1.msra.mxu0 0.0
  %2404 = vmatprep.subr.mxu0 0.0
  %2405 = vmatpush1.msra.mxu0 0.0
  %2406 = vmatprep.subr.mxu0 0.0
  %2407 = vmatpush1.msra.mxu0 0.0
  %2408 = vmatprep.subr.mxu0 0.0
  %2409 = vmatpush1.msra.mxu0 %v2380
  %2410 = vmatprep.subr.mxu0 0.0
  %2411 = vmatpush1.msra.mxu0 %v2379
  %2412 = vmatprep.subr.mxu0 0.0
  %2413 = vmatpush1.msra.mxu0 %v2378
  %2414 = vmatprep.subr.mxu0 0.0
  %2415 = vmatpush1.msra.mxu0 %v2377
  %2416 = vmatprep.subr.mxu0 0.0
  %2417 = vmatpush2.msra.mxu0 0.0
  %2418 = vmatprep.subr.mxu0 0.0
  %2419 = vmatpush2.msra.mxu0 0.0
  %2420 = vmatprep.subr.mxu0 0.0
  %2421 = vmatpush2.msra.mxu0 0.0
  %2422 = vmatprep.subr.mxu0 0.0
  %2423 = vmatpush2.msra.mxu0 0.0
  %2424 = vmatprep.subr.mxu0 0.0
  %2425 = vmatpush2.msra.mxu0 0.0
  %2426 = vmatprep.subr.mxu0 0.0
  %2427 = vmatpush2.msra.mxu0 0.0
  %2428 = vmatprep.subr.mxu0 0.0
  %2429 = vmatpush2.msra.mxu0 0.0
  %2430 = vmatprep.subr.mxu0 0.0
  %2431 = vmatpush2.msra.mxu0 0.0
  %2432 = vmatprep.subr.mxu0 0.0
  %2433 = vmatpush2.msra.mxu0 0.0
  %2434 = vmatprep.subr.mxu0 0.0
  %2435 = vmatpush2.msra.mxu0 0.0
  %2436 = vmatprep.subr.mxu0 0.0
  %2437 = vmatpush2.msra.mxu0 0.0
  %2438 = vmatprep.subr.mxu0 0.0
  %2439 = vmatpush2.msra.mxu0 0.0
  %2440 = vmatprep.subr.mxu0 0.0
  %2441 = vmatpush2.msra.mxu0 0.0
  %2442 = vmatprep.subr.mxu0 0.0
  %2443 = vmatpush2.msra.mxu0 0.0
  %2444 = vmatprep.subr.mxu0 0.0
  %2445 = vmatpush2.msra.mxu0 0.0
  %2446 = vmatprep.subr.mxu0 0.0
  %2447 = vmatpush2.msra.mxu0 0.0
  %2448 = vmatprep.mubr.f32.mxu0 0.0
  %2449 = vmatmul.mubr.f32.gmra.mxu0 %v2382
  %v2450 = vpop.f32.mrf.mxu0
  %v2451 = vadd.f32 0.0, %v2450
  %v2452 = vpop.f32.mrf.mxu0
  %2453 = vdwg.mxu0
  %vm2454 = vcmask 31744
  %2455 = vst.msk [vmem:[%s9] sm:$0xff] %vm2454, %v2451
  // Predicated region
  $region34: #{_forward_core.1} parent=0 // pred_check
    _
  $region35: #{_forward_core.1} parent=0 // pred_check_branch
    %2457 = sbr.rel (0) target = $region37
  $region36: #{_forward_core.1} parent=0 // pred_region
    _
  $region37: #{_forward_core.1} parent=0 // pred_fallthru
    _
  // Predicated region
  $region38: #{_forward_core.1} parent=0 // pred_check
    _
  $region39: #{_forward_core.1} parent=0 // pred_check_branch
    %2459 = sbr.rel (0) target = $region41
  $region40: #{_forward_core.1} parent=0 // pred_region
    _
  $region41: #{_forward_core.1} parent=0 // pred_fallthru
    _
  // Predicated region
  $region42: #{_forward_core.1} parent=0 // pred_check
    _
  $region43: #{_forward_core.1} parent=0 // pred_check_branch
    %2461 = sbr.rel (0) target = $region45
  $region44: #{_forward_core.1} parent=0 // pred_region
    _
  $region45: #{_forward_core.1} parent=0 // pred_fallthru
    _
  // Predicated region
  $region46: #{_forward_core.1} parent=0 // pred_check
    _
  $region47: #{_forward_core.1} parent=0 // pred_check_branch
    %2463 = sbr.rel (0) target = $region49
  $region48: #{_forward_core.1} parent=0 // pred_region
    _
  $region49: #{_forward_core.1} parent=0 // pred_fallthru
    _

</llo_original>
